<compile_context>
chip_gen: v5e
topology: v5e:2x2
jax: 0.10.0
libtpu: 0.0.40
codegen_flags: <defaults>
</compile_context>

<pallas_src>
import math

import jax
import jax.numpy as jnp
from jax.experimental import pallas as pl
from jax.experimental.pallas import tpu as pltpu


def _sigmoid(x):
    # Logistic via tanh: one EUP op + one FMA on the VALU, no long-latency divide.
    return 0.5 * (jnp.tanh(0.5 * x) + 1.0)


def decoder_kernel(z_ref,
                   w1_ref, b1_ref,
                   w2_ref, b2_ref,
                   w3_ref, b3_ref,
                   w4_ref, b4_ref,
                   out_ref):
    h = jnp.dot(z_ref[...], w1_ref[...], preferred_element_type=jnp.float32) + b1_ref[...]
    h = jnp.maximum(h, 0.0)                                                   # ReLU

    h = jnp.dot(h, w2_ref[...], preferred_element_type=jnp.float32) + b2_ref[...]
    h = _sigmoid(h)

    h = jnp.dot(h, w3_ref[...], preferred_element_type=jnp.float32) + b3_ref[...]
    h = _sigmoid(h)

    h = jnp.dot(h, w4_ref[...], preferred_element_type=jnp.float32) + b4_ref[...]
    h = _sigmoid(h)

    out_ref[...] = h.astype(out_ref.dtype)


def init_decoder_params(key, latent_dims):
    """Deterministic init mimicking nn.Linear default (U[-1/sqrt(fan_in), +])."""
    dims = [(latent_dims, 128), (128, 256), (256, 512), (512, 1200)]
    params = []
    for (fan_in, fan_out) in dims:
        key, kw, kb = jax.random.split(key, 3)
        bound = 1.0 / jnp.sqrt(jnp.float32(fan_in))
        # store weights as (in, out) == W^T relative to PyTorch's (out, in)
        w = jax.random.uniform(kw, (fan_in, fan_out), jnp.float32, -bound, bound)
        b = jax.random.uniform(kb, (1, fan_out), jnp.float32, -bound, bound)
        params += [w, b]
    return params


def _pick_batch_tile(B, tb):
    """Multiple-of-8 batch tile; guarantees >= 2 grid steps when B > 8 so the
    BlockSpec pipeline and v7x megacore sharding have work to overlap."""
    if B <= 8:
        return 8
    return min(tb, 8 * math.ceil(B / 16))


def decoder_forward(z, params, *, tb=256):
    """Fused 4-layer MLP decoder. tb = max batch tile (256 fills the v6e/v7x
    MXU M dimension; v5e simply iterates two 128-row passes per tile)."""
    B, L = z.shape
    assert B % 100 == 0, "final reshape (-1,1,100,1200) requires batch % 100 == 0"
    w1, b1, w2, b2, w3, b3, w4, b4 = params
    NOUT = w4.shape[1]  # 1200

    tbe = _pick_batch_tile(B, tb)
    n_tiles = pl.cdiv(B, tbe)
    Bp = n_tiles * tbe
    zp = jnp.pad(z, ((0, Bp - B), (0, 0))) if Bp != B else z

    def resident(arr):
        # Whole-array block, constant index map, single-buffered: weights stay
        # resident in VMEM and are never refetched, so one buffer suffices.
        return pl.BlockSpec(arr.shape, lambda i: (0, 0),
                            pipeline_mode=pl.Buffered(1))

    flops = 2 * Bp * (L * 128 + 128 * 256 + 256 * 512 + 512 * NOUT)
    transcendentals = Bp * (256 + 512 + NOUT)
    bytes_accessed = 4 * (
        Bp * L + Bp * NOUT                                    # activations in/out
        + L * 128 + 128 * 256 + 256 * 512 + 512 * NOUT        # weights
        + 128 + 256 + 512 + NOUT)                             # biases

    out = pl.pallas_call(
        decoder_kernel,
        out_shape=jax.ShapeDtypeStruct((Bp, NOUT), jnp.float32),
        grid=(n_tiles,),
        in_specs=[
            pl.BlockSpec((tbe, L), lambda i: (i, 0)),   # z: tiled along batch
            resident(w1), resident(b1),
            resident(w2), resident(b2),
            resident(w3), resident(b3),
            resident(w4), resident(b4),
        ],
        out_specs=pl.BlockSpec((tbe, NOUT), lambda i: (i, 0)),
        compiler_params=pltpu.CompilerParams(
            dimension_semantics=("parallel",),          # megacore on v7x
            vmem_limit_bytes=32 << 20,
        ),
        cost_estimate=pl.CostEstimate(
            flops=flops,
            transcendentals=transcendentals,
            bytes_accessed=bytes_accessed,
        ),
    )(zp, w1, b1, w2, b2, w3, b3, w4, b4)

    if Bp != B:
        out = out[:B]          # drop padded batch rows only
    return out.reshape(-1, 1, 100, NOUT)


def decoder_forward_ref(z, params):
    """Pure-JAX reference (f32 matmuls pinned to HIGHEST precision so the
    comparison is like-for-like with the Mosaic f32 matmul)."""
    w1, b1, w2, b2, w3, b3, w4, b4 = params
    hi = jax.lax.Precision.HIGHEST
    h = jax.nn.relu(jnp.dot(z, w1, precision=hi) + b1)
    h = jax.nn.sigmoid(jnp.dot(h, w2, precision=hi) + b2)
    h = jax.nn.sigmoid(jnp.dot(h, w3, precision=hi) + b3)
    h = jax.nn.sigmoid(jnp.dot(h, w4, precision=hi) + b4)
    return h.reshape(-1, 1, 100, 1200)


if __name__ == "__main__":
    latent_dims = 16
    batch = 100  # forward's reshape (-1, 1, 100, 1200) implies batch % 100 == 0

    key = jax.random.PRNGKey(0)
    key, kz = jax.random.split(key)
    z = jax.random.normal(kz, (batch, latent_dims), jnp.float32)

    params = init_decoder_params(key, latent_dims)

    out = decoder_forward(z, params)
    out = jax.block_until_ready(out)

    ref = decoder_forward_ref(z, params)
    assert out.shape == (batch // 100, 1, 100, 1200), out.shape
    assert jnp.allclose(out, ref, atol=1e-5, rtol=1e-5), "mismatch vs reference"

    print("KERNEL_OK")
</pallas_src>

<mosaic_0001>
module attributes {stable_mosaic.version = 11 : i64} {
  func.func @decoder_kernel(%arg0: i32, %arg1: memref<56x16xf32, #tpu.memory_space<vmem>>, %arg2: memref<16x128xf32, #tpu.memory_space<vmem>>, %arg3: memref<1x128xf32, #tpu.memory_space<vmem>>, %arg4: memref<128x256xf32, #tpu.memory_space<vmem>>, %arg5: memref<1x256xf32, #tpu.memory_space<vmem>>, %arg6: memref<256x512xf32, #tpu.memory_space<vmem>>, %arg7: memref<1x512xf32, #tpu.memory_space<vmem>>, %arg8: memref<512x1200xf32, #tpu.memory_space<vmem>>, %arg9: memref<1x1200xf32, #tpu.memory_space<vmem>>, %arg10: memref<56x1200xf32, #tpu.memory_space<vmem>>) attributes {dimension_semantics = [#tpu.dimension_semantics<parallel>], iteration_bounds = array<i64: 2>, scalar_prefetch = 0 : i64, scratch_operands = 0 : i64, tpu.core_type = #tpu.core_type<tc>, window_params = [{transform_indices = @transform_0, window_bounds = array<i64: 56, 16>}, {pipeline_mode = #tpu.pipeline_mode<synchronous>, transform_indices = @transform_1, window_bounds = array<i64: 16, 128>}, {pipeline_mode = #tpu.pipeline_mode<synchronous>, transform_indices = @transform_2, window_bounds = array<i64: 1, 128>}, {pipeline_mode = #tpu.pipeline_mode<synchronous>, transform_indices = @transform_3, window_bounds = array<i64: 128, 256>}, {pipeline_mode = #tpu.pipeline_mode<synchronous>, transform_indices = @transform_4, window_bounds = array<i64: 1, 256>}, {pipeline_mode = #tpu.pipeline_mode<synchronous>, transform_indices = @transform_5, window_bounds = array<i64: 256, 512>}, {pipeline_mode = #tpu.pipeline_mode<synchronous>, transform_indices = @transform_6, window_bounds = array<i64: 1, 512>}, {pipeline_mode = #tpu.pipeline_mode<synchronous>, transform_indices = @transform_7, window_bounds = array<i64: 512, 1200>}, {pipeline_mode = #tpu.pipeline_mode<synchronous>, transform_indices = @transform_8, window_bounds = array<i64: 1, 1200>}, {transform_indices = @transform_9, window_bounds = array<i64: 56, 1200>}]} {
    %c0 = arith.constant 0 : index
    %c0_0 = arith.constant 0 : index
    %0 = vector.load %arg1[%c0, %c0_0] : memref<56x16xf32, #tpu.memory_space<vmem>>, vector<56x16xf32>
    %c0_1 = arith.constant 0 : index
    %c0_2 = arith.constant 0 : index
    %1 = vector.load %arg2[%c0_1, %c0_2] : memref<16x128xf32, #tpu.memory_space<vmem>>, vector<16x128xf32>
    %cst = arith.constant dense<0.000000e+00> : vector<56x128xf32>
    %2 = tpu.matmul %0, %1, %cst {dimension_numbers = #tpu.dot_dimension_numbers<[1], [0], [0], [1], [0, 0, 1, 1], [], []>} : vector<56x16xf32>, vector<16x128xf32>, vector<56x128xf32> -> vector<56x128xf32>
    %c0_3 = arith.constant 0 : index
    %c0_4 = arith.constant 0 : index
    %3 = vector.load %arg3[%c0_3, %c0_4] : memref<1x128xf32, #tpu.memory_space<vmem>>, vector<1x128xf32>
    %4 = vector.broadcast %3 : vector<1x128xf32> to vector<56x128xf32>
    %5 = arith.addf %2, %4 : vector<56x128xf32>
    %cst_5 = arith.constant 0.000000e+00 : f32
    %6 = vector.broadcast %cst_5 : f32 to vector<56x128xf32>
    %7 = arith.maximumf %5, %6 : vector<56x128xf32>
    %c0_6 = arith.constant 0 : index
    %c0_7 = arith.constant 0 : index
    %8 = vector.load %arg4[%c0_6, %c0_7] : memref<128x256xf32, #tpu.memory_space<vmem>>, vector<128x256xf32>
    %cst_8 = arith.constant dense<0.000000e+00> : vector<56x256xf32>
    %9 = tpu.matmul %7, %8, %cst_8 {dimension_numbers = #tpu.dot_dimension_numbers<[1], [0], [0], [1], [0, 0, 1, 1], [], []>} : vector<56x128xf32>, vector<128x256xf32>, vector<56x256xf32> -> vector<56x256xf32>
    %c0_9 = arith.constant 0 : index
    %c0_10 = arith.constant 0 : index
    %10 = vector.load %arg5[%c0_9, %c0_10] : memref<1x256xf32, #tpu.memory_space<vmem>>, vector<1x256xf32>
    %11 = vector.broadcast %10 : vector<1x256xf32> to vector<56x256xf32>
    %12 = arith.addf %9, %11 : vector<56x256xf32>
    %cst_11 = arith.constant 5.000000e-01 : f32
    %13 = vector.broadcast %cst_11 : f32 to vector<56x256xf32>
    %14 = arith.mulf %13, %12 : vector<56x256xf32>
    %15 = math.tanh %14 : vector<56x256xf32>
    %cst_12 = arith.constant 1.000000e+00 : f32
    %16 = vector.broadcast %cst_12 : f32 to vector<56x256xf32>
    %17 = arith.addf %15, %16 : vector<56x256xf32>
    %cst_13 = arith.constant 5.000000e-01 : f32
    %18 = vector.broadcast %cst_13 : f32 to vector<56x256xf32>
    %19 = arith.mulf %18, %17 : vector<56x256xf32>
    %c0_14 = arith.constant 0 : index
    %c0_15 = arith.constant 0 : index
    %20 = vector.load %arg6[%c0_14, %c0_15] : memref<256x512xf32, #tpu.memory_space<vmem>>, vector<256x512xf32>
    %cst_16 = arith.constant dense<0.000000e+00> : vector<56x512xf32>
    %21 = tpu.matmul %19, %20, %cst_16 {dimension_numbers = #tpu.dot_dimension_numbers<[1], [0], [0], [1], [0, 0, 1, 1], [], []>} : vector<56x256xf32>, vector<256x512xf32>, vector<56x512xf32> -> vector<56x512xf32>
    %c0_17 = arith.constant 0 : index
    %c0_18 = arith.constant 0 : index
    %22 = vector.load %arg7[%c0_17, %c0_18] : memref<1x512xf32, #tpu.memory_space<vmem>>, vector<1x512xf32>
    %23 = vector.broadcast %22 : vector<1x512xf32> to vector<56x512xf32>
    %24 = arith.addf %21, %23 : vector<56x512xf32>
    %cst_19 = arith.constant 5.000000e-01 : f32
    %25 = vector.broadcast %cst_19 : f32 to vector<56x512xf32>
    %26 = arith.mulf %25, %24 : vector<56x512xf32>
    %27 = math.tanh %26 : vector<56x512xf32>
    %cst_20 = arith.constant 1.000000e+00 : f32
    %28 = vector.broadcast %cst_20 : f32 to vector<56x512xf32>
    %29 = arith.addf %27, %28 : vector<56x512xf32>
    %cst_21 = arith.constant 5.000000e-01 : f32
    %30 = vector.broadcast %cst_21 : f32 to vector<56x512xf32>
    %31 = arith.mulf %30, %29 : vector<56x512xf32>
    %c0_22 = arith.constant 0 : index
    %c0_23 = arith.constant 0 : index
    %32 = vector.load %arg8[%c0_22, %c0_23] : memref<512x1200xf32, #tpu.memory_space<vmem>>, vector<512x1200xf32>
    %cst_24 = arith.constant dense<0.000000e+00> : vector<56x1200xf32>
    %33 = tpu.matmul %31, %32, %cst_24 {dimension_numbers = #tpu.dot_dimension_numbers<[1], [0], [0], [1], [0, 0, 1, 1], [], []>} : vector<56x512xf32>, vector<512x1200xf32>, vector<56x1200xf32> -> vector<56x1200xf32>
    %c0_25 = arith.constant 0 : index
    %c0_26 = arith.constant 0 : index
    %34 = vector.load %arg9[%c0_25, %c0_26] : memref<1x1200xf32, #tpu.memory_space<vmem>>, vector<1x1200xf32>
    %35 = vector.broadcast %34 : vector<1x1200xf32> to vector<56x1200xf32>
    %36 = arith.addf %33, %35 : vector<56x1200xf32>
    %cst_27 = arith.constant 5.000000e-01 : f32
    %37 = vector.broadcast %cst_27 : f32 to vector<56x1200xf32>
    %38 = arith.mulf %37, %36 : vector<56x1200xf32>
    %39 = math.tanh %38 : vector<56x1200xf32>
    %cst_28 = arith.constant 1.000000e+00 : f32
    %40 = vector.broadcast %cst_28 : f32 to vector<56x1200xf32>
    %41 = arith.addf %39, %40 : vector<56x1200xf32>
    %cst_29 = arith.constant 5.000000e-01 : f32
    %42 = vector.broadcast %cst_29 : f32 to vector<56x1200xf32>
    %43 = arith.mulf %42, %41 : vector<56x1200xf32>
    %c0_30 = arith.constant 0 : index
    %c0_31 = arith.constant 0 : index
    %44 = vector.load %arg10[%c0_30, %c0_31] : memref<56x1200xf32, #tpu.memory_space<vmem>>, vector<56x1200xf32>
    tpu.vector_store %arg10[%c0_30, %c0_31], %43 {strides = array<i32>} : memref<56x1200xf32, #tpu.memory_space<vmem>>, vector<56x1200xf32>,
    return
  }
  func.func @transform_0(%arg0: i32) -> (i32, i32) {
    %c0_i32 = arith.constant 0 : i32
    %c0_i32_0 = arith.constant 0 : i32
    return %arg0, %c0_i32 : i32, i32
  }
  func.func @transform_1(%arg0: i32) -> (i32, i32) {
    %c0_i32 = arith.constant 0 : i32
    %c0_i32_0 = arith.constant 0 : i32
    %c0_i32_1 = arith.constant 0 : i32
    return %c0_i32, %c0_i32_0 : i32, i32
  }
  func.func @transform_2(%arg0: i32) -> (i32, i32) {
    %c0_i32 = arith.constant 0 : i32
    %c0_i32_0 = arith.constant 0 : i32
    %c0_i32_1 = arith.constant 0 : i32
    return %c0_i32, %c0_i32_0 : i32, i32
  }
  func.func @transform_3(%arg0: i32) -> (i32, i32) {
    %c0_i32 = arith.constant 0 : i32
    %c0_i32_0 = arith.constant 0 : i32
    %c0_i32_1 = arith.constant 0 : i32
    return %c0_i32, %c0_i32_0 : i32, i32
  }
  func.func @transform_4(%arg0: i32) -> (i32, i32) {
    %c0_i32 = arith.constant 0 : i32
    %c0_i32_0 = arith.constant 0 : i32
    %c0_i32_1 = arith.constant 0 : i32
    return %c0_i32, %c0_i32_0 : i32, i32
  }
  func.func @transform_5(%arg0: i32) -> (i32, i32) {
    %c0_i32 = arith.constant 0 : i32
    %c0_i32_0 = arith.constant 0 : i32
    %c0_i32_1 = arith.constant 0 : i32
    return %c0_i32, %c0_i32_0 : i32, i32
  }
  func.func @transform_6(%arg0: i32) -> (i32, i32) {
    %c0_i32 = arith.constant 0 : i32
    %c0_i32_0 = arith.constant 0 : i32
    %c0_i32_1 = arith.constant 0 : i32
    return %c0_i32, %c0_i32_0 : i32, i32
  }
  func.func @transform_7(%arg0: i32) -> (i32, i32) {
    %c0_i32 = arith.constant 0 : i32
    %c0_i32_0 = arith.constant 0 : i32
    %c0_i32_1 = arith.constant 0 : i32
    return %c0_i32, %c0_i32_0 : i32, i32
  }
  func.func @transform_8(%arg0: i32) -> (i32, i32) {
    %c0_i32 = arith.constant 0 : i32
    %c0_i32_0 = arith.constant 0 : i32
    %c0_i32_1 = arith.constant 0 : i32
    return %c0_i32, %c0_i32_0 : i32, i32
  }
  func.func @transform_9(%arg0: i32) -> (i32, i32) {
    %c0_i32 = arith.constant 0 : i32
    %c0_i32_0 = arith.constant 0 : i32
    return %arg0, %c0_i32 : i32, i32
  }
}

</mosaic_0001>

<llo_original>
// kernel: tpu_custom_call.1
$region0: #{tpu_custom_call.1}
  #allocation0 [shape = 'u32[]', space=smem, size = 0x4, offset = 0x4, fixed_abs, tag = 'smem constant byte address 0x4 - core index']
  #allocation1 [shape = 'u32[72,128]{1,0:T(1,128)}', space=vmem, size = 0x9000, scoped, tag = 'internal scratch']
  %s0 = inlined_call_operand.vmem [shape: f32[112,16], index: 0, kind: input, shape index: {}]
  %s1 = inlined_call_operand.vmem [shape: f32[16,128], index: 1, kind: input, shape index: {}]
  %s2 = inlined_call_operand.vmem [shape: f32[1,128], index: 2, kind: input, shape index: {}]
  %s3 = inlined_call_operand.vmem [shape: f32[128,256], index: 3, kind: input, shape index: {}]
  %s4 = inlined_call_operand.vmem [shape: f32[1,256], index: 4, kind: input, shape index: {}]
  %s5 = inlined_call_operand.vmem [shape: f32[256,512], index: 5, kind: input, shape index: {}]
  %s6 = inlined_call_operand.vmem [shape: f32[1,512], index: 6, kind: input, shape index: {}]
  %s7 = inlined_call_operand.vmem [shape: f32[512,1200], index: 7, kind: input, shape index: {}]
  %s8 = inlined_call_operand.vmem [shape: f32[1,1200], index: 8, kind: input, shape index: {}]
  %s9 = inlined_call_operand.hbm [shape: f32[112,1200], index: 9, kind: output, shape index: {}]
  %s10 = sld [smem:[#allocation0]]
  $region69: #{tpu_custom_call.1} parent=0
    _
  %s12 = ssub.s32 1, %s10
  %s13 = scalar_select 0, %s12, %s10
  $region1: #{tpu_custom_call.1} parent=0
    #allocation2 [shape = 'u8[573440]{0}', space=vmem, size = 0x8c000, scoped, tag = 'output window, operand 0']
    #allocation3 [shape = 's32[2]{0}', space=sflag, size = 0x8, scoped, tag = 'scoped memory for tpu_custom_call.1']
    %14 = vsyncpa [#allocation3], 0
    %s15 = scalar_lea.sflag [#allocation3], 1
    %16 = vsyncpa %s15, 0
    loop: start=0, step=1, limit=4
    $region2: #{tpu_custom_call.1} parent=1 // loop_pre_header
      _
    $region3: #{tpu_custom_call.1} parent=1 // loop_header
      %s18 = sphi 0, %s22
      %p19 = scmp.ge.s32.totalorder %s18, 4
      %s28 = sphi 0, %s30
      %s31 = sphi 0, %s28
      %s32 = sphi 0, %s31
      %s48 = sphi 0, %s32
      %s52 = sphi 0, %s52
      %s54 = sphi 0, %s52
      %s55 = sphi 0, %s54
      %s69 = sphi 0, %s55
      %s73 = sphi 0, %s73
      %s75 = sphi 0, %s73
      %s76 = sphi 0, %s75
      %s90 = sphi 0, %s76
      %s94 = sphi 0, %s94
      %s96 = sphi 0, %s94
      %s97 = sphi 0, %s96
      %s111 = sphi 0, %s97
      %s115 = sphi 0, %s115
      %s117 = sphi 0, %s115
      %s118 = sphi 0, %s117
      %s132 = sphi 0, %s118
      %s136 = sphi 0, %s136
      %s138 = sphi 0, %s136
      %s139 = sphi 0, %s138
      %s153 = sphi 0, %s139
      %s157 = sphi 0, %s157
      %s159 = sphi 0, %s157
      %s160 = sphi 0, %s159
      %s174 = sphi 0, %s160
      %s178 = sphi 0, %s178
      %s180 = sphi 0, %s178
      %s181 = sphi 0, %s180
      %s195 = sphi 0, %s181
      %s199 = sphi 0, %s199
      %s201 = sphi 0, %s199
      %s202 = sphi 0, %s201
      %s216 = sphi 0, %s202
      %s222 = sphi 0, %s224
      %s225 = sphi 0, %s222
      %s226 = sphi 0, %s225
      %s242 = sphi 0, %s226
    $region4: #{tpu_custom_call.1} parent=1 // loop_header_branch
      %21 = sbr.rel (%p19) target = $region8
    $region5: #{tpu_custom_call.1} parent=1 // loop_body
      %s23 = ssub.s32 %s18, 1
      %s24 = ssub.s32 %s18, 2
      %s25 = sadd.s32 %s18, 1
      %s26 = ssub.s32 %s18, %s25
      %p27 = scmp.eq.s32.totalorder %s26, 0
      %s29 = sadd.s32 %s28, 1
      %s30 = scalar_select %p27, %s28, %s29
      %p33 = pneg %p27
      %p34 = scmp.eq.s32.totalorder %s18, 1
      %p35 = por %p33, %p34
      %p36 = scmp.ne.s32.totalorder %s28, %s31
      %p37 = scmp.eq.s32.totalorder %s18, 0
      %p38 = por %p36, %p37
      %p39 = scmp.ne.s32.totalorder %s28, %s31
      %p40 = scmp.eq.s32.totalorder %s23, 1
      %p41 = por %p39, %p40
      %p42 = scmp.ne.s32.totalorder %s31, %s32
      %p43 = scmp.eq.s32.totalorder %s23, 0
      %p44 = por %p42, %p43
      %p45 = scmp.ne.s32.totalorder %s31, %s32
      %p46 = scmp.eq.s32.totalorder %s24, 1
      %p47 = por %p45, %p46
      %p49 = scmp.ne.s32.totalorder %s32, %s48
      %p50 = scmp.eq.s32.totalorder %s24, 0
      %p51 = por %p49, %p50
      %s53 = sadd.s32 %s52, 1
      %p56 = scmp.eq.s32.totalorder %s18, 1
      %p57 = scmp.ne.s32.totalorder %s52, %s54
      %p58 = scmp.eq.s32.totalorder %s18, 0
      %p59 = por %p57, %p58
      %p60 = scmp.ne.s32.totalorder %s52, %s54
      %p61 = scmp.eq.s32.totalorder %s23, 1
      %p62 = por %p60, %p61
      %p63 = scmp.ne.s32.totalorder %s54, %s55
      %p64 = scmp.eq.s32.totalorder %s23, 0
      %p65 = por %p63, %p64
      %p66 = scmp.ne.s32.totalorder %s54, %s55
      %p67 = scmp.eq.s32.totalorder %s24, 1
      %p68 = por %p66, %p67
      %p70 = scmp.ne.s32.totalorder %s55, %s69
      %p71 = scmp.eq.s32.totalorder %s24, 0
      %p72 = por %p70, %p71
      %s74 = sadd.s32 %s73, 1
      %p77 = scmp.eq.s32.totalorder %s18, 1
      %p78 = scmp.ne.s32.totalorder %s73, %s75
      %p79 = scmp.eq.s32.totalorder %s18, 0
      %p80 = por %p78, %p79
      %p81 = scmp.ne.s32.totalorder %s73, %s75
      %p82 = scmp.eq.s32.totalorder %s23, 1
      %p83 = por %p81, %p82
      %p84 = scmp.ne.s32.totalorder %s75, %s76
      %p85 = scmp.eq.s32.totalorder %s23, 0
      %p86 = por %p84, %p85
      %p87 = scmp.ne.s32.totalorder %s75, %s76
      %p88 = scmp.eq.s32.totalorder %s24, 1
      %p89 = por %p87, %p88
      %p91 = scmp.ne.s32.totalorder %s76, %s90
      %p92 = scmp.eq.s32.totalorder %s24, 0
      %p93 = por %p91, %p92
      %s95 = sadd.s32 %s94, 1
      %p98 = scmp.eq.s32.totalorder %s18, 1
      %p99 = scmp.ne.s32.totalorder %s94, %s96
      %p100 = scmp.eq.s32.totalorder %s18, 0
      %p101 = por %p99, %p100
      %p102 = scmp.ne.s32.totalorder %s94, %s96
      %p103 = scmp.eq.s32.totalorder %s23, 1
      %p104 = por %p102, %p103
      %p105 = scmp.ne.s32.totalorder %s96, %s97
      %p106 = scmp.eq.s32.totalorder %s23, 0
      %p107 = por %p105, %p106
      %p108 = scmp.ne.s32.totalorder %s96, %s97
      %p109 = scmp.eq.s32.totalorder %s24, 1
      %p110 = por %p108, %p109
      %p112 = scmp.ne.s32.totalorder %s97, %s111
      %p113 = scmp.eq.s32.totalorder %s24, 0
      %p114 = por %p112, %p113
      %s116 = sadd.s32 %s115, 1
      %p119 = scmp.eq.s32.totalorder %s18, 1
      %p120 = scmp.ne.s32.totalorder %s115, %s117
      %p121 = scmp.eq.s32.totalorder %s18, 0
      %p122 = por %p120, %p121
      %p123 = scmp.ne.s32.totalorder %s115, %s117
      %p124 = scmp.eq.s32.totalorder %s23, 1
      %p125 = por %p123, %p124
      %p126 = scmp.ne.s32.totalorder %s117, %s118
      %p127 = scmp.eq.s32.totalorder %s23, 0
      %p128 = por %p126, %p127
      %p129 = scmp.ne.s32.totalorder %s117, %s118
      %p130 = scmp.eq.s32.totalorder %s24, 1
      %p131 = por %p129, %p130
      %p133 = scmp.ne.s32.totalorder %s118, %s132
      %p134 = scmp.eq.s32.totalorder %s24, 0
      %p135 = por %p133, %p134
      %s137 = sadd.s32 %s136, 1
      %p140 = scmp.eq.s32.totalorder %s18, 1
      %p141 = scmp.ne.s32.totalorder %s136, %s138
      %p142 = scmp.eq.s32.totalorder %s18, 0
      %p143 = por %p141, %p142
      %p144 = scmp.ne.s32.totalorder %s136, %s138
      %p145 = scmp.eq.s32.totalorder %s23, 1
      %p146 = por %p144, %p145
      %p147 = scmp.ne.s32.totalorder %s138, %s139
      %p148 = scmp.eq.s32.totalorder %s23, 0
      %p149 = por %p147, %p148
      %p150 = scmp.ne.s32.totalorder %s138, %s139
      %p151 = scmp.eq.s32.totalorder %s24, 1
      %p152 = por %p150, %p151
      %p154 = scmp.ne.s32.totalorder %s139, %s153
      %p155 = scmp.eq.s32.totalorder %s24, 0
      %p156 = por %p154, %p155
      %s158 = sadd.s32 %s157, 1
      %p161 = scmp.eq.s32.totalorder %s18, 1
      %p162 = scmp.ne.s32.totalorder %s157, %s159
      %p163 = scmp.eq.s32.totalorder %s18, 0
      %p164 = por %p162, %p163
      %p165 = scmp.ne.s32.totalorder %s157, %s159
      %p166 = scmp.eq.s32.totalorder %s23, 1
      %p167 = por %p165, %p166
      %p168 = scmp.ne.s32.totalorder %s159, %s160
      %p169 = scmp.eq.s32.totalorder %s23, 0
      %p170 = por %p168, %p169
      %p171 = scmp.ne.s32.totalorder %s159, %s160
      %p172 = scmp.eq.s32.totalorder %s24, 1
      %p173 = por %p171, %p172
      %p175 = scmp.ne.s32.totalorder %s160, %s174
      %p176 = scmp.eq.s32.totalorder %s24, 0
      %p177 = por %p175, %p176
      %s179 = sadd.s32 %s178, 1
      %p182 = scmp.eq.s32.totalorder %s18, 1
      %p183 = scmp.ne.s32.totalorder %s178, %s180
      %p184 = scmp.eq.s32.totalorder %s18, 0
      %p185 = por %p183, %p184
      %p186 = scmp.ne.s32.totalorder %s178, %s180
      %p187 = scmp.eq.s32.totalorder %s23, 1
      %p188 = por %p186, %p187
      %p189 = scmp.ne.s32.totalorder %s180, %s181
      %p190 = scmp.eq.s32.totalorder %s23, 0
      %p191 = por %p189, %p190
      %p192 = scmp.ne.s32.totalorder %s180, %s181
      %p193 = scmp.eq.s32.totalorder %s24, 1
      %p194 = por %p192, %p193
      %p196 = scmp.ne.s32.totalorder %s181, %s195
      %p197 = scmp.eq.s32.totalorder %s24, 0
      %p198 = por %p196, %p197
      %s200 = sadd.s32 %s199, 1
      %p203 = scmp.eq.s32.totalorder %s18, 1
      %p204 = scmp.ne.s32.totalorder %s199, %s201
      %p205 = scmp.eq.s32.totalorder %s18, 0
      %p206 = por %p204, %p205
      %p207 = scmp.ne.s32.totalorder %s199, %s201
      %p208 = scmp.eq.s32.totalorder %s23, 1
      %p209 = por %p207, %p208
      %p210 = scmp.ne.s32.totalorder %s201, %s202
      %p211 = scmp.eq.s32.totalorder %s23, 0
      %p212 = por %p210, %p211
      %p213 = scmp.ne.s32.totalorder %s201, %s202
      %p214 = scmp.eq.s32.totalorder %s24, 1
      %p215 = por %p213, %p214
      %p217 = scmp.ne.s32.totalorder %s202, %s216
      %p218 = scmp.eq.s32.totalorder %s24, 0
      %p219 = por %p217, %p218
      %s220 = ssub.s32 %s18, %s25
      %p221 = scmp.eq.s32.totalorder %s220, 0
      %s223 = sadd.s32 %s222, 1
      %s224 = scalar_select %p221, %s222, %s223
      %p227 = pneg %p221
      %p228 = scmp.eq.s32.totalorder %s18, 1
      %p229 = por %p227, %p228
      %p230 = scmp.ne.s32.totalorder %s222, %s225
      %p231 = scmp.eq.s32.totalorder %s18, 0
      %p232 = por %p230, %p231
      %p233 = scmp.ne.s32.totalorder %s222, %s225
      %p234 = scmp.eq.s32.totalorder %s23, 1
      %p235 = por %p233, %p234
      %p236 = scmp.ne.s32.totalorder %s225, %s226
      %p237 = scmp.eq.s32.totalorder %s23, 0
      %p238 = por %p236, %p237
      %p239 = scmp.ne.s32.totalorder %s225, %s226
      %p240 = scmp.eq.s32.totalorder %s24, 1
      %p241 = por %p239, %p240
      %p243 = scmp.ne.s32.totalorder %s226, %s242
      %p244 = scmp.eq.s32.totalorder %s24, 0
      %p245 = por %p243, %p244
      %p246 = scmp.le.s32.totalorder 1, %s18
      %p247 = scmp.lt.s32.totalorder %s18, 3
      %p248 = pnand %p246, %p247
      %p249 = pneg %p248
      // Predicated region
      $region9: #{tpu_custom_call.1} parent=5 // pred_check
        _
      $region10: #{tpu_custom_call.1} parent=5 // pred_check_branch
        %251 = sbr.rel (%p248) target = $region12
      $region11: #{tpu_custom_call.1} parent=5 // pred_region
        %s252 = ssub.s32 %s18, 1
        // Predicated region
        $region13: #{tpu_custom_call.1} parent=11 // pred_check
          %p253 = pneg %p65
        $region14: #{tpu_custom_call.1} parent=11 // pred_check_branch
          %255 = sbr.rel (%p253) target = $region16
        $region15: #{tpu_custom_call.1} parent=11 // pred_region
          _
        $region16: #{tpu_custom_call.1} parent=11 // pred_fallthru
          _
        // Predicated region
        $region17: #{tpu_custom_call.1} parent=11 // pred_check
          %p256 = pneg %p86
        $region18: #{tpu_custom_call.1} parent=11 // pred_check_branch
          %258 = sbr.rel (%p256) target = $region20
        $region19: #{tpu_custom_call.1} parent=11 // pred_region
          _
        $region20: #{tpu_custom_call.1} parent=11 // pred_fallthru
          _
        // Predicated region
        $region21: #{tpu_custom_call.1} parent=11 // pred_check
          %p259 = pneg %p107
        $region22: #{tpu_custom_call.1} parent=11 // pred_check_branch
          %261 = sbr.rel (%p259) target = $region24
        $region23: #{tpu_custom_call.1} parent=11 // pred_region
          _
        $region24: #{tpu_custom_call.1} parent=11 // pred_fallthru
          _
        // Predicated region
        $region25: #{tpu_custom_call.1} parent=11 // pred_check
          %p262 = pneg %p128
        $region26: #{tpu_custom_call.1} parent=11 // pred_check_branch
          %264 = sbr.rel (%p262) target = $region28
        $region27: #{tpu_custom_call.1} parent=11 // pred_region
          _
        $region28: #{tpu_custom_call.1} parent=11 // pred_fallthru
          _
        // Predicated region
        $region29: #{tpu_custom_call.1} parent=11 // pred_check
          %p265 = pneg %p149
        $region30: #{tpu_custom_call.1} parent=11 // pred_check_branch
          %267 = sbr.rel (%p265) target = $region32
        $region31: #{tpu_custom_call.1} parent=11 // pred_region
          _
        $region32: #{tpu_custom_call.1} parent=11 // pred_fallthru
          _
        // Predicated region
        $region33: #{tpu_custom_call.1} parent=11 // pred_check
          %p268 = pneg %p170
        $region34: #{tpu_custom_call.1} parent=11 // pred_check_branch
          %270 = sbr.rel (%p268) target = $region36
        $region35: #{tpu_custom_call.1} parent=11 // pred_region
          _
        $region36: #{tpu_custom_call.1} parent=11 // pred_fallthru
          _
        // Predicated region
        $region37: #{tpu_custom_call.1} parent=11 // pred_check
          %p271 = pneg %p191
        $region38: #{tpu_custom_call.1} parent=11 // pred_check_branch
          %273 = sbr.rel (%p271) target = $region40
        $region39: #{tpu_custom_call.1} parent=11 // pred_region
          _
        $region40: #{tpu_custom_call.1} parent=11 // pred_fallthru
          _
        // Predicated region
        $region41: #{tpu_custom_call.1} parent=11 // pred_check
          %p274 = pneg %p212
        $region42: #{tpu_custom_call.1} parent=11 // pred_check_branch
          %276 = sbr.rel (%p274) target = $region44
        $region43: #{tpu_custom_call.1} parent=11 // pred_region
          _
        $region44: #{tpu_custom_call.1} parent=11 // pred_fallthru
          _
      $region12: #{tpu_custom_call.1} parent=5 // pred_fallthru
        _
      %p277 = scmp.lt.s32.totalorder %s18, 2
      // Predicated region
      $region45: #{tpu_custom_call.1} parent=5 // pred_check
        %p278 = pneg %p277
      $region46: #{tpu_custom_call.1} parent=5 // pred_check_branch
        %280 = sbr.rel (%p278) target = $region48
      $region47: #{tpu_custom_call.1} parent=5 // pred_region
        // Predicated region
        $region49: #{tpu_custom_call.1} parent=47 // pred_check
          %p281 = pneg %p38
        $region50: #{tpu_custom_call.1} parent=47 // pred_check_branch
          %283 = sbr.rel (%p281) target = $region52
        $region51: #{tpu_custom_call.1} parent=47 // pred_region
          %s284 = smul.u32 7, %s18
          %p285 = scmp.lt.s32.totalorder %s284, 13
          %s286 = scalar_select %p285, %s284, 13
          %s287 = smul.addr %s286, 8
          %s288 = scalar_lea.vmem %s0, %s287
          %s289 = smul.u32 7, %s18
        $region52: #{tpu_custom_call.1} parent=47 // pred_fallthru
          _
      $region48: #{tpu_custom_call.1} parent=5 // pred_fallthru
        _
      %p290 = scmp.le.s32.totalorder 1, %s18
      %p291 = scmp.lt.s32.totalorder %s18, 3
      %p292 = pnand %p290, %p291
      %p293 = pneg %p292
      // Predicated region
      $region53: #{tpu_custom_call.1} parent=5 // pred_check
        _
      $region54: #{tpu_custom_call.1} parent=5 // pred_check_branch
        %295 = sbr.rel (%p292) target = $region56
      $region55: #{tpu_custom_call.1} parent=5 // pred_region
        %s296 = ssub.s32 %s18, 1
        %s297 = smul.u32 7, %s23
        %p298 = scmp.lt.s32.totalorder %s297, 13
        %s299 = scalar_select %p298, %s297, 13
        %s300 = smul.addr %s299, 8
        %s301 = scalar_lea.vmem %s0, %s300
        %p302 = pneg %p44
        %p303 = pneg %p41
        %p304 = pneg %p65
        %p305 = pneg %p62
        %p306 = pneg %p86
        %p307 = pneg %p83
        %p308 = pneg %p107
        %p309 = pneg %p104
        %p310 = pneg %p128
        %p311 = pneg %p125
        %p312 = pneg %p149
        %p313 = pneg %p146
        %p314 = pneg %p170
        %p315 = pneg %p167
        %p316 = pneg %p191
        %p317 = pneg %p188
        %p318 = pneg %p212
        %p319 = pneg %p209
        %p320 = pneg %p238
        %p321 = pneg %p235
        %s322 = sand.u32 %s225, 1
        %s323 = scalar_lea.sflag [#allocation3], %s322
        %s324 = sand.u32 %s225, 1
        %s325 = smul.addr %s324, 560
        %s326 = scalar_lea.vmem [#allocation2], %s325
        %s327 = smul.u32 7, %s23
        %p328 = scmp.lt.s32.totalorder %s327, 13
        %s329 = scalar_select %p328, %s327, 13
        %s330 = smul.addr %s329, 8
        %s331 = scalar_lea.vmem %s0, %s330
        %s332 = smul.u32 7, %s23
        %s333 = smul.u32 7, %s23
        %v334 = vld [vmem:[%s331] sm:$0xff]
        %v335 = vld [vmem:[%s331 + $0x8] sm:$0xff]
        %v336 = vld [vmem:[%s331 + $0x10] sm:$0xff]
        %v337 = vld [vmem:[%s331 + $0x18] sm:$0xff]
        %v338 = vld [vmem:[%s331 + $0x20] sm:$0xff]
        %v339 = vld [vmem:[%s331 + $0x28] sm:$0xff]
        %v340 = vld [vmem:[%s331 + $0x30] sm:$0xff]
        %v341 = vld [vmem:[%s1] sm:$0xff]
        %v342 = vld [vmem:[%s1 + $0x8] sm:$0xff]
        %v343 = vld [vmem:[%s2] sm:$0x1]
        %v345 = vperm.slane %v343, 0
        %vm347 = vcmask 130048
        %v349 = vsel %vm347, %v334, 0
        %v352 = vsel %vm347, %v335, 0
        %v355 = vsel %vm347, %v336, 0
        %v358 = vsel %vm347, %v337, 0
        %v361 = vsel %vm347, %v338, 0
        %v364 = vsel %vm347, %v339, 0
        %v367 = vsel %vm347, %v340, 0
        %369 = vmatpush.msra.mxu0 0.0
        %370 = vmatpush.msra.mxu0 0.0
        %371 = vmatpush.msra.mxu0 0.0
        %372 = vmatpush.msra.mxu0 0.0
        %373 = vmatpush.msra.mxu0 0.0
        %374 = vmatpush.msra.mxu0 0.0
        %375 = vmatpush.msra.mxu0 0.0
        %376 = vmatpush.msra.mxu0 0.0
        %377 = vmatpush.msra.mxu0 0.0
        %378 = vmatpush.msra.mxu0 0.0
        %379 = vmatpush.msra.mxu0 0.0
        %380 = vmatpush.msra.mxu0 0.0
        %381 = vmatpush.msra.mxu0 0.0
        %382 = vmatpush.msra.mxu0 0.0
        %383 = vmatpush.msra.mxu0 %v342
        %384 = vmatpush.msra.mxu0 %v341
        %385 = vmatmul.f32.gmra.mxu0 %v349
        %v386 = vpop.f32.mrf.mxu0
        %v387 = vadd.f32 %v345, %v386
        %388 = vmatmul.f32.gmra.mxu0 %v352
        %v389 = vpop.f32.mrf.mxu0
        %v390 = vadd.f32 %v345, %v389
        %391 = vmatmul.f32.gmra.mxu0 %v355
        %v392 = vpop.f32.mrf.mxu0
        %v393 = vadd.f32 %v345, %v392
        %394 = vmatmul.f32.gmra.mxu0 %v358
        %v395 = vpop.f32.mrf.mxu0
        %v396 = vadd.f32 %v345, %v395
        %397 = vmatmul.f32.gmra.mxu0 %v361
        %v398 = vpop.f32.mrf.mxu0
        %v399 = vadd.f32 %v345, %v398
        %400 = vmatmul.f32.gmra.mxu0 %v364
        %v401 = vpop.f32.mrf.mxu0
        %v402 = vadd.f32 %v345, %v401
        %403 = vmatmul.f32.gmra.mxu0 %v367
        %v404 = vpop.f32.mrf.mxu0
        %v405 = vadd.f32 %v345, %v404
        %406 = vdwg.mxu0
        %v407 = vmax.f32 %v387, 0.0
        %v408 = vmax.f32 %v390, 0.0
        %v409 = vmax.f32 %v393, 0.0
        %v410 = vmax.f32 %v396, 0.0
        %v411 = vmax.f32 %v399, 0.0
        %v412 = vmax.f32 %v402, 0.0
        %v413 = vmax.f32 %v405, 0.0
        %v414 = vld [vmem:[%s3] sm:$0xff]
        %v415 = vld [vmem:[%s3 + $0x8] sm:$0xff]
        %v416 = vld [vmem:[%s3 + $0x10] sm:$0xff]
        %v417 = vld [vmem:[%s3 + $0x18] sm:$0xff]
        %v418 = vld [vmem:[%s3 + $0x20] sm:$0xff]
        %v419 = vld [vmem:[%s3 + $0x28] sm:$0xff]
        %v420 = vld [vmem:[%s3 + $0x30] sm:$0xff]
        %v421 = vld [vmem:[%s3 + $0x38] sm:$0xff]
        %v422 = vld [vmem:[%s3 + $0x40] sm:$0xff]
        %v423 = vld [vmem:[%s3 + $0x48] sm:$0xff]
        %v424 = vld [vmem:[%s3 + $0x50] sm:$0xff]
        %v425 = vld [vmem:[%s3 + $0x58] sm:$0xff]
        %v426 = vld [vmem:[%s3 + $0x60] sm:$0xff]
        %v427 = vld [vmem:[%s3 + $0x68] sm:$0xff]
        %v428 = vld [vmem:[%s3 + $0x70] sm:$0xff]
        %v429 = vld [vmem:[%s3 + $0x78] sm:$0xff]
        %v430 = vld [vmem:[%s3 + $0x80] sm:$0xff]
        %v431 = vld [vmem:[%s3 + $0x88] sm:$0xff]
        %v432 = vld [vmem:[%s3 + $0x90] sm:$0xff]
        %v433 = vld [vmem:[%s3 + $0x98] sm:$0xff]
        %v434 = vld [vmem:[%s3 + $0xa0] sm:$0xff]
        %v435 = vld [vmem:[%s3 + $0xa8] sm:$0xff]
        %v436 = vld [vmem:[%s3 + $0xb0] sm:$0xff]
        %v437 = vld [vmem:[%s3 + $0xb8] sm:$0xff]
        %v438 = vld [vmem:[%s3 + $0xc0] sm:$0xff]
        %v439 = vld [vmem:[%s3 + $0xc8] sm:$0xff]
        %v440 = vld [vmem:[%s3 + $0xd0] sm:$0xff]
        %v441 = vld [vmem:[%s3 + $0xd8] sm:$0xff]
        %v442 = vld [vmem:[%s3 + $0xe0] sm:$0xff]
        %v443 = vld [vmem:[%s3 + $0xe8] sm:$0xff]
        %v444 = vld [vmem:[%s3 + $0xf0] sm:$0xff]
        %v445 = vld [vmem:[%s3 + $0xf8] sm:$0xff]
        %v446 = vld [vmem:[%s4] sm:$0x3]
        %v448 = vperm.slane %v446, 0
        %v449 = vperm.slane %v446, 1
        %452 = vmatpush.msra.mxu0 %v444
        %453 = vmatpush.msra.mxu0 %v442
        %454 = vmatpush.msra.mxu0 %v440
        %455 = vmatpush.msra.mxu0 %v438
        %456 = vmatpush.msra.mxu0 %v436
        %457 = vmatpush.msra.mxu0 %v434
        %458 = vmatpush.msra.mxu0 %v432
        %459 = vmatpush.msra.mxu0 %v430
        %460 = vmatpush.msra.mxu0 %v428
        %461 = vmatpush.msra.mxu0 %v426
        %462 = vmatpush.msra.mxu0 %v424
        %463 = vmatpush.msra.mxu0 %v422
        %464 = vmatpush.msra.mxu0 %v420
        %465 = vmatpush.msra.mxu0 %v418
        %466 = vmatpush.msra.mxu0 %v416
        %467 = vmatpush.msra.mxu0 %v414
        %468 = vmatmul.f32.gmra.mxu0 %v407
        %v469 = vpop.f32.mrf.mxu0
        %v470 = vadd.f32 %v448, %v469
        %471 = vmatmul.f32.gmra.mxu0 %v408
        %v472 = vpop.f32.mrf.mxu0
        %v473 = vadd.f32 %v448, %v472
        %474 = vmatmul.f32.gmra.mxu0 %v409
        %v475 = vpop.f32.mrf.mxu0
        %v476 = vadd.f32 %v448, %v475
        %477 = vmatmul.f32.gmra.mxu0 %v410
        %v478 = vpop.f32.mrf.mxu0
        %v479 = vadd.f32 %v448, %v478
        %480 = vmatmul.f32.gmra.mxu0 %v411
        %v481 = vpop.f32.mrf.mxu0
        %v482 = vadd.f32 %v448, %v481
        %483 = vmatmul.f32.gmra.mxu0 %v412
        %v484 = vpop.f32.mrf.mxu0
        %v485 = vadd.f32 %v448, %v484
        %486 = vmatmul.f32.gmra.mxu0 %v413
        %v487 = vpop.f32.mrf.mxu0
        %v488 = vadd.f32 %v448, %v487
        %489 = vdwg.mxu0
        %490 = vmatpush.msra.mxu0 %v445
        %491 = vmatpush.msra.mxu0 %v443
        %492 = vmatpush.msra.mxu0 %v441
        %493 = vmatpush.msra.mxu0 %v439
        %494 = vmatpush.msra.mxu0 %v437
        %495 = vmatpush.msra.mxu0 %v435
        %496 = vmatpush.msra.mxu0 %v433
        %497 = vmatpush.msra.mxu0 %v431
        %498 = vmatpush.msra.mxu0 %v429
        %499 = vmatpush.msra.mxu0 %v427
        %500 = vmatpush.msra.mxu0 %v425
        %501 = vmatpush.msra.mxu0 %v423
        %502 = vmatpush.msra.mxu0 %v421
        %503 = vmatpush.msra.mxu0 %v419
        %504 = vmatpush.msra.mxu0 %v417
        %505 = vmatpush.msra.mxu0 %v415
        %506 = vmatmul.f32.gmra.mxu0 %v407
        %v507 = vpop.f32.mrf.mxu0
        %v508 = vadd.f32 %v449, %v507
        %509 = vmatmul.f32.gmra.mxu0 %v408
        %v510 = vpop.f32.mrf.mxu0
        %v511 = vadd.f32 %v449, %v510
        %512 = vmatmul.f32.gmra.mxu0 %v409
        %v513 = vpop.f32.mrf.mxu0
        %v514 = vadd.f32 %v449, %v513
        %515 = vmatmul.f32.gmra.mxu0 %v410
        %v516 = vpop.f32.mrf.mxu0
        %v517 = vadd.f32 %v449, %v516
        %518 = vmatmul.f32.gmra.mxu0 %v411
        %v519 = vpop.f32.mrf.mxu0
        %v520 = vadd.f32 %v449, %v519
        %521 = vmatmul.f32.gmra.mxu0 %v412
        %v522 = vpop.f32.mrf.mxu0
        %v523 = vadd.f32 %v449, %v522
        %524 = vmatmul.f32.gmra.mxu0 %v413
        %v525 = vpop.f32.mrf.mxu0
        %v526 = vadd.f32 %v449, %v525
        %527 = vdwg.mxu0
        %v528 = vmul.f32 %v470, 0.5
        %v529 = vmul.f32 %v508, 0.5
        %v530 = vmul.f32 %v473, 0.5
        %v531 = vmul.f32 %v511, 0.5
        %v532 = vmul.f32 %v476, 0.5
        %v533 = vmul.f32 %v514, 0.5
        %v534 = vmul.f32 %v479, 0.5
        %v535 = vmul.f32 %v517, 0.5
        %v536 = vmul.f32 %v482, 0.5
        %v537 = vmul.f32 %v520, 0.5
        %v538 = vmul.f32 %v485, 0.5
        %v539 = vmul.f32 %v523, 0.5
        %v540 = vmul.f32 %v488, 0.5
        %v541 = vmul.f32 %v526, 0.5
        %v542 = vtanh.pop %v528
        %v543 = vtanh.pop %v529
        %v544 = vtanh.pop %v530
        %v545 = vtanh.pop %v531
        %v546 = vtanh.pop %v532
        %v547 = vtanh.pop %v533
        %v548 = vtanh.pop %v534
        %v549 = vtanh.pop %v535
        %v550 = vtanh.pop %v536
        %v551 = vtanh.pop %v537
        %v552 = vtanh.pop %v538
        %v553 = vtanh.pop %v539
        %v554 = vtanh.pop %v540
        %v555 = vtanh.pop %v541
        %v556 = vadd.f32 %v542, 1.0
        %v557 = vadd.f32 %v543, 1.0
        %v558 = vadd.f32 %v544, 1.0
        %v559 = vadd.f32 %v545, 1.0
        %v560 = vadd.f32 %v546, 1.0
        %v561 = vadd.f32 %v547, 1.0
        %v562 = vadd.f32 %v548, 1.0
        %v563 = vadd.f32 %v549, 1.0
        %v564 = vadd.f32 %v550, 1.0
        %v565 = vadd.f32 %v551, 1.0
        %v566 = vadd.f32 %v552, 1.0
        %v567 = vadd.f32 %v553, 1.0
        %v568 = vadd.f32 %v554, 1.0
        %v569 = vadd.f32 %v555, 1.0
        %v570 = vmul.f32 %v556, 0.5
        %v571 = vmul.f32 %v557, 0.5
        %v572 = vmul.f32 %v558, 0.5
        %v573 = vmul.f32 %v559, 0.5
        %v574 = vmul.f32 %v560, 0.5
        %v575 = vmul.f32 %v561, 0.5
        %v576 = vmul.f32 %v562, 0.5
        %v577 = vmul.f32 %v563, 0.5
        %v578 = vmul.f32 %v564, 0.5
        %v579 = vmul.f32 %v565, 0.5
        %v580 = vmul.f32 %v566, 0.5
        %v581 = vmul.f32 %v567, 0.5
        %v582 = vmul.f32 %v568, 0.5
        %v583 = vmul.f32 %v569, 0.5
        %v584 = vld [vmem:[%s5] sm:$0xff]
        %v585 = vld [vmem:[%s5 + $0x8] sm:$0xff]
        %v586 = vld [vmem:[%s5 + $0x10] sm:$0xff]
        %v587 = vld [vmem:[%s5 + $0x18] sm:$0xff]
        %v588 = vld [vmem:[%s5 + $0x20] sm:$0xff]
        %v589 = vld [vmem:[%s5 + $0x28] sm:$0xff]
        %v590 = vld [vmem:[%s5 + $0x30] sm:$0xff]
        %v591 = vld [vmem:[%s5 + $0x38] sm:$0xff]
        %v592 = vld [vmem:[%s5 + $0x40] sm:$0xff]
        %v593 = vld [vmem:[%s5 + $0x48] sm:$0xff]
        %v594 = vld [vmem:[%s5 + $0x50] sm:$0xff]
        %v595 = vld [vmem:[%s5 + $0x58] sm:$0xff]
        %v596 = vld [vmem:[%s5 + $0x60] sm:$0xff]
        %v597 = vld [vmem:[%s5 + $0x68] sm:$0xff]
        %v598 = vld [vmem:[%s5 + $0x70] sm:$0xff]
        %v599 = vld [vmem:[%s5 + $0x78] sm:$0xff]
        %v600 = vld [vmem:[%s5 + $0x80] sm:$0xff]
        %v601 = vld [vmem:[%s5 + $0x88] sm:$0xff]
        %v602 = vld [vmem:[%s5 + $0x90] sm:$0xff]
        %v603 = vld [vmem:[%s5 + $0x98] sm:$0xff]
        %v604 = vld [vmem:[%s5 + $0xa0] sm:$0xff]
        %v605 = vld [vmem:[%s5 + $0xa8] sm:$0xff]
        %v606 = vld [vmem:[%s5 + $0xb0] sm:$0xff]
        %v607 = vld [vmem:[%s5 + $0xb8] sm:$0xff]
        %v608 = vld [vmem:[%s5 + $0xc0] sm:$0xff]
        %v609 = vld [vmem:[%s5 + $0xc8] sm:$0xff]
        %v610 = vld [vmem:[%s5 + $0xd0] sm:$0xff]
        %v611 = vld [vmem:[%s5 + $0xd8] sm:$0xff]
        %v612 = vld [vmem:[%s5 + $0xe0] sm:$0xff]
        %v613 = vld [vmem:[%s5 + $0xe8] sm:$0xff]
        %v614 = vld [vmem:[%s5 + $0xf0] sm:$0xff]
        %v615 = vld [vmem:[%s5 + $0xf8] sm:$0xff]
        %v616 = vld [vmem:[%s5 + $0x100] sm:$0xff]
        %v617 = vld [vmem:[%s5 + $0x108] sm:$0xff]
        %v618 = vld [vmem:[%s5 + $0x110] sm:$0xff]
        %v619 = vld [vmem:[%s5 + $0x118] sm:$0xff]
        %v620 = vld [vmem:[%s5 + $0x120] sm:$0xff]
        %v621 = vld [vmem:[%s5 + $0x128] sm:$0xff]
        %v622 = vld [vmem:[%s5 + $0x130] sm:$0xff]
        %v623 = vld [vmem:[%s5 + $0x138] sm:$0xff]
        %v624 = vld [vmem:[%s5 + $0x140] sm:$0xff]
        %v625 = vld [vmem:[%s5 + $0x148] sm:$0xff]
        %v626 = vld [vmem:[%s5 + $0x150] sm:$0xff]
        %v627 = vld [vmem:[%s5 + $0x158] sm:$0xff]
        %v628 = vld [vmem:[%s5 + $0x160] sm:$0xff]
        %v629 = vld [vmem:[%s5 + $0x168] sm:$0xff]
        %v630 = vld [vmem:[%s5 + $0x170] sm:$0xff]
        %v631 = vld [vmem:[%s5 + $0x178] sm:$0xff]
        %v632 = vld [vmem:[%s5 + $0x180] sm:$0xff]
        %v633 = vld [vmem:[%s5 + $0x188] sm:$0xff]
        %v634 = vld [vmem:[%s5 + $0x190] sm:$0xff]
        %v635 = vld [vmem:[%s5 + $0x198] sm:$0xff]
        %v636 = vld [vmem:[%s5 + $0x1a0] sm:$0xff]
        %v637 = vld [vmem:[%s5 + $0x1a8] sm:$0xff]
        %v638 = vld [vmem:[%s5 + $0x1b0] sm:$0xff]
        %v639 = vld [vmem:[%s5 + $0x1b8] sm:$0xff]
        %v640 = vld [vmem:[%s5 + $0x1c0] sm:$0xff]
        %v641 = vld [vmem:[%s5 + $0x1c8] sm:$0xff]
        %v642 = vld [vmem:[%s5 + $0x1d0] sm:$0xff]
        %v643 = vld [vmem:[%s5 + $0x1d8] sm:$0xff]
        %v644 = vld [vmem:[%s5 + $0x1e0] sm:$0xff]
        %v645 = vld [vmem:[%s5 + $0x1e8] sm:$0xff]
        %v646 = vld [vmem:[%s5 + $0x1f0] sm:$0xff]
        %v647 = vld [vmem:[%s5 + $0x1f8] sm:$0xff]
        %v648 = vld [vmem:[%s5 + $0x200] sm:$0xff]
        %v649 = vld [vmem:[%s5 + $0x208] sm:$0xff]
        %v650 = vld [vmem:[%s5 + $0x210] sm:$0xff]
        %v651 = vld [vmem:[%s5 + $0x218] sm:$0xff]
        %v652 = vld [vmem:[%s5 + $0x220] sm:$0xff]
        %v653 = vld [vmem:[%s5 + $0x228] sm:$0xff]
        %v654 = vld [vmem:[%s5 + $0x230] sm:$0xff]
        %v655 = vld [vmem:[%s5 + $0x238] sm:$0xff]
        %v656 = vld [vmem:[%s5 + $0x240] sm:$0xff]
        %v657 = vld [vmem:[%s5 + $0x248] sm:$0xff]
        %v658 = vld [vmem:[%s5 + $0x250] sm:$0xff]
        %v659 = vld [vmem:[%s5 + $0x258] sm:$0xff]
        %v660 = vld [vmem:[%s5 + $0x260] sm:$0xff]
        %v661 = vld [vmem:[%s5 + $0x268] sm:$0xff]
        %v662 = vld [vmem:[%s5 + $0x270] sm:$0xff]
        %v663 = vld [vmem:[%s5 + $0x278] sm:$0xff]
        %v664 = vld [vmem:[%s5 + $0x280] sm:$0xff]
        %v665 = vld [vmem:[%s5 + $0x288] sm:$0xff]
        %v666 = vld [vmem:[%s5 + $0x290] sm:$0xff]
        %v667 = vld [vmem:[%s5 + $0x298] sm:$0xff]
        %v668 = vld [vmem:[%s5 + $0x2a0] sm:$0xff]
        %v669 = vld [vmem:[%s5 + $0x2a8] sm:$0xff]
        %v670 = vld [vmem:[%s5 + $0x2b0] sm:$0xff]
        %v671 = vld [vmem:[%s5 + $0x2b8] sm:$0xff]
        %v672 = vld [vmem:[%s5 + $0x2c0] sm:$0xff]
        %v673 = vld [vmem:[%s5 + $0x2c8] sm:$0xff]
        %v674 = vld [vmem:[%s5 + $0x2d0] sm:$0xff]
        %v675 = vld [vmem:[%s5 + $0x2d8] sm:$0xff]
        %v676 = vld [vmem:[%s5 + $0x2e0] sm:$0xff]
        %v677 = vld [vmem:[%s5 + $0x2e8] sm:$0xff]
        %v678 = vld [vmem:[%s5 + $0x2f0] sm:$0xff]
        %v679 = vld [vmem:[%s5 + $0x2f8] sm:$0xff]
        %v680 = vld [vmem:[%s5 + $0x300] sm:$0xff]
        %v681 = vld [vmem:[%s5 + $0x308] sm:$0xff]
        %v682 = vld [vmem:[%s5 + $0x310] sm:$0xff]
        %v683 = vld [vmem:[%s5 + $0x318] sm:$0xff]
        %v684 = vld [vmem:[%s5 + $0x320] sm:$0xff]
        %v685 = vld [vmem:[%s5 + $0x328] sm:$0xff]
        %v686 = vld [vmem:[%s5 + $0x330] sm:$0xff]
        %v687 = vld [vmem:[%s5 + $0x338] sm:$0xff]
        %v688 = vld [vmem:[%s5 + $0x340] sm:$0xff]
        %v689 = vld [vmem:[%s5 + $0x348] sm:$0xff]
        %v690 = vld [vmem:[%s5 + $0x350] sm:$0xff]
        %v691 = vld [vmem:[%s5 + $0x358] sm:$0xff]
        %v692 = vld [vmem:[%s5 + $0x360] sm:$0xff]
        %v693 = vld [vmem:[%s5 + $0x368] sm:$0xff]
        %v694 = vld [vmem:[%s5 + $0x370] sm:$0xff]
        %v695 = vld [vmem:[%s5 + $0x378] sm:$0xff]
        %v696 = vld [vmem:[%s5 + $0x380] sm:$0xff]
        %v697 = vld [vmem:[%s5 + $0x388] sm:$0xff]
        %v698 = vld [vmem:[%s5 + $0x390] sm:$0xff]
        %v699 = vld [vmem:[%s5 + $0x398] sm:$0xff]
        %v700 = vld [vmem:[%s5 + $0x3a0] sm:$0xff]
        %v701 = vld [vmem:[%s5 + $0x3a8] sm:$0xff]
        %v702 = vld [vmem:[%s5 + $0x3b0] sm:$0xff]
        %v703 = vld [vmem:[%s5 + $0x3b8] sm:$0xff]
        %v704 = vld [vmem:[%s5 + $0x3c0] sm:$0xff]
        %v705 = vld [vmem:[%s5 + $0x3c8] sm:$0xff]
        %v706 = vld [vmem:[%s5 + $0x3d0] sm:$0xff]
        %v707 = vld [vmem:[%s5 + $0x3d8] sm:$0xff]
        %v708 = vld [vmem:[%s5 + $0x3e0] sm:$0xff]
        %v709 = vld [vmem:[%s5 + $0x3e8] sm:$0xff]
        %v710 = vld [vmem:[%s5 + $0x3f0] sm:$0xff]
        %v711 = vld [vmem:[%s5 + $0x3f8] sm:$0xff]
        %v712 = vld [vmem:[%s6] sm:$0xf]
        %v714 = vperm.slane %v712, 0
        %v715 = vperm.slane %v712, 1
        %v716 = vperm.slane %v712, 2
        %v717 = vperm.slane %v712, 3
        %722 = vmatpush.msra.mxu0 %v644
        %723 = vmatpush.msra.mxu0 %v640
        %724 = vmatpush.msra.mxu0 %v636
        %725 = vmatpush.msra.mxu0 %v632
        %726 = vmatpush.msra.mxu0 %v628
        %727 = vmatpush.msra.mxu0 %v624
        %728 = vmatpush.msra.mxu0 %v620
        %729 = vmatpush.msra.mxu0 %v616
        %730 = vmatpush.msra.mxu0 %v612
        %731 = vmatpush.msra.mxu0 %v608
        %732 = vmatpush.msra.mxu0 %v604
        %733 = vmatpush.msra.mxu0 %v600
        %734 = vmatpush.msra.mxu0 %v596
        %735 = vmatpush.msra.mxu0 %v592
        %736 = vmatpush.msra.mxu0 %v588
        %737 = vmatpush.msra.mxu0 %v584
        %738 = vmatmul.f32.gmra.mxu0 %v570
        %v739 = vpop.f32.mrf.mxu0
        %v740 = vadd.f32 %v714, %v739
        %741 = vmatmul.f32.gmra.mxu0 %v572
        %v742 = vpop.f32.mrf.mxu0
        %v743 = vadd.f32 %v714, %v742
        %744 = vmatmul.f32.gmra.mxu0 %v574
        %v745 = vpop.f32.mrf.mxu0
        %v746 = vadd.f32 %v714, %v745
        %747 = vmatmul.f32.gmra.mxu0 %v576
        %v748 = vpop.f32.mrf.mxu0
        %v749 = vadd.f32 %v714, %v748
        %750 = vmatmul.f32.gmra.mxu0 %v578
        %v751 = vpop.f32.mrf.mxu0
        %v752 = vadd.f32 %v714, %v751
        %753 = vmatmul.f32.gmra.mxu0 %v580
        %v754 = vpop.f32.mrf.mxu0
        %v755 = vadd.f32 %v714, %v754
        %756 = vmatmul.f32.gmra.mxu0 %v582
        %v757 = vpop.f32.mrf.mxu0
        %v758 = vadd.f32 %v714, %v757
        %759 = vdwg.mxu0
        %760 = vmatpush.msra.mxu0 %v708
        %761 = vmatpush.msra.mxu0 %v704
        %762 = vmatpush.msra.mxu0 %v700
        %763 = vmatpush.msra.mxu0 %v696
        %764 = vmatpush.msra.mxu0 %v692
        %765 = vmatpush.msra.mxu0 %v688
        %766 = vmatpush.msra.mxu0 %v684
        %767 = vmatpush.msra.mxu0 %v680
        %768 = vmatpush.msra.mxu0 %v676
        %769 = vmatpush.msra.mxu0 %v672
        %770 = vmatpush.msra.mxu0 %v668
        %771 = vmatpush.msra.mxu0 %v664
        %772 = vmatpush.msra.mxu0 %v660
        %773 = vmatpush.msra.mxu0 %v656
        %774 = vmatpush.msra.mxu0 %v652
        %775 = vmatpush.msra.mxu0 %v648
        %776 = vmatmul.f32.gmra.mxu0 %v571
        %v777 = vpop.f32.mrf.mxu0
        %v778 = vadd.f32 %v740, %v777
        %779 = vmatmul.f32.gmra.mxu0 %v573
        %v780 = vpop.f32.mrf.mxu0
        %v781 = vadd.f32 %v743, %v780
        %782 = vmatmul.f32.gmra.mxu0 %v575
        %v783 = vpop.f32.mrf.mxu0
        %v784 = vadd.f32 %v746, %v783
        %785 = vmatmul.f32.gmra.mxu0 %v577
        %v786 = vpop.f32.mrf.mxu0
        %v787 = vadd.f32 %v749, %v786
        %788 = vmatmul.f32.gmra.mxu0 %v579
        %v789 = vpop.f32.mrf.mxu0
        %v790 = vadd.f32 %v752, %v789
        %791 = vmatmul.f32.gmra.mxu0 %v581
        %v792 = vpop.f32.mrf.mxu0
        %v793 = vadd.f32 %v755, %v792
        %794 = vmatmul.f32.gmra.mxu0 %v583
        %v795 = vpop.f32.mrf.mxu0
        %v796 = vadd.f32 %v758, %v795
        %797 = vdwg.mxu0
        %798 = vmatpush.msra.mxu0 %v645
        %799 = vmatpush.msra.mxu0 %v641
        %800 = vmatpush.msra.mxu0 %v637
        %801 = vmatpush.msra.mxu0 %v633
        %802 = vmatpush.msra.mxu0 %v629
        %803 = vmatpush.msra.mxu0 %v625
        %804 = vmatpush.msra.mxu0 %v621
        %805 = vmatpush.msra.mxu0 %v617
        %806 = vmatpush.msra.mxu0 %v613
        %807 = vmatpush.msra.mxu0 %v609
        %808 = vmatpush.msra.mxu0 %v605
        %809 = vmatpush.msra.mxu0 %v601
        %810 = vmatpush.msra.mxu0 %v597
        %811 = vmatpush.msra.mxu0 %v593
        %812 = vmatpush.msra.mxu0 %v589
        %813 = vmatpush.msra.mxu0 %v585
        %814 = vmatmul.f32.gmra.mxu0 %v570
        %v815 = vpop.f32.mrf.mxu0
        %v816 = vadd.f32 %v715, %v815
        %817 = vmatmul.f32.gmra.mxu0 %v572
        %v818 = vpop.f32.mrf.mxu0
        %v819 = vadd.f32 %v715, %v818
        %820 = vmatmul.f32.gmra.mxu0 %v574
        %v821 = vpop.f32.mrf.mxu0
        %v822 = vadd.f32 %v715, %v821
        %823 = vmatmul.f32.gmra.mxu0 %v576
        %v824 = vpop.f32.mrf.mxu0
        %v825 = vadd.f32 %v715, %v824
        %826 = vmatmul.f32.gmra.mxu0 %v578
        %v827 = vpop.f32.mrf.mxu0
        %v828 = vadd.f32 %v715, %v827
        %829 = vmatmul.f32.gmra.mxu0 %v580
        %v830 = vpop.f32.mrf.mxu0
        %v831 = vadd.f32 %v715, %v830
        %832 = vmatmul.f32.gmra.mxu0 %v582
        %v833 = vpop.f32.mrf.mxu0
        %v834 = vadd.f32 %v715, %v833
        %835 = vdwg.mxu0
        %836 = vmatpush.msra.mxu0 %v709
        %837 = vmatpush.msra.mxu0 %v705
        %838 = vmatpush.msra.mxu0 %v701
        %839 = vmatpush.msra.mxu0 %v697
        %840 = vmatpush.msra.mxu0 %v693
        %841 = vmatpush.msra.mxu0 %v689
        %842 = vmatpush.msra.mxu0 %v685
        %843 = vmatpush.msra.mxu0 %v681
        %844 = vmatpush.msra.mxu0 %v677
        %845 = vmatpush.msra.mxu0 %v673
        %846 = vmatpush.msra.mxu0 %v669
        %847 = vmatpush.msra.mxu0 %v665
        %848 = vmatpush.msra.mxu0 %v661
        %849 = vmatpush.msra.mxu0 %v657
        %850 = vmatpush.msra.mxu0 %v653
        %851 = vmatpush.msra.mxu0 %v649
        %852 = vmatmul.f32.gmra.mxu0 %v571
        %v853 = vpop.f32.mrf.mxu0
        %v854 = vadd.f32 %v816, %v853
        %855 = vmatmul.f32.gmra.mxu0 %v573
        %v856 = vpop.f32.mrf.mxu0
        %v857 = vadd.f32 %v819, %v856
        %858 = vmatmul.f32.gmra.mxu0 %v575
        %v859 = vpop.f32.mrf.mxu0
        %v860 = vadd.f32 %v822, %v859
        %861 = vmatmul.f32.gmra.mxu0 %v577
        %v862 = vpop.f32.mrf.mxu0
        %v863 = vadd.f32 %v825, %v862
        %864 = vmatmul.f32.gmra.mxu0 %v579
        %v865 = vpop.f32.mrf.mxu0
        %v866 = vadd.f32 %v828, %v865
        %867 = vmatmul.f32.gmra.mxu0 %v581
        %v868 = vpop.f32.mrf.mxu0
        %v869 = vadd.f32 %v831, %v868
        %870 = vmatmul.f32.gmra.mxu0 %v583
        %v871 = vpop.f32.mrf.mxu0
        %v872 = vadd.f32 %v834, %v871
        %873 = vdwg.mxu0
        %874 = vmatpush.msra.mxu0 %v646
        %875 = vmatpush.msra.mxu0 %v642
        %876 = vmatpush.msra.mxu0 %v638
        %877 = vmatpush.msra.mxu0 %v634
        %878 = vmatpush.msra.mxu0 %v630
        %879 = vmatpush.msra.mxu0 %v626
        %880 = vmatpush.msra.mxu0 %v622
        %881 = vmatpush.msra.mxu0 %v618
        %882 = vmatpush.msra.mxu0 %v614
        %883 = vmatpush.msra.mxu0 %v610
        %884 = vmatpush.msra.mxu0 %v606
        %885 = vmatpush.msra.mxu0 %v602
        %886 = vmatpush.msra.mxu0 %v598
        %887 = vmatpush.msra.mxu0 %v594
        %888 = vmatpush.msra.mxu0 %v590
        %889 = vmatpush.msra.mxu0 %v586
        %890 = vmatmul.f32.gmra.mxu0 %v570
        %v891 = vpop.f32.mrf.mxu0
        %v892 = vadd.f32 %v716, %v891
        %893 = vmatmul.f32.gmra.mxu0 %v572
        %v894 = vpop.f32.mrf.mxu0
        %v895 = vadd.f32 %v716, %v894
        %896 = vmatmul.f32.gmra.mxu0 %v574
        %v897 = vpop.f32.mrf.mxu0
        %v898 = vadd.f32 %v716, %v897
        %899 = vmatmul.f32.gmra.mxu0 %v576
        %v900 = vpop.f32.mrf.mxu0
        %v901 = vadd.f32 %v716, %v900
        %902 = vmatmul.f32.gmra.mxu0 %v578
        %v903 = vpop.f32.mrf.mxu0
        %v904 = vadd.f32 %v716, %v903
        %905 = vmatmul.f32.gmra.mxu0 %v580
        %v906 = vpop.f32.mrf.mxu0
        %v907 = vadd.f32 %v716, %v906
        %908 = vmatmul.f32.gmra.mxu0 %v582
        %v909 = vpop.f32.mrf.mxu0
        %v910 = vadd.f32 %v716, %v909
        %911 = vdwg.mxu0
        %912 = vmatpush.msra.mxu0 %v710
        %913 = vmatpush.msra.mxu0 %v706
        %914 = vmatpush.msra.mxu0 %v702
        %915 = vmatpush.msra.mxu0 %v698
        %916 = vmatpush.msra.mxu0 %v694
        %917 = vmatpush.msra.mxu0 %v690
        %918 = vmatpush.msra.mxu0 %v686
        %919 = vmatpush.msra.mxu0 %v682
        %920 = vmatpush.msra.mxu0 %v678
        %921 = vmatpush.msra.mxu0 %v674
        %922 = vmatpush.msra.mxu0 %v670
        %923 = vmatpush.msra.mxu0 %v666
        %924 = vmatpush.msra.mxu0 %v662
        %925 = vmatpush.msra.mxu0 %v658
        %926 = vmatpush.msra.mxu0 %v654
        %927 = vmatpush.msra.mxu0 %v650
        %928 = vmatmul.f32.gmra.mxu0 %v571
        %v929 = vpop.f32.mrf.mxu0
        %v930 = vadd.f32 %v892, %v929
        %931 = vmatmul.f32.gmra.mxu0 %v573
        %v932 = vpop.f32.mrf.mxu0
        %v933 = vadd.f32 %v895, %v932
        %934 = vmatmul.f32.gmra.mxu0 %v575
        %v935 = vpop.f32.mrf.mxu0
        %v936 = vadd.f32 %v898, %v935
        %937 = vmatmul.f32.gmra.mxu0 %v577
        %v938 = vpop.f32.mrf.mxu0
        %v939 = vadd.f32 %v901, %v938
        %940 = vmatmul.f32.gmra.mxu0 %v579
        %v941 = vpop.f32.mrf.mxu0
        %v942 = vadd.f32 %v904, %v941
        %943 = vmatmul.f32.gmra.mxu0 %v581
        %v944 = vpop.f32.mrf.mxu0
        %v945 = vadd.f32 %v907, %v944
        %946 = vmatmul.f32.gmra.mxu0 %v583
        %v947 = vpop.f32.mrf.mxu0
        %v948 = vadd.f32 %v910, %v947
        %949 = vdwg.mxu0
        %950 = vmatpush.msra.mxu0 %v647
        %951 = vmatpush.msra.mxu0 %v643
        %952 = vmatpush.msra.mxu0 %v639
        %953 = vmatpush.msra.mxu0 %v635
        %954 = vmatpush.msra.mxu0 %v631
        %955 = vmatpush.msra.mxu0 %v627
        %956 = vmatpush.msra.mxu0 %v623
        %957 = vmatpush.msra.mxu0 %v619
        %958 = vmatpush.msra.mxu0 %v615
        %959 = vmatpush.msra.mxu0 %v611
        %960 = vmatpush.msra.mxu0 %v607
        %961 = vmatpush.msra.mxu0 %v603
        %962 = vmatpush.msra.mxu0 %v599
        %963 = vmatpush.msra.mxu0 %v595
        %964 = vmatpush.msra.mxu0 %v591
        %965 = vmatpush.msra.mxu0 %v587
        %966 = vmatmul.f32.gmra.mxu0 %v570
        %v967 = vpop.f32.mrf.mxu0
        %v968 = vadd.f32 %v717, %v967
        %969 = vmatmul.f32.gmra.mxu0 %v572
        %v970 = vpop.f32.mrf.mxu0
        %v971 = vadd.f32 %v717, %v970
        %972 = vmatmul.f32.gmra.mxu0 %v574
        %v973 = vpop.f32.mrf.mxu0
        %v974 = vadd.f32 %v717, %v973
        %975 = vmatmul.f32.gmra.mxu0 %v576
        %v976 = vpop.f32.mrf.mxu0
        %v977 = vadd.f32 %v717, %v976
        %978 = vmatmul.f32.gmra.mxu0 %v578
        %v979 = vpop.f32.mrf.mxu0
        %v980 = vadd.f32 %v717, %v979
        %981 = vmatmul.f32.gmra.mxu0 %v580
        %v982 = vpop.f32.mrf.mxu0
        %v983 = vadd.f32 %v717, %v982
        %984 = vmatmul.f32.gmra.mxu0 %v582
        %v985 = vpop.f32.mrf.mxu0
        %v986 = vadd.f32 %v717, %v985
        %987 = vdwg.mxu0
        %988 = vmatpush.msra.mxu0 %v711
        %989 = vmatpush.msra.mxu0 %v707
        %990 = vmatpush.msra.mxu0 %v703
        %991 = vmatpush.msra.mxu0 %v699
        %992 = vmatpush.msra.mxu0 %v695
        %993 = vmatpush.msra.mxu0 %v691
        %994 = vmatpush.msra.mxu0 %v687
        %995 = vmatpush.msra.mxu0 %v683
        %996 = vmatpush.msra.mxu0 %v679
        %997 = vmatpush.msra.mxu0 %v675
        %998 = vmatpush.msra.mxu0 %v671
        %999 = vmatpush.msra.mxu0 %v667
        %1000 = vmatpush.msra.mxu0 %v663
        %1001 = vmatpush.msra.mxu0 %v659
        %1002 = vmatpush.msra.mxu0 %v655
        %1003 = vmatpush.msra.mxu0 %v651
        %1004 = vmatmul.f32.gmra.mxu0 %v571
        %v1005 = vpop.f32.mrf.mxu0
        %v1006 = vadd.f32 %v968, %v1005
        %1007 = vmatmul.f32.gmra.mxu0 %v573
        %v1008 = vpop.f32.mrf.mxu0
        %v1009 = vadd.f32 %v971, %v1008
        %1010 = vmatmul.f32.gmra.mxu0 %v575
        %v1011 = vpop.f32.mrf.mxu0
        %v1012 = vadd.f32 %v974, %v1011
        %1013 = vmatmul.f32.gmra.mxu0 %v577
        %v1014 = vpop.f32.mrf.mxu0
        %v1015 = vadd.f32 %v977, %v1014
        %1016 = vmatmul.f32.gmra.mxu0 %v579
        %v1017 = vpop.f32.mrf.mxu0
        %v1018 = vadd.f32 %v980, %v1017
        %1019 = vmatmul.f32.gmra.mxu0 %v581
        %v1020 = vpop.f32.mrf.mxu0
        %v1021 = vadd.f32 %v983, %v1020
        %1022 = vmatmul.f32.gmra.mxu0 %v583
        %v1023 = vpop.f32.mrf.mxu0
        %v1024 = vadd.f32 %v986, %v1023
        %1025 = vdwg.mxu0
        %v1026 = vmul.f32 %v778, 0.5
        %v1027 = vmul.f32 %v854, 0.5
        %v1028 = vmul.f32 %v930, 0.5
        %v1029 = vmul.f32 %v1006, 0.5
        %v1030 = vmul.f32 %v781, 0.5
        %v1031 = vmul.f32 %v857, 0.5
        %v1032 = vmul.f32 %v933, 0.5
        %v1033 = vmul.f32 %v1009, 0.5
        %v1034 = vmul.f32 %v784, 0.5
        %v1035 = vmul.f32 %v860, 0.5
        %v1036 = vmul.f32 %v936, 0.5
        %v1037 = vmul.f32 %v1012, 0.5
        %v1038 = vmul.f32 %v787, 0.5
        %v1039 = vmul.f32 %v863, 0.5
        %v1040 = vmul.f32 %v939, 0.5
        %v1041 = vmul.f32 %v1015, 0.5
        %v1042 = vmul.f32 %v790, 0.5
        %v1043 = vmul.f32 %v866, 0.5
        %v1044 = vmul.f32 %v942, 0.5
        %v1045 = vmul.f32 %v1018, 0.5
        %v1046 = vmul.f32 %v793, 0.5
        %v1047 = vmul.f32 %v869, 0.5
        %v1048 = vmul.f32 %v945, 0.5
        %v1049 = vmul.f32 %v1021, 0.5
        %v1050 = vmul.f32 %v796, 0.5
        %v1051 = vmul.f32 %v872, 0.5
        %v1052 = vmul.f32 %v948, 0.5
        %v1053 = vmul.f32 %v1024, 0.5
        %v1054 = vtanh.pop %v1026
        %v1055 = vtanh.pop %v1027
        %v1056 = vtanh.pop %v1028
        %v1057 = vtanh.pop %v1029
        %v1058 = vtanh.pop %v1030
        %v1059 = vtanh.pop %v1031
        %v1060 = vtanh.pop %v1032
        %v1061 = vtanh.pop %v1033
        %v1062 = vtanh.pop %v1034
        %v1063 = vtanh.pop %v1035
        %v1064 = vtanh.pop %v1036
        %v1065 = vtanh.pop %v1037
        %v1066 = vtanh.pop %v1038
        %v1067 = vtanh.pop %v1039
        %v1068 = vtanh.pop %v1040
        %v1069 = vtanh.pop %v1041
        %v1070 = vtanh.pop %v1042
        %v1071 = vtanh.pop %v1043
        %v1072 = vtanh.pop %v1044
        %v1073 = vtanh.pop %v1045
        %v1074 = vtanh.pop %v1046
        %v1075 = vtanh.pop %v1047
        %v1076 = vtanh.pop %v1048
        %v1077 = vtanh.pop %v1049
        %v1078 = vtanh.pop %v1050
        %v1079 = vtanh.pop %v1051
        %v1080 = vtanh.pop %v1052
        %v1081 = vtanh.pop %v1053
        %v1082 = vadd.f32 %v1054, 1.0
        %v1083 = vadd.f32 %v1055, 1.0
        %v1084 = vadd.f32 %v1056, 1.0
        %v1085 = vadd.f32 %v1057, 1.0
        %v1086 = vadd.f32 %v1058, 1.0
        %v1087 = vadd.f32 %v1059, 1.0
        %v1088 = vadd.f32 %v1060, 1.0
        %v1089 = vadd.f32 %v1061, 1.0
        %v1090 = vadd.f32 %v1062, 1.0
        %v1091 = vadd.f32 %v1063, 1.0
        %v1092 = vadd.f32 %v1064, 1.0
        %v1093 = vadd.f32 %v1065, 1.0
        %v1094 = vadd.f32 %v1066, 1.0
        %v1095 = vadd.f32 %v1067, 1.0
        %v1096 = vadd.f32 %v1068, 1.0
        %v1097 = vadd.f32 %v1069, 1.0
        %v1098 = vadd.f32 %v1070, 1.0
        %v1099 = vadd.f32 %v1071, 1.0
        %v1100 = vadd.f32 %v1072, 1.0
        %v1101 = vadd.f32 %v1073, 1.0
        %v1102 = vadd.f32 %v1074, 1.0
        %v1103 = vadd.f32 %v1075, 1.0
        %v1104 = vadd.f32 %v1076, 1.0
        %v1105 = vadd.f32 %v1077, 1.0
        %v1106 = vadd.f32 %v1078, 1.0
        %v1107 = vadd.f32 %v1079, 1.0
        %v1108 = vadd.f32 %v1080, 1.0
        %v1109 = vadd.f32 %v1081, 1.0
        %v1110 = vmul.f32 %v1082, 0.5
        %v1111 = vmul.f32 %v1083, 0.5
        %v1112 = vmul.f32 %v1084, 0.5
        %v1113 = vmul.f32 %v1085, 0.5
        %v1114 = vmul.f32 %v1086, 0.5
        %v1115 = vmul.f32 %v1087, 0.5
        %v1116 = vmul.f32 %v1088, 0.5
        %v1117 = vmul.f32 %v1089, 0.5
        %v1118 = vmul.f32 %v1090, 0.5
        %v1119 = vmul.f32 %v1091, 0.5
        %v1120 = vmul.f32 %v1092, 0.5
        %v1121 = vmul.f32 %v1093, 0.5
        %v1122 = vmul.f32 %v1094, 0.5
        %v1123 = vmul.f32 %v1095, 0.5
        %v1124 = vmul.f32 %v1096, 0.5
        %v1125 = vmul.f32 %v1097, 0.5
        %v1126 = vmul.f32 %v1098, 0.5
        %v1127 = vmul.f32 %v1099, 0.5
        %v1128 = vmul.f32 %v1100, 0.5
        %v1129 = vmul.f32 %v1101, 0.5
        %v1130 = vmul.f32 %v1102, 0.5
        %v1131 = vmul.f32 %v1103, 0.5
        %v1132 = vmul.f32 %v1104, 0.5
        %v1133 = vmul.f32 %v1105, 0.5
        %v1134 = vmul.f32 %v1106, 0.5
        %v1135 = vmul.f32 %v1107, 0.5
        %v1136 = vmul.f32 %v1108, 0.5
        %v1137 = vmul.f32 %v1109, 0.5
        %v1138 = vld [vmem:[%s7] sm:$0xff]
        %v1139 = vld [vmem:[%s7 + $0x8] sm:$0xff]
        %v1140 = vld [vmem:[%s7 + $0x10] sm:$0xff]
        %v1141 = vld [vmem:[%s7 + $0x18] sm:$0xff]
        %v1142 = vld [vmem:[%s7 + $0x20] sm:$0xff]
        %v1143 = vld [vmem:[%s7 + $0x28] sm:$0xff]
        %v1144 = vld [vmem:[%s7 + $0x30] sm:$0xff]
        %v1145 = vld [vmem:[%s7 + $0x38] sm:$0xff]
        %v1146 = vld [vmem:[%s7 + $0x40] sm:$0xff]
        %v1147 = vld [vmem:[%s7 + $0x48] sm:$0xff]
        %v1148 = vld [vmem:[%s7 + $0x50] sm:$0xff]
        %v1149 = vld [vmem:[%s7 + $0x58] sm:$0xff]
        %v1150 = vld [vmem:[%s7 + $0x60] sm:$0xff]
        %v1151 = vld [vmem:[%s7 + $0x68] sm:$0xff]
        %v1152 = vld [vmem:[%s7 + $0x70] sm:$0xff]
        %v1153 = vld [vmem:[%s7 + $0x78] sm:$0xff]
        %v1154 = vld [vmem:[%s7 + $0x80] sm:$0xff]
        %v1155 = vld [vmem:[%s7 + $0x88] sm:$0xff]
        %v1156 = vld [vmem:[%s7 + $0x90] sm:$0xff]
        %v1157 = vld [vmem:[%s7 + $0x98] sm:$0xff]
        %v1158 = vld [vmem:[%s7 + $0xa0] sm:$0xff]
        %v1159 = vld [vmem:[%s7 + $0xa8] sm:$0xff]
        %v1160 = vld [vmem:[%s7 + $0xb0] sm:$0xff]
        %v1161 = vld [vmem:[%s7 + $0xb8] sm:$0xff]
        %v1162 = vld [vmem:[%s7 + $0xc0] sm:$0xff]
        %v1163 = vld [vmem:[%s7 + $0xc8] sm:$0xff]
        %v1164 = vld [vmem:[%s7 + $0xd0] sm:$0xff]
        %v1165 = vld [vmem:[%s7 + $0xd8] sm:$0xff]
        %v1166 = vld [vmem:[%s7 + $0xe0] sm:$0xff]
        %v1167 = vld [vmem:[%s7 + $0xe8] sm:$0xff]
        %v1168 = vld [vmem:[%s7 + $0xf0] sm:$0xff]
        %v1169 = vld [vmem:[%s7 + $0xf8] sm:$0xff]
        %v1170 = vld [vmem:[%s7 + $0x100] sm:$0xff]
        %v1171 = vld [vmem:[%s7 + $0x108] sm:$0xff]
        %v1172 = vld [vmem:[%s7 + $0x110] sm:$0xff]
        %v1173 = vld [vmem:[%s7 + $0x118] sm:$0xff]
        %v1174 = vld [vmem:[%s7 + $0x120] sm:$0xff]
        %v1175 = vld [vmem:[%s7 + $0x128] sm:$0xff]
        %v1176 = vld [vmem:[%s7 + $0x130] sm:$0xff]
        %v1177 = vld [vmem:[%s7 + $0x138] sm:$0xff]
        %v1178 = vld [vmem:[%s7 + $0x140] sm:$0xff]
        %v1179 = vld [vmem:[%s7 + $0x148] sm:$0xff]
        %v1180 = vld [vmem:[%s7 + $0x150] sm:$0xff]
        %v1181 = vld [vmem:[%s7 + $0x158] sm:$0xff]
        %v1182 = vld [vmem:[%s7 + $0x160] sm:$0xff]
        %v1183 = vld [vmem:[%s7 + $0x168] sm:$0xff]
        %v1184 = vld [vmem:[%s7 + $0x170] sm:$0xff]
        %v1185 = vld [vmem:[%s7 + $0x178] sm:$0xff]
        %v1186 = vld [vmem:[%s7 + $0x180] sm:$0xff]
        %v1187 = vld [vmem:[%s7 + $0x188] sm:$0xff]
        %v1188 = vld [vmem:[%s7 + $0x190] sm:$0xff]
        %v1189 = vld [vmem:[%s7 + $0x198] sm:$0xff]
        %v1190 = vld [vmem:[%s7 + $0x1a0] sm:$0xff]
        %v1191 = vld [vmem:[%s7 + $0x1a8] sm:$0xff]
        %v1192 = vld [vmem:[%s7 + $0x1b0] sm:$0xff]
        %v1193 = vld [vmem:[%s7 + $0x1b8] sm:$0xff]
        %v1194 = vld [vmem:[%s7 + $0x1c0] sm:$0xff]
        %v1195 = vld [vmem:[%s7 + $0x1c8] sm:$0xff]
        %v1196 = vld [vmem:[%s7 + $0x1d0] sm:$0xff]
        %v1197 = vld [vmem:[%s7 + $0x1d8] sm:$0xff]
        %v1198 = vld [vmem:[%s7 + $0x1e0] sm:$0xff]
        %v1199 = vld [vmem:[%s7 + $0x1e8] sm:$0xff]
        %v1200 = vld [vmem:[%s7 + $0x1f0] sm:$0xff]
        %v1201 = vld [vmem:[%s7 + $0x1f8] sm:$0xff]
        %v1202 = vld [vmem:[%s7 + $0x200] sm:$0xff]
        %v1203 = vld [vmem:[%s7 + $0x208] sm:$0xff]
        %v1204 = vld [vmem:[%s7 + $0x210] sm:$0xff]
        %v1205 = vld [vmem:[%s7 + $0x218] sm:$0xff]
        %v1206 = vld [vmem:[%s7 + $0x220] sm:$0xff]
        %v1207 = vld [vmem:[%s7 + $0x228] sm:$0xff]
        %v1208 = vld [vmem:[%s7 + $0x230] sm:$0xff]
        %v1209 = vld [vmem:[%s7 + $0x238] sm:$0xff]
        %v1210 = vld [vmem:[%s7 + $0x240] sm:$0xff]
        %v1211 = vld [vmem:[%s7 + $0x248] sm:$0xff]
        %v1212 = vld [vmem:[%s7 + $0x250] sm:$0xff]
        %v1213 = vld [vmem:[%s7 + $0x258] sm:$0xff]
        %v1214 = vld [vmem:[%s7 + $0x260] sm:$0xff]
        %v1215 = vld [vmem:[%s7 + $0x268] sm:$0xff]
        %v1216 = vld [vmem:[%s7 + $0x270] sm:$0xff]
        %v1217 = vld [vmem:[%s7 + $0x278] sm:$0xff]
        %v1218 = vld [vmem:[%s7 + $0x280] sm:$0xff]
        %v1219 = vld [vmem:[%s7 + $0x288] sm:$0xff]
        %v1220 = vld [vmem:[%s7 + $0x290] sm:$0xff]
        %v1221 = vld [vmem:[%s7 + $0x298] sm:$0xff]
        %v1222 = vld [vmem:[%s7 + $0x2a0] sm:$0xff]
        %v1223 = vld [vmem:[%s7 + $0x2a8] sm:$0xff]
        %v1224 = vld [vmem:[%s7 + $0x2b0] sm:$0xff]
        %v1225 = vld [vmem:[%s7 + $0x2b8] sm:$0xff]
        %v1226 = vld [vmem:[%s7 + $0x2c0] sm:$0xff]
        %v1227 = vld [vmem:[%s7 + $0x2c8] sm:$0xff]
        %v1228 = vld [vmem:[%s7 + $0x2d0] sm:$0xff]
        %v1229 = vld [vmem:[%s7 + $0x2d8] sm:$0xff]
        %v1230 = vld [vmem:[%s7 + $0x2e0] sm:$0xff]
        %v1231 = vld [vmem:[%s7 + $0x2e8] sm:$0xff]
        %v1232 = vld [vmem:[%s7 + $0x2f0] sm:$0xff]
        %v1233 = vld [vmem:[%s7 + $0x2f8] sm:$0xff]
        %v1234 = vld [vmem:[%s7 + $0x300] sm:$0xff]
        %v1235 = vld [vmem:[%s7 + $0x308] sm:$0xff]
        %v1236 = vld [vmem:[%s7 + $0x310] sm:$0xff]
        %v1237 = vld [vmem:[%s7 + $0x318] sm:$0xff]
        %v1238 = vld [vmem:[%s7 + $0x320] sm:$0xff]
        %v1239 = vld [vmem:[%s7 + $0x328] sm:$0xff]
        %v1240 = vld [vmem:[%s7 + $0x330] sm:$0xff]
        %v1241 = vld [vmem:[%s7 + $0x338] sm:$0xff]
        %v1242 = vld [vmem:[%s7 + $0x340] sm:$0xff]
        %v1243 = vld [vmem:[%s7 + $0x348] sm:$0xff]
        %v1244 = vld [vmem:[%s7 + $0x350] sm:$0xff]
        %v1245 = vld [vmem:[%s7 + $0x358] sm:$0xff]
        %v1246 = vld [vmem:[%s7 + $0x360] sm:$0xff]
        %v1247 = vld [vmem:[%s7 + $0x368] sm:$0xff]
        %v1248 = vld [vmem:[%s7 + $0x370] sm:$0xff]
        %v1249 = vld [vmem:[%s7 + $0x378] sm:$0xff]
        %v1250 = vld [vmem:[%s7 + $0x380] sm:$0xff]
        %v1251 = vld [vmem:[%s7 + $0x388] sm:$0xff]
        %v1252 = vld [vmem:[%s7 + $0x390] sm:$0xff]
        %v1253 = vld [vmem:[%s7 + $0x398] sm:$0xff]
        %v1254 = vld [vmem:[%s7 + $0x3a0] sm:$0xff]
        %v1255 = vld [vmem:[%s7 + $0x3a8] sm:$0xff]
        %v1256 = vld [vmem:[%s7 + $0x3b0] sm:$0xff]
        %v1257 = vld [vmem:[%s7 + $0x3b8] sm:$0xff]
        %v1258 = vld [vmem:[%s7 + $0x3c0] sm:$0xff]
        %v1259 = vld [vmem:[%s7 + $0x3c8] sm:$0xff]
        %v1260 = vld [vmem:[%s7 + $0x3d0] sm:$0xff]
        %v1261 = vld [vmem:[%s7 + $0x3d8] sm:$0xff]
        %v1262 = vld [vmem:[%s7 + $0x3e0] sm:$0xff]
        %v1263 = vld [vmem:[%s7 + $0x3e8] sm:$0xff]
        %v1264 = vld [vmem:[%s7 + $0x3f0] sm:$0xff]
        %v1265 = vld [vmem:[%s7 + $0x3f8] sm:$0xff]
        %v1266 = vld [vmem:[%s7 + $0x400] sm:$0xff]
        %v1267 = vld [vmem:[%s7 + $0x408] sm:$0xff]
        %v1268 = vld [vmem:[%s7 + $0x410] sm:$0xff]
        %v1269 = vld [vmem:[%s7 + $0x418] sm:$0xff]
        %v1270 = vld [vmem:[%s7 + $0x420] sm:$0xff]
        %v1271 = vld [vmem:[%s7 + $0x428] sm:$0xff]
        %v1272 = vld [vmem:[%s7 + $0x430] sm:$0xff]
        %v1273 = vld [vmem:[%s7 + $0x438] sm:$0xff]
        %v1274 = vld [vmem:[%s7 + $0x440] sm:$0xff]
        %v1275 = vld [vmem:[%s7 + $0x448] sm:$0xff]
        %v1276 = vld [vmem:[%s7 + $0x450] sm:$0xff]
        %v1277 = vld [vmem:[%s7 + $0x458] sm:$0xff]
        %v1278 = vld [vmem:[%s7 + $0x460] sm:$0xff]
        %v1279 = vld [vmem:[%s7 + $0x468] sm:$0xff]
        %v1280 = vld [vmem:[%s7 + $0x470] sm:$0xff]
        %v1281 = vld [vmem:[%s7 + $0x478] sm:$0xff]
        %v1282 = vld [vmem:[%s7 + $0x480] sm:$0xff]
        %v1283 = vld [vmem:[%s7 + $0x488] sm:$0xff]
        %v1284 = vld [vmem:[%s7 + $0x490] sm:$0xff]
        %v1285 = vld [vmem:[%s7 + $0x498] sm:$0xff]
        %v1286 = vld [vmem:[%s7 + $0x4a0] sm:$0xff]
        %v1287 = vld [vmem:[%s7 + $0x4a8] sm:$0xff]
        %v1288 = vld [vmem:[%s7 + $0x4b0] sm:$0xff]
        %v1289 = vld [vmem:[%s7 + $0x4b8] sm:$0xff]
        %v1290 = vld [vmem:[%s7 + $0x4c0] sm:$0xff]
        %v1291 = vld [vmem:[%s7 + $0x4c8] sm:$0xff]
        %v1292 = vld [vmem:[%s7 + $0x4d0] sm:$0xff]
        %v1293 = vld [vmem:[%s7 + $0x4d8] sm:$0xff]
        %v1294 = vld [vmem:[%s7 + $0x4e0] sm:$0xff]
        %v1295 = vld [vmem:[%s7 + $0x4e8] sm:$0xff]
        %v1296 = vld [vmem:[%s7 + $0x4f0] sm:$0xff]
        %v1297 = vld [vmem:[%s7 + $0x4f8] sm:$0xff]
        %v1298 = vld [vmem:[%s7 + $0x500] sm:$0xff]
        %v1299 = vld [vmem:[%s7 + $0x508] sm:$0xff]
        %v1300 = vld [vmem:[%s7 + $0x510] sm:$0xff]
        %v1301 = vld [vmem:[%s7 + $0x518] sm:$0xff]
        %v1302 = vld [vmem:[%s7 + $0x520] sm:$0xff]
        %v1303 = vld [vmem:[%s7 + $0x528] sm:$0xff]
        %v1304 = vld [vmem:[%s7 + $0x530] sm:$0xff]
        %v1305 = vld [vmem:[%s7 + $0x538] sm:$0xff]
        %v1306 = vld [vmem:[%s7 + $0x540] sm:$0xff]
        %v1307 = vld [vmem:[%s7 + $0x548] sm:$0xff]
        %v1308 = vld [vmem:[%s7 + $0x550] sm:$0xff]
        %v1309 = vld [vmem:[%s7 + $0x558] sm:$0xff]
        %v1310 = vld [vmem:[%s7 + $0x560] sm:$0xff]
        %v1311 = vld [vmem:[%s7 + $0x568] sm:$0xff]
        %v1312 = vld [vmem:[%s7 + $0x570] sm:$0xff]
        %v1313 = vld [vmem:[%s7 + $0x578] sm:$0xff]
        %v1314 = vld [vmem:[%s7 + $0x580] sm:$0xff]
        %v1315 = vld [vmem:[%s7 + $0x588] sm:$0xff]
        %v1316 = vld [vmem:[%s7 + $0x590] sm:$0xff]
        %v1317 = vld [vmem:[%s7 + $0x598] sm:$0xff]
        %v1318 = vld [vmem:[%s7 + $0x5a0] sm:$0xff]
        %v1319 = vld [vmem:[%s7 + $0x5a8] sm:$0xff]
        %v1320 = vld [vmem:[%s7 + $0x5b0] sm:$0xff]
        %v1321 = vld [vmem:[%s7 + $0x5b8] sm:$0xff]
        %v1322 = vld [vmem:[%s7 + $0x5c0] sm:$0xff]
        %v1323 = vld [vmem:[%s7 + $0x5c8] sm:$0xff]
        %v1324 = vld [vmem:[%s7 + $0x5d0] sm:$0xff]
        %v1325 = vld [vmem:[%s7 + $0x5d8] sm:$0xff]
        %v1326 = vld [vmem:[%s7 + $0x5e0] sm:$0xff]
        %v1327 = vld [vmem:[%s7 + $0x5e8] sm:$0xff]
        %v1328 = vld [vmem:[%s7 + $0x5f0] sm:$0xff]
        %v1329 = vld [vmem:[%s7 + $0x5f8] sm:$0xff]
        %v1330 = vld [vmem:[%s7 + $0x600] sm:$0xff]
        %v1331 = vld [vmem:[%s7 + $0x608] sm:$0xff]
        %v1332 = vld [vmem:[%s7 + $0x610] sm:$0xff]
        %v1333 = vld [vmem:[%s7 + $0x618] sm:$0xff]
        %v1334 = vld [vmem:[%s7 + $0x620] sm:$0xff]
        %v1335 = vld [vmem:[%s7 + $0x628] sm:$0xff]
        %v1336 = vld [vmem:[%s7 + $0x630] sm:$0xff]
        %v1337 = vld [vmem:[%s7 + $0x638] sm:$0xff]
        %v1338 = vld [vmem:[%s7 + $0x640] sm:$0xff]
        %v1339 = vld [vmem:[%s7 + $0x648] sm:$0xff]
        %v1340 = vld [vmem:[%s7 + $0x650] sm:$0xff]
        %v1341 = vld [vmem:[%s7 + $0x658] sm:$0xff]
        %v1342 = vld [vmem:[%s7 + $0x660] sm:$0xff]
        %v1343 = vld [vmem:[%s7 + $0x668] sm:$0xff]
        %v1344 = vld [vmem:[%s7 + $0x670] sm:$0xff]
        %v1345 = vld [vmem:[%s7 + $0x678] sm:$0xff]
        %v1346 = vld [vmem:[%s7 + $0x680] sm:$0xff]
        %v1347 = vld [vmem:[%s7 + $0x688] sm:$0xff]
        %v1348 = vld [vmem:[%s7 + $0x690] sm:$0xff]
        %v1349 = vld [vmem:[%s7 + $0x698] sm:$0xff]
        %v1350 = vld [vmem:[%s7 + $0x6a0] sm:$0xff]
        %v1351 = vld [vmem:[%s7 + $0x6a8] sm:$0xff]
        %v1352 = vld [vmem:[%s7 + $0x6b0] sm:$0xff]
        %v1353 = vld [vmem:[%s7 + $0x6b8] sm:$0xff]
        %v1354 = vld [vmem:[%s7 + $0x6c0] sm:$0xff]
        %v1355 = vld [vmem:[%s7 + $0x6c8] sm:$0xff]
        %v1356 = vld [vmem:[%s7 + $0x6d0] sm:$0xff]
        %v1357 = vld [vmem:[%s7 + $0x6d8] sm:$0xff]
        %v1358 = vld [vmem:[%s7 + $0x6e0] sm:$0xff]
        %v1359 = vld [vmem:[%s7 + $0x6e8] sm:$0xff]
        %v1360 = vld [vmem:[%s7 + $0x6f0] sm:$0xff]
        %v1361 = vld [vmem:[%s7 + $0x6f8] sm:$0xff]
        %v1362 = vld [vmem:[%s7 + $0x700] sm:$0xff]
        %v1363 = vld [vmem:[%s7 + $0x708] sm:$0xff]
        %v1364 = vld [vmem:[%s7 + $0x710] sm:$0xff]
        %v1365 = vld [vmem:[%s7 + $0x718] sm:$0xff]
        %v1366 = vld [vmem:[%s7 + $0x720] sm:$0xff]
        %v1367 = vld [vmem:[%s7 + $0x728] sm:$0xff]
        %v1368 = vld [vmem:[%s7 + $0x730] sm:$0xff]
        %v1369 = vld [vmem:[%s7 + $0x738] sm:$0xff]
        %v1370 = vld [vmem:[%s7 + $0x740] sm:$0xff]
        %v1371 = vld [vmem:[%s7 + $0x748] sm:$0xff]
        %v1372 = vld [vmem:[%s7 + $0x750] sm:$0xff]
        %v1373 = vld [vmem:[%s7 + $0x758] sm:$0xff]
        %v1374 = vld [vmem:[%s7 + $0x760] sm:$0xff]
        %v1375 = vld [vmem:[%s7 + $0x768] sm:$0xff]
        %v1376 = vld [vmem:[%s7 + $0x770] sm:$0xff]
        %v1377 = vld [vmem:[%s7 + $0x778] sm:$0xff]
        %v1378 = vld [vmem:[%s7 + $0x780] sm:$0xff]
        %v1379 = vld [vmem:[%s7 + $0x788] sm:$0xff]
        %v1380 = vld [vmem:[%s7 + $0x790] sm:$0xff]
        %v1381 = vld [vmem:[%s7 + $0x798] sm:$0xff]
        %v1382 = vld [vmem:[%s7 + $0x7a0] sm:$0xff]
        %v1383 = vld [vmem:[%s7 + $0x7a8] sm:$0xff]
        %v1384 = vld [vmem:[%s7 + $0x7b0] sm:$0xff]
        %v1385 = vld [vmem:[%s7 + $0x7b8] sm:$0xff]
        %v1386 = vld [vmem:[%s7 + $0x7c0] sm:$0xff]
        %v1387 = vld [vmem:[%s7 + $0x7c8] sm:$0xff]
        %v1388 = vld [vmem:[%s7 + $0x7d0] sm:$0xff]
        %v1389 = vld [vmem:[%s7 + $0x7d8] sm:$0xff]
        %v1390 = vld [vmem:[%s7 + $0x7e0] sm:$0xff]
        %v1391 = vld [vmem:[%s7 + $0x7e8] sm:$0xff]
        %v1392 = vld [vmem:[%s7 + $0x7f0] sm:$0xff]
        %v1393 = vld [vmem:[%s7 + $0x7f8] sm:$0xff]
        %v1394 = vld [vmem:[%s7 + $0x800] sm:$0xff]
        %v1395 = vld [vmem:[%s7 + $0x808] sm:$0xff]
        %v1396 = vld [vmem:[%s7 + $0x810] sm:$0xff]
        %v1397 = vld [vmem:[%s7 + $0x818] sm:$0xff]
        %v1398 = vld [vmem:[%s7 + $0x820] sm:$0xff]
        %v1399 = vld [vmem:[%s7 + $0x828] sm:$0xff]
        %v1400 = vld [vmem:[%s7 + $0x830] sm:$0xff]
        %v1401 = vld [vmem:[%s7 + $0x838] sm:$0xff]
        %v1402 = vld [vmem:[%s7 + $0x840] sm:$0xff]
        %v1403 = vld [vmem:[%s7 + $0x848] sm:$0xff]
        %v1404 = vld [vmem:[%s7 + $0x850] sm:$0xff]
        %v1405 = vld [vmem:[%s7 + $0x858] sm:$0xff]
        %v1406 = vld [vmem:[%s7 + $0x860] sm:$0xff]
        %v1407 = vld [vmem:[%s7 + $0x868] sm:$0xff]
        %v1408 = vld [vmem:[%s7 + $0x870] sm:$0xff]
        %v1409 = vld [vmem:[%s7 + $0x878] sm:$0xff]
        %v1410 = vld [vmem:[%s7 + $0x880] sm:$0xff]
        %v1411 = vld [vmem:[%s7 + $0x888] sm:$0xff]
        %v1412 = vld [vmem:[%s7 + $0x890] sm:$0xff]
        %v1413 = vld [vmem:[%s7 + $0x898] sm:$0xff]
        %v1414 = vld [vmem:[%s7 + $0x8a0] sm:$0xff]
        %v1415 = vld [vmem:[%s7 + $0x8a8] sm:$0xff]
        %v1416 = vld [vmem:[%s7 + $0x8b0] sm:$0xff]
        %v1417 = vld [vmem:[%s7 + $0x8b8] sm:$0xff]
        %v1418 = vld [vmem:[%s7 + $0x8c0] sm:$0xff]
        %v1419 = vld [vmem:[%s7 + $0x8c8] sm:$0xff]
        %v1420 = vld [vmem:[%s7 + $0x8d0] sm:$0xff]
        %v1421 = vld [vmem:[%s7 + $0x8d8] sm:$0xff]
        %v1422 = vld [vmem:[%s7 + $0x8e0] sm:$0xff]
        %v1423 = vld [vmem:[%s7 + $0x8e8] sm:$0xff]
        %v1424 = vld [vmem:[%s7 + $0x8f0] sm:$0xff]
        %v1425 = vld [vmem:[%s7 + $0x8f8] sm:$0xff]
        %v1426 = vld [vmem:[%s7 + $0x900] sm:$0xff]
        %v1427 = vld [vmem:[%s7 + $0x908] sm:$0xff]
        %v1428 = vld [vmem:[%s7 + $0x910] sm:$0xff]
        %v1429 = vld [vmem:[%s7 + $0x918] sm:$0xff]
        %v1430 = vld [vmem:[%s7 + $0x920] sm:$0xff]
        %v1431 = vld [vmem:[%s7 + $0x928] sm:$0xff]
        %v1432 = vld [vmem:[%s7 + $0x930] sm:$0xff]
        %v1433 = vld [vmem:[%s7 + $0x938] sm:$0xff]
        %v1434 = vld [vmem:[%s7 + $0x940] sm:$0xff]
        %v1435 = vld [vmem:[%s7 + $0x948] sm:$0xff]
        %v1436 = vld [vmem:[%s7 + $0x950] sm:$0xff]
        %v1437 = vld [vmem:[%s7 + $0x958] sm:$0xff]
        %v1438 = vld [vmem:[%s7 + $0x960] sm:$0xff]
        %v1439 = vld [vmem:[%s7 + $0x968] sm:$0xff]
        %v1440 = vld [vmem:[%s7 + $0x970] sm:$0xff]
        %v1441 = vld [vmem:[%s7 + $0x978] sm:$0xff]
        %v1442 = vld [vmem:[%s7 + $0x980] sm:$0xff]
        %v1443 = vld [vmem:[%s7 + $0x988] sm:$0xff]
        %v1444 = vld [vmem:[%s7 + $0x990] sm:$0xff]
        %v1445 = vld [vmem:[%s7 + $0x998] sm:$0xff]
        %v1446 = vld [vmem:[%s7 + $0x9a0] sm:$0xff]
        %v1447 = vld [vmem:[%s7 + $0x9a8] sm:$0xff]
        %v1448 = vld [vmem:[%s7 + $0x9b0] sm:$0xff]
        %v1449 = vld [vmem:[%s7 + $0x9b8] sm:$0xff]
        %v1450 = vld [vmem:[%s7 + $0x9c0] sm:$0xff]
        %v1451 = vld [vmem:[%s7 + $0x9c8] sm:$0xff]
        %v1452 = vld [vmem:[%s7 + $0x9d0] sm:$0xff]
        %v1453 = vld [vmem:[%s7 + $0x9d8] sm:$0xff]
        %v1454 = vld [vmem:[%s7 + $0x9e0] sm:$0xff]
        %v1455 = vld [vmem:[%s7 + $0x9e8] sm:$0xff]
        %v1456 = vld [vmem:[%s7 + $0x9f0] sm:$0xff]
        %v1457 = vld [vmem:[%s7 + $0x9f8] sm:$0xff]
        %v1458 = vld [vmem:[%s7 + $0xa00] sm:$0xff]
        %v1459 = vld [vmem:[%s7 + $0xa08] sm:$0xff]
        %v1460 = vld [vmem:[%s7 + $0xa10] sm:$0xff]
        %v1461 = vld [vmem:[%s7 + $0xa18] sm:$0xff]
        %v1462 = vld [vmem:[%s7 + $0xa20] sm:$0xff]
        %v1463 = vld [vmem:[%s7 + $0xa28] sm:$0xff]
        %v1464 = vld [vmem:[%s7 + $0xa30] sm:$0xff]
        %v1465 = vld [vmem:[%s7 + $0xa38] sm:$0xff]
        %v1466 = vld [vmem:[%s7 + $0xa40] sm:$0xff]
        %v1467 = vld [vmem:[%s7 + $0xa48] sm:$0xff]
        %v1468 = vld [vmem:[%s7 + $0xa50] sm:$0xff]
        %v1469 = vld [vmem:[%s7 + $0xa58] sm:$0xff]
        %v1470 = vld [vmem:[%s7 + $0xa60] sm:$0xff]
        %v1471 = vld [vmem:[%s7 + $0xa68] sm:$0xff]
        %v1472 = vld [vmem:[%s7 + $0xa70] sm:$0xff]
        %v1473 = vld [vmem:[%s7 + $0xa78] sm:$0xff]
        %v1474 = vld [vmem:[%s7 + $0xa80] sm:$0xff]
        %v1475 = vld [vmem:[%s7 + $0xa88] sm:$0xff]
        %v1476 = vld [vmem:[%s7 + $0xa90] sm:$0xff]
        %v1477 = vld [vmem:[%s7 + $0xa98] sm:$0xff]
        %v1478 = vld [vmem:[%s7 + $0xaa0] sm:$0xff]
        %v1479 = vld [vmem:[%s7 + $0xaa8] sm:$0xff]
        %v1480 = vld [vmem:[%s7 + $0xab0] sm:$0xff]
        %v1481 = vld [vmem:[%s7 + $0xab8] sm:$0xff]
        %v1482 = vld [vmem:[%s7 + $0xac0] sm:$0xff]
        %v1483 = vld [vmem:[%s7 + $0xac8] sm:$0xff]
        %v1484 = vld [vmem:[%s7 + $0xad0] sm:$0xff]
        %v1485 = vld [vmem:[%s7 + $0xad8] sm:$0xff]
        %v1486 = vld [vmem:[%s7 + $0xae0] sm:$0xff]
        %v1487 = vld [vmem:[%s7 + $0xae8] sm:$0xff]
        %v1488 = vld [vmem:[%s7 + $0xaf0] sm:$0xff]
        %v1489 = vld [vmem:[%s7 + $0xaf8] sm:$0xff]
        %v1490 = vld [vmem:[%s7 + $0xb00] sm:$0xff]
        %v1491 = vld [vmem:[%s7 + $0xb08] sm:$0xff]
        %v1492 = vld [vmem:[%s7 + $0xb10] sm:$0xff]
        %v1493 = vld [vmem:[%s7 + $0xb18] sm:$0xff]
        %v1494 = vld [vmem:[%s7 + $0xb20] sm:$0xff]
        %v1495 = vld [vmem:[%s7 + $0xb28] sm:$0xff]
        %v1496 = vld [vmem:[%s7 + $0xb30] sm:$0xff]
        %v1497 = vld [vmem:[%s7 + $0xb38] sm:$0xff]
        %v1498 = vld [vmem:[%s7 + $0xb40] sm:$0xff]
        %v1499 = vld [vmem:[%s7 + $0xb48] sm:$0xff]
        %v1500 = vld [vmem:[%s7 + $0xb50] sm:$0xff]
        %v1501 = vld [vmem:[%s7 + $0xb58] sm:$0xff]
        %v1502 = vld [vmem:[%s7 + $0xb60] sm:$0xff]
        %v1503 = vld [vmem:[%s7 + $0xb68] sm:$0xff]
        %v1504 = vld [vmem:[%s7 + $0xb70] sm:$0xff]
        %v1505 = vld [vmem:[%s7 + $0xb78] sm:$0xff]
        %v1506 = vld [vmem:[%s7 + $0xb80] sm:$0xff]
        %v1507 = vld [vmem:[%s7 + $0xb88] sm:$0xff]
        %v1508 = vld [vmem:[%s7 + $0xb90] sm:$0xff]
        %v1509 = vld [vmem:[%s7 + $0xb98] sm:$0xff]
        %v1510 = vld [vmem:[%s7 + $0xba0] sm:$0xff]
        %v1511 = vld [vmem:[%s7 + $0xba8] sm:$0xff]
        %v1512 = vld [vmem:[%s7 + $0xbb0] sm:$0xff]
        %v1513 = vld [vmem:[%s7 + $0xbb8] sm:$0xff]
        %v1514 = vld [vmem:[%s7 + $0xbc0] sm:$0xff]
        %v1515 = vld [vmem:[%s7 + $0xbc8] sm:$0xff]
        %v1516 = vld [vmem:[%s7 + $0xbd0] sm:$0xff]
        %v1517 = vld [vmem:[%s7 + $0xbd8] sm:$0xff]
        %v1518 = vld [vmem:[%s7 + $0xbe0] sm:$0xff]
        %v1519 = vld [vmem:[%s7 + $0xbe8] sm:$0xff]
        %v1520 = vld [vmem:[%s7 + $0xbf0] sm:$0xff]
        %v1521 = vld [vmem:[%s7 + $0xbf8] sm:$0xff]
        %v1522 = vld [vmem:[%s7 + $0xc00] sm:$0xff]
        %v1523 = vld [vmem:[%s7 + $0xc08] sm:$0xff]
        %v1524 = vld [vmem:[%s7 + $0xc10] sm:$0xff]
        %v1525 = vld [vmem:[%s7 + $0xc18] sm:$0xff]
        %v1526 = vld [vmem:[%s7 + $0xc20] sm:$0xff]
        %v1527 = vld [vmem:[%s7 + $0xc28] sm:$0xff]
        %v1528 = vld [vmem:[%s7 + $0xc30] sm:$0xff]
        %v1529 = vld [vmem:[%s7 + $0xc38] sm:$0xff]
        %v1530 = vld [vmem:[%s7 + $0xc40] sm:$0xff]
        %v1531 = vld [vmem:[%s7 + $0xc48] sm:$0xff]
        %v1532 = vld [vmem:[%s7 + $0xc50] sm:$0xff]
        %v1533 = vld [vmem:[%s7 + $0xc58] sm:$0xff]
        %v1534 = vld [vmem:[%s7 + $0xc60] sm:$0xff]
        %v1535 = vld [vmem:[%s7 + $0xc68] sm:$0xff]
        %v1536 = vld [vmem:[%s7 + $0xc70] sm:$0xff]
        %v1537 = vld [vmem:[%s7 + $0xc78] sm:$0xff]
        %v1538 = vld [vmem:[%s7 + $0xc80] sm:$0xff]
        %v1539 = vld [vmem:[%s7 + $0xc88] sm:$0xff]
        %v1540 = vld [vmem:[%s7 + $0xc90] sm:$0xff]
        %v1541 = vld [vmem:[%s7 + $0xc98] sm:$0xff]
        %v1542 = vld [vmem:[%s7 + $0xca0] sm:$0xff]
        %v1543 = vld [vmem:[%s7 + $0xca8] sm:$0xff]
        %v1544 = vld [vmem:[%s7 + $0xcb0] sm:$0xff]
        %v1545 = vld [vmem:[%s7 + $0xcb8] sm:$0xff]
        %v1546 = vld [vmem:[%s7 + $0xcc0] sm:$0xff]
        %v1547 = vld [vmem:[%s7 + $0xcc8] sm:$0xff]
        %v1548 = vld [vmem:[%s7 + $0xcd0] sm:$0xff]
        %v1549 = vld [vmem:[%s7 + $0xcd8] sm:$0xff]
        %v1550 = vld [vmem:[%s7 + $0xce0] sm:$0xff]
        %v1551 = vld [vmem:[%s7 + $0xce8] sm:$0xff]
        %v1552 = vld [vmem:[%s7 + $0xcf0] sm:$0xff]
        %v1553 = vld [vmem:[%s7 + $0xcf8] sm:$0xff]
        %v1554 = vld [vmem:[%s7 + $0xd00] sm:$0xff]
        %v1555 = vld [vmem:[%s7 + $0xd08] sm:$0xff]
        %v1556 = vld [vmem:[%s7 + $0xd10] sm:$0xff]
        %v1557 = vld [vmem:[%s7 + $0xd18] sm:$0xff]
        %v1558 = vld [vmem:[%s7 + $0xd20] sm:$0xff]
        %v1559 = vld [vmem:[%s7 + $0xd28] sm:$0xff]
        %v1560 = vld [vmem:[%s7 + $0xd30] sm:$0xff]
        %v1561 = vld [vmem:[%s7 + $0xd38] sm:$0xff]
        %v1562 = vld [vmem:[%s7 + $0xd40] sm:$0xff]
        %v1563 = vld [vmem:[%s7 + $0xd48] sm:$0xff]
        %v1564 = vld [vmem:[%s7 + $0xd50] sm:$0xff]
        %v1565 = vld [vmem:[%s7 + $0xd58] sm:$0xff]
        %v1566 = vld [vmem:[%s7 + $0xd60] sm:$0xff]
        %v1567 = vld [vmem:[%s7 + $0xd68] sm:$0xff]
        %v1568 = vld [vmem:[%s7 + $0xd70] sm:$0xff]
        %v1569 = vld [vmem:[%s7 + $0xd78] sm:$0xff]
        %v1570 = vld [vmem:[%s7 + $0xd80] sm:$0xff]
        %v1571 = vld [vmem:[%s7 + $0xd88] sm:$0xff]
        %v1572 = vld [vmem:[%s7 + $0xd90] sm:$0xff]
        %v1573 = vld [vmem:[%s7 + $0xd98] sm:$0xff]
        %v1574 = vld [vmem:[%s7 + $0xda0] sm:$0xff]
        %v1575 = vld [vmem:[%s7 + $0xda8] sm:$0xff]
        %v1576 = vld [vmem:[%s7 + $0xdb0] sm:$0xff]
        %v1577 = vld [vmem:[%s7 + $0xdb8] sm:$0xff]
        %v1578 = vld [vmem:[%s7 + $0xdc0] sm:$0xff]
        %v1579 = vld [vmem:[%s7 + $0xdc8] sm:$0xff]
        %v1580 = vld [vmem:[%s7 + $0xdd0] sm:$0xff]
        %v1581 = vld [vmem:[%s7 + $0xdd8] sm:$0xff]
        %v1582 = vld [vmem:[%s7 + $0xde0] sm:$0xff]
        %v1583 = vld [vmem:[%s7 + $0xde8] sm:$0xff]
        %v1584 = vld [vmem:[%s7 + $0xdf0] sm:$0xff]
        %v1585 = vld [vmem:[%s7 + $0xdf8] sm:$0xff]
        %v1586 = vld [vmem:[%s7 + $0xe00] sm:$0xff]
        %v1587 = vld [vmem:[%s7 + $0xe08] sm:$0xff]
        %v1588 = vld [vmem:[%s7 + $0xe10] sm:$0xff]
        %v1589 = vld [vmem:[%s7 + $0xe18] sm:$0xff]
        %v1590 = vld [vmem:[%s7 + $0xe20] sm:$0xff]
        %v1591 = vld [vmem:[%s7 + $0xe28] sm:$0xff]
        %v1592 = vld [vmem:[%s7 + $0xe30] sm:$0xff]
        %v1593 = vld [vmem:[%s7 + $0xe38] sm:$0xff]
        %v1594 = vld [vmem:[%s7 + $0xe40] sm:$0xff]
        %v1595 = vld [vmem:[%s7 + $0xe48] sm:$0xff]
        %v1596 = vld [vmem:[%s7 + $0xe50] sm:$0xff]
        %v1597 = vld [vmem:[%s7 + $0xe58] sm:$0xff]
        %v1598 = vld [vmem:[%s7 + $0xe60] sm:$0xff]
        %v1599 = vld [vmem:[%s7 + $0xe68] sm:$0xff]
        %v1600 = vld [vmem:[%s7 + $0xe70] sm:$0xff]
        %v1601 = vld [vmem:[%s7 + $0xe78] sm:$0xff]
        %v1602 = vld [vmem:[%s7 + $0xe80] sm:$0xff]
        %v1603 = vld [vmem:[%s7 + $0xe88] sm:$0xff]
        %v1604 = vld [vmem:[%s7 + $0xe90] sm:$0xff]
        %v1605 = vld [vmem:[%s7 + $0xe98] sm:$0xff]
        %v1606 = vld [vmem:[%s7 + $0xea0] sm:$0xff]
        %v1607 = vld [vmem:[%s7 + $0xea8] sm:$0xff]
        %v1608 = vld [vmem:[%s7 + $0xeb0] sm:$0xff]
        %v1609 = vld [vmem:[%s7 + $0xeb8] sm:$0xff]
        %v1610 = vld [vmem:[%s7 + $0xec0] sm:$0xff]
        %v1611 = vld [vmem:[%s7 + $0xec8] sm:$0xff]
        %v1612 = vld [vmem:[%s7 + $0xed0] sm:$0xff]
        %v1613 = vld [vmem:[%s7 + $0xed8] sm:$0xff]
        %v1614 = vld [vmem:[%s7 + $0xee0] sm:$0xff]
        %v1615 = vld [vmem:[%s7 + $0xee8] sm:$0xff]
        %v1616 = vld [vmem:[%s7 + $0xef0] sm:$0xff]
        %v1617 = vld [vmem:[%s7 + $0xef8] sm:$0xff]
        %v1618 = vld [vmem:[%s7 + $0xf00] sm:$0xff]
        %v1619 = vld [vmem:[%s7 + $0xf08] sm:$0xff]
        %v1620 = vld [vmem:[%s7 + $0xf10] sm:$0xff]
        %v1621 = vld [vmem:[%s7 + $0xf18] sm:$0xff]
        %v1622 = vld [vmem:[%s7 + $0xf20] sm:$0xff]
        %v1623 = vld [vmem:[%s7 + $0xf28] sm:$0xff]
        %v1624 = vld [vmem:[%s7 + $0xf30] sm:$0xff]
        %v1625 = vld [vmem:[%s7 + $0xf38] sm:$0xff]
        %v1626 = vld [vmem:[%s7 + $0xf40] sm:$0xff]
        %v1627 = vld [vmem:[%s7 + $0xf48] sm:$0xff]
        %v1628 = vld [vmem:[%s7 + $0xf50] sm:$0xff]
        %v1629 = vld [vmem:[%s7 + $0xf58] sm:$0xff]
        %v1630 = vld [vmem:[%s7 + $0xf60] sm:$0xff]
        %v1631 = vld [vmem:[%s7 + $0xf68] sm:$0xff]
        %v1632 = vld [vmem:[%s7 + $0xf70] sm:$0xff]
        %v1633 = vld [vmem:[%s7 + $0xf78] sm:$0xff]
        %v1634 = vld [vmem:[%s7 + $0xf80] sm:$0xff]
        %v1635 = vld [vmem:[%s7 + $0xf88] sm:$0xff]
        %v1636 = vld [vmem:[%s7 + $0xf90] sm:$0xff]
        %v1637 = vld [vmem:[%s7 + $0xf98] sm:$0xff]
        %v1638 = vld [vmem:[%s7 + $0xfa0] sm:$0xff]
        %v1639 = vld [vmem:[%s7 + $0xfa8] sm:$0xff]
        %v1640 = vld [vmem:[%s7 + $0xfb0] sm:$0xff]
        %v1641 = vld [vmem:[%s7 + $0xfb8] sm:$0xff]
        %v1642 = vld [vmem:[%s7 + $0xfc0] sm:$0xff]
        %v1643 = vld [vmem:[%s7 + $0xfc8] sm:$0xff]
        %v1644 = vld [vmem:[%s7 + $0xfd0] sm:$0xff]
        %v1645 = vld [vmem:[%s7 + $0xfd8] sm:$0xff]
        %v1646 = vld [vmem:[%s7 + $0xfe0] sm:$0xff]
        %v1647 = vld [vmem:[%s7 + $0xfe8] sm:$0xff]
        %v1648 = vld [vmem:[%s7 + $0xff0] sm:$0xff]
        %v1649 = vld [vmem:[%s7 + $0xff8] sm:$0xff]
        %v1650 = vld [vmem:[%s7 + $0x1000] sm:$0xff]
        %v1651 = vld [vmem:[%s7 + $0x1008] sm:$0xff]
        %v1652 = vld [vmem:[%s7 + $0x1010] sm:$0xff]
        %v1653 = vld [vmem:[%s7 + $0x1018] sm:$0xff]
        %v1654 = vld [vmem:[%s7 + $0x1020] sm:$0xff]
        %v1655 = vld [vmem:[%s7 + $0x1028] sm:$0xff]
        %v1656 = vld [vmem:[%s7 + $0x1030] sm:$0xff]
        %v1657 = vld [vmem:[%s7 + $0x1038] sm:$0xff]
        %v1658 = vld [vmem:[%s7 + $0x1040] sm:$0xff]
        %v1659 = vld [vmem:[%s7 + $0x1048] sm:$0xff]
        %v1660 = vld [vmem:[%s7 + $0x1050] sm:$0xff]
        %v1661 = vld [vmem:[%s7 + $0x1058] sm:$0xff]
        %v1662 = vld [vmem:[%s7 + $0x1060] sm:$0xff]
        %v1663 = vld [vmem:[%s7 + $0x1068] sm:$0xff]
        %v1664 = vld [vmem:[%s7 + $0x1070] sm:$0xff]
        %v1665 = vld [vmem:[%s7 + $0x1078] sm:$0xff]
        %v1666 = vld [vmem:[%s7 + $0x1080] sm:$0xff]
        %v1667 = vld [vmem:[%s7 + $0x1088] sm:$0xff]
        %v1668 = vld [vmem:[%s7 + $0x1090] sm:$0xff]
        %v1669 = vld [vmem:[%s7 + $0x1098] sm:$0xff]
        %v1670 = vld [vmem:[%s7 + $0x10a0] sm:$0xff]
        %v1671 = vld [vmem:[%s7 + $0x10a8] sm:$0xff]
        %v1672 = vld [vmem:[%s7 + $0x10b0] sm:$0xff]
        %v1673 = vld [vmem:[%s7 + $0x10b8] sm:$0xff]
        %v1674 = vld [vmem:[%s7 + $0x10c0] sm:$0xff]
        %v1675 = vld [vmem:[%s7 + $0x10c8] sm:$0xff]
        %v1676 = vld [vmem:[%s7 + $0x10d0] sm:$0xff]
        %v1677 = vld [vmem:[%s7 + $0x10d8] sm:$0xff]
        %v1678 = vld [vmem:[%s7 + $0x10e0] sm:$0xff]
        %v1679 = vld [vmem:[%s7 + $0x10e8] sm:$0xff]
        %v1680 = vld [vmem:[%s7 + $0x10f0] sm:$0xff]
        %v1681 = vld [vmem:[%s7 + $0x10f8] sm:$0xff]
        %v1682 = vld [vmem:[%s7 + $0x1100] sm:$0xff]
        %v1683 = vld [vmem:[%s7 + $0x1108] sm:$0xff]
        %v1684 = vld [vmem:[%s7 + $0x1110] sm:$0xff]
        %v1685 = vld [vmem:[%s7 + $0x1118] sm:$0xff]
        %v1686 = vld [vmem:[%s7 + $0x1120] sm:$0xff]
        %v1687 = vld [vmem:[%s7 + $0x1128] sm:$0xff]
        %v1688 = vld [vmem:[%s7 + $0x1130] sm:$0xff]
        %v1689 = vld [vmem:[%s7 + $0x1138] sm:$0xff]
        %v1690 = vld [vmem:[%s7 + $0x1140] sm:$0xff]
        %v1691 = vld [vmem:[%s7 + $0x1148] sm:$0xff]
        %v1692 = vld [vmem:[%s7 + $0x1150] sm:$0xff]
        %v1693 = vld [vmem:[%s7 + $0x1158] sm:$0xff]
        %v1694 = vld [vmem:[%s7 + $0x1160] sm:$0xff]
        %v1695 = vld [vmem:[%s7 + $0x1168] sm:$0xff]
        %v1696 = vld [vmem:[%s7 + $0x1170] sm:$0xff]
        %v1697 = vld [vmem:[%s7 + $0x1178] sm:$0xff]
        %v1698 = vld [vmem:[%s7 + $0x1180] sm:$0xff]
        %v1699 = vld [vmem:[%s7 + $0x1188] sm:$0xff]
        %v1700 = vld [vmem:[%s7 + $0x1190] sm:$0xff]
        %v1701 = vld [vmem:[%s7 + $0x1198] sm:$0xff]
        %v1702 = vld [vmem:[%s7 + $0x11a0] sm:$0xff]
        %v1703 = vld [vmem:[%s7 + $0x11a8] sm:$0xff]
        %v1704 = vld [vmem:[%s7 + $0x11b0] sm:$0xff]
        %v1705 = vld [vmem:[%s7 + $0x11b8] sm:$0xff]
        %v1706 = vld [vmem:[%s7 + $0x11c0] sm:$0xff]
        %v1707 = vld [vmem:[%s7 + $0x11c8] sm:$0xff]
        %v1708 = vld [vmem:[%s7 + $0x11d0] sm:$0xff]
        %v1709 = vld [vmem:[%s7 + $0x11d8] sm:$0xff]
        %v1710 = vld [vmem:[%s7 + $0x11e0] sm:$0xff]
        %v1711 = vld [vmem:[%s7 + $0x11e8] sm:$0xff]
        %v1712 = vld [vmem:[%s7 + $0x11f0] sm:$0xff]
        %v1713 = vld [vmem:[%s7 + $0x11f8] sm:$0xff]
        %v1714 = vld [vmem:[%s7 + $0x1200] sm:$0xff]
        %v1715 = vld [vmem:[%s7 + $0x1208] sm:$0xff]
        %v1716 = vld [vmem:[%s7 + $0x1210] sm:$0xff]
        %v1717 = vld [vmem:[%s7 + $0x1218] sm:$0xff]
        %v1718 = vld [vmem:[%s7 + $0x1220] sm:$0xff]
        %v1719 = vld [vmem:[%s7 + $0x1228] sm:$0xff]
        %v1720 = vld [vmem:[%s7 + $0x1230] sm:$0xff]
        %v1721 = vld [vmem:[%s7 + $0x1238] sm:$0xff]
        %v1722 = vld [vmem:[%s7 + $0x1240] sm:$0xff]
        %v1723 = vld [vmem:[%s7 + $0x1248] sm:$0xff]
        %v1724 = vld [vmem:[%s7 + $0x1250] sm:$0xff]
        %v1725 = vld [vmem:[%s7 + $0x1258] sm:$0xff]
        %v1726 = vld [vmem:[%s7 + $0x1260] sm:$0xff]
        %v1727 = vld [vmem:[%s7 + $0x1268] sm:$0xff]
        %v1728 = vld [vmem:[%s7 + $0x1270] sm:$0xff]
        %v1729 = vld [vmem:[%s7 + $0x1278] sm:$0xff]
        %v1730 = vld [vmem:[%s7 + $0x1280] sm:$0xff]
        %v1731 = vld [vmem:[%s7 + $0x1288] sm:$0xff]
        %v1732 = vld [vmem:[%s7 + $0x1290] sm:$0xff]
        %v1733 = vld [vmem:[%s7 + $0x1298] sm:$0xff]
        %v1734 = vld [vmem:[%s7 + $0x12a0] sm:$0xff]
        %v1735 = vld [vmem:[%s7 + $0x12a8] sm:$0xff]
        %v1736 = vld [vmem:[%s7 + $0x12b0] sm:$0xff]
        %v1737 = vld [vmem:[%s7 + $0x12b8] sm:$0xff]
        %v1738 = vld [vmem:[%s7 + $0x12c0] sm:$0xff]
        %v1739 = vld [vmem:[%s7 + $0x12c8] sm:$0xff]
        %v1740 = vld [vmem:[%s7 + $0x12d0] sm:$0xff]
        %v1741 = vld [vmem:[%s7 + $0x12d8] sm:$0xff]
        %v1742 = vld [vmem:[%s7 + $0x12e0] sm:$0xff]
        %v1743 = vld [vmem:[%s7 + $0x12e8] sm:$0xff]
        %v1744 = vld [vmem:[%s7 + $0x12f0] sm:$0xff]
        %v1745 = vld [vmem:[%s7 + $0x12f8] sm:$0xff]
        %v1746 = vld [vmem:[%s7 + $0x1300] sm:$0xff]
        %v1747 = vld [vmem:[%s7 + $0x1308] sm:$0xff]
        %v1748 = vld [vmem:[%s7 + $0x1310] sm:$0xff]
        %v1749 = vld [vmem:[%s7 + $0x1318] sm:$0xff]
        %v1750 = vld [vmem:[%s7 + $0x1320] sm:$0xff]
        %v1751 = vld [vmem:[%s7 + $0x1328] sm:$0xff]
        %v1752 = vld [vmem:[%s7 + $0x1330] sm:$0xff]
        %v1753 = vld [vmem:[%s7 + $0x1338] sm:$0xff]
        %v1754 = vld [vmem:[%s7 + $0x1340] sm:$0xff]
        %v1755 = vld [vmem:[%s7 + $0x1348] sm:$0xff]
        %v1756 = vld [vmem:[%s7 + $0x1350] sm:$0xff]
        %v1757 = vld [vmem:[%s7 + $0x1358] sm:$0xff]
        %v1758 = vld [vmem:[%s7 + $0x1360] sm:$0xff]
        %v1759 = vld [vmem:[%s7 + $0x1368] sm:$0xff]
        %v1760 = vld [vmem:[%s7 + $0x1370] sm:$0xff]
        %v1761 = vld [vmem:[%s7 + $0x1378] sm:$0xff]
        %v1762 = vld [vmem:[%s7 + $0x1380] sm:$0xff]
        %v1763 = vld [vmem:[%s7 + $0x1388] sm:$0xff]
        %v1764 = vld [vmem:[%s7 + $0x1390] sm:$0xff]
        %v1765 = vld [vmem:[%s7 + $0x1398] sm:$0xff]
        %v1766 = vld [vmem:[%s7 + $0x13a0] sm:$0xff]
        %v1767 = vld [vmem:[%s7 + $0x13a8] sm:$0xff]
        %v1768 = vld [vmem:[%s7 + $0x13b0] sm:$0xff]
        %v1769 = vld [vmem:[%s7 + $0x13b8] sm:$0xff]
        %v1770 = vld [vmem:[%s7 + $0x13c0] sm:$0xff]
        %v1771 = vld [vmem:[%s7 + $0x13c8] sm:$0xff]
        %v1772 = vld [vmem:[%s7 + $0x13d0] sm:$0xff]
        %v1773 = vld [vmem:[%s7 + $0x13d8] sm:$0xff]
        %v1774 = vld [vmem:[%s7 + $0x13e0] sm:$0xff]
        %v1775 = vld [vmem:[%s7 + $0x13e8] sm:$0xff]
        %v1776 = vld [vmem:[%s7 + $0x13f0] sm:$0xff]
        %v1777 = vld [vmem:[%s7 + $0x13f8] sm:$0xff]
        %v1778 = vld [vmem:[%s8] sm:$0xff]
        %v1779 = vld [vmem:[%s8 + $0x8] sm:$0x3]
        %v1782 = vperm.slane %v1778, 0
        %v1783 = vperm.slane %v1778, 1
        %v1784 = vperm.slane %v1778, 2
        %v1785 = vperm.slane %v1778, 3
        %v1786 = vperm.slane %v1778, 4
        %v1787 = vperm.slane %v1778, 5
        %v1788 = vperm.slane %v1778, 6
        %v1789 = vperm.slane %v1778, 7
        %v1790 = vperm.slane %v1779, 0
        %v1791 = vperm.slane %v1779, 1
        %1802 = vmatpush.msra.mxu0 %v1288
        %1803 = vmatpush.msra.mxu0 %v1278
        %1804 = vmatpush.msra.mxu0 %v1268
        %1805 = vmatpush.msra.mxu0 %v1258
        %1806 = vmatpush.msra.mxu0 %v1248
        %1807 = vmatpush.msra.mxu0 %v1238
        %1808 = vmatpush.msra.mxu0 %v1228
        %1809 = vmatpush.msra.mxu0 %v1218
        %1810 = vmatpush.msra.mxu0 %v1208
        %1811 = vmatpush.msra.mxu0 %v1198
        %1812 = vmatpush.msra.mxu0 %v1188
        %1813 = vmatpush.msra.mxu0 %v1178
        %1814 = vmatpush.msra.mxu0 %v1168
        %1815 = vmatpush.msra.mxu0 %v1158
        %1816 = vmatpush.msra.mxu0 %v1148
        %1817 = vmatpush.msra.mxu0 %v1138
        %1818 = vmatmul.f32.gmra.mxu0 %v1110
        %v1819 = vpop.f32.mrf.mxu0
        %v1820 = vadd.f32 %v1782, %v1819
        %1821 = vmatmul.f32.gmra.mxu0 %v1114
        %v1822 = vpop.f32.mrf.mxu0
        %v1823 = vadd.f32 %v1782, %v1822
        %1824 = vmatmul.f32.gmra.mxu0 %v1118
        %v1825 = vpop.f32.mrf.mxu0
        %v1826 = vadd.f32 %v1782, %v1825
        %1827 = vmatmul.f32.gmra.mxu0 %v1122
        %v1828 = vpop.f32.mrf.mxu0
        %v1829 = vadd.f32 %v1782, %v1828
        %1830 = vmatmul.f32.gmra.mxu0 %v1126
        %v1831 = vpop.f32.mrf.mxu0
        %v1832 = vadd.f32 %v1782, %v1831
        %1833 = vmatmul.f32.gmra.mxu0 %v1130
        %v1834 = vpop.f32.mrf.mxu0
        %v1835 = vadd.f32 %v1782, %v1834
        %1836 = vmatmul.f32.gmra.mxu0 %v1134
        %v1837 = vpop.f32.mrf.mxu0
        %v1838 = vadd.f32 %v1782, %v1837
        %1839 = vdwg.mxu0
        %1840 = vmatpush.msra.mxu0 %v1448
        %1841 = vmatpush.msra.mxu0 %v1438
        %1842 = vmatpush.msra.mxu0 %v1428
        %1843 = vmatpush.msra.mxu0 %v1418
        %1844 = vmatpush.msra.mxu0 %v1408
        %1845 = vmatpush.msra.mxu0 %v1398
        %1846 = vmatpush.msra.mxu0 %v1388
        %1847 = vmatpush.msra.mxu0 %v1378
        %1848 = vmatpush.msra.mxu0 %v1368
        %1849 = vmatpush.msra.mxu0 %v1358
        %1850 = vmatpush.msra.mxu0 %v1348
        %1851 = vmatpush.msra.mxu0 %v1338
        %1852 = vmatpush.msra.mxu0 %v1328
        %1853 = vmatpush.msra.mxu0 %v1318
        %1854 = vmatpush.msra.mxu0 %v1308
        %1855 = vmatpush.msra.mxu0 %v1298
        %1856 = vmatmul.f32.gmra.mxu0 %v1111
        %v1857 = vpop.f32.mrf.mxu0
        %v1858 = vadd.f32 %v1820, %v1857
        %1859 = vmatmul.f32.gmra.mxu0 %v1115
        %v1860 = vpop.f32.mrf.mxu0
        %v1861 = vadd.f32 %v1823, %v1860
        %1862 = vmatmul.f32.gmra.mxu0 %v1119
        %v1863 = vpop.f32.mrf.mxu0
        %v1864 = vadd.f32 %v1826, %v1863
        %1865 = vmatmul.f32.gmra.mxu0 %v1123
        %v1866 = vpop.f32.mrf.mxu0
        %v1867 = vadd.f32 %v1829, %v1866
        %1868 = vmatmul.f32.gmra.mxu0 %v1127
        %v1869 = vpop.f32.mrf.mxu0
        %v1870 = vadd.f32 %v1832, %v1869
        %1871 = vmatmul.f32.gmra.mxu0 %v1131
        %v1872 = vpop.f32.mrf.mxu0
        %v1873 = vadd.f32 %v1835, %v1872
        %1874 = vmatmul.f32.gmra.mxu0 %v1135
        %v1875 = vpop.f32.mrf.mxu0
        %v1876 = vadd.f32 %v1838, %v1875
        %1877 = vdwg.mxu0
        %1878 = vmatpush.msra.mxu0 %v1608
        %1879 = vmatpush.msra.mxu0 %v1598
        %1880 = vmatpush.msra.mxu0 %v1588
        %1881 = vmatpush.msra.mxu0 %v1578
        %1882 = vmatpush.msra.mxu0 %v1568
        %1883 = vmatpush.msra.mxu0 %v1558
        %1884 = vmatpush.msra.mxu0 %v1548
        %1885 = vmatpush.msra.mxu0 %v1538
        %1886 = vmatpush.msra.mxu0 %v1528
        %1887 = vmatpush.msra.mxu0 %v1518
        %1888 = vmatpush.msra.mxu0 %v1508
        %1889 = vmatpush.msra.mxu0 %v1498
        %1890 = vmatpush.msra.mxu0 %v1488
        %1891 = vmatpush.msra.mxu0 %v1478
        %1892 = vmatpush.msra.mxu0 %v1468
        %1893 = vmatpush.msra.mxu0 %v1458
        %1894 = vmatmul.f32.gmra.mxu0 %v1112
        %v1895 = vpop.f32.mrf.mxu0
        %v1896 = vadd.f32 %v1858, %v1895
        %1897 = vmatmul.f32.gmra.mxu0 %v1116
        %v1898 = vpop.f32.mrf.mxu0
        %v1899 = vadd.f32 %v1861, %v1898
        %1900 = vmatmul.f32.gmra.mxu0 %v1120
        %v1901 = vpop.f32.mrf.mxu0
        %v1902 = vadd.f32 %v1864, %v1901
        %1903 = vmatmul.f32.gmra.mxu0 %v1124
        %v1904 = vpop.f32.mrf.mxu0
        %v1905 = vadd.f32 %v1867, %v1904
        %1906 = vmatmul.f32.gmra.mxu0 %v1128
        %v1907 = vpop.f32.mrf.mxu0
        %v1908 = vadd.f32 %v1870, %v1907
        %1909 = vmatmul.f32.gmra.mxu0 %v1132
        %v1910 = vpop.f32.mrf.mxu0
        %v1911 = vadd.f32 %v1873, %v1910
        %1912 = vmatmul.f32.gmra.mxu0 %v1136
        %v1913 = vpop.f32.mrf.mxu0
        %v1914 = vadd.f32 %v1876, %v1913
        %1915 = vdwg.mxu0
        %1916 = vmatpush.msra.mxu0 %v1768
        %1917 = vmatpush.msra.mxu0 %v1758
        %1918 = vmatpush.msra.mxu0 %v1748
        %1919 = vmatpush.msra.mxu0 %v1738
        %1920 = vmatpush.msra.mxu0 %v1728
        %1921 = vmatpush.msra.mxu0 %v1718
        %1922 = vmatpush.msra.mxu0 %v1708
        %1923 = vmatpush.msra.mxu0 %v1698
        %1924 = vmatpush.msra.mxu0 %v1688
        %1925 = vmatpush.msra.mxu0 %v1678
        %1926 = vmatpush.msra.mxu0 %v1668
        %1927 = vmatpush.msra.mxu0 %v1658
        %1928 = vmatpush.msra.mxu0 %v1648
        %1929 = vmatpush.msra.mxu0 %v1638
        %1930 = vmatpush.msra.mxu0 %v1628
        %1931 = vmatpush.msra.mxu0 %v1618
        %1932 = vmatmul.f32.gmra.mxu0 %v1113
        %v1933 = vpop.f32.mrf.mxu0
        %v1934 = vadd.f32 %v1896, %v1933
        %1935 = vmatmul.f32.gmra.mxu0 %v1117
        %v1936 = vpop.f32.mrf.mxu0
        %v1937 = vadd.f32 %v1899, %v1936
        %1938 = vmatmul.f32.gmra.mxu0 %v1121
        %v1939 = vpop.f32.mrf.mxu0
        %v1940 = vadd.f32 %v1902, %v1939
        %1941 = vmatmul.f32.gmra.mxu0 %v1125
        %v1942 = vpop.f32.mrf.mxu0
        %v1943 = vadd.f32 %v1905, %v1942
        %1944 = vmatmul.f32.gmra.mxu0 %v1129
        %v1945 = vpop.f32.mrf.mxu0
        %v1946 = vadd.f32 %v1908, %v1945
        %1947 = vmatmul.f32.gmra.mxu0 %v1133
        %v1948 = vpop.f32.mrf.mxu0
        %v1949 = vadd.f32 %v1911, %v1948
        %1950 = vmatmul.f32.gmra.mxu0 %v1137
        %v1951 = vpop.f32.mrf.mxu0
        %v1952 = vadd.f32 %v1914, %v1951
        %1953 = vdwg.mxu0
        %1954 = vmatpush.msra.mxu0 %v1289
        %1955 = vmatpush.msra.mxu0 %v1279
        %1956 = vmatpush.msra.mxu0 %v1269
        %1957 = vmatpush.msra.mxu0 %v1259
        %1958 = vmatpush.msra.mxu0 %v1249
        %1959 = vmatpush.msra.mxu0 %v1239
        %1960 = vmatpush.msra.mxu0 %v1229
        %1961 = vmatpush.msra.mxu0 %v1219
        %1962 = vmatpush.msra.mxu0 %v1209
        %1963 = vmatpush.msra.mxu0 %v1199
        %1964 = vmatpush.msra.mxu0 %v1189
        %1965 = vmatpush.msra.mxu0 %v1179
        %1966 = vmatpush.msra.mxu0 %v1169
        %1967 = vmatpush.msra.mxu0 %v1159
        %1968 = vmatpush.msra.mxu0 %v1149
        %1969 = vmatpush.msra.mxu0 %v1139
        %1970 = vmatmul.f32.gmra.mxu0 %v1110
        %v1971 = vpop.f32.mrf.mxu0
        %v1972 = vadd.f32 %v1783, %v1971
        %1973 = vmatmul.f32.gmra.mxu0 %v1114
        %v1974 = vpop.f32.mrf.mxu0
        %v1975 = vadd.f32 %v1783, %v1974
        %1976 = vmatmul.f32.gmra.mxu0 %v1118
        %v1977 = vpop.f32.mrf.mxu0
        %v1978 = vadd.f32 %v1783, %v1977
        %1979 = vmatmul.f32.gmra.mxu0 %v1122
        %v1980 = vpop.f32.mrf.mxu0
        %v1981 = vadd.f32 %v1783, %v1980
        %1982 = vmatmul.f32.gmra.mxu0 %v1126
        %v1983 = vpop.f32.mrf.mxu0
        %v1984 = vadd.f32 %v1783, %v1983
        %1985 = vmatmul.f32.gmra.mxu0 %v1130
        %v1986 = vpop.f32.mrf.mxu0
        %v1987 = vadd.f32 %v1783, %v1986
        %1988 = vmatmul.f32.gmra.mxu0 %v1134
        %v1989 = vpop.f32.mrf.mxu0
        %v1990 = vadd.f32 %v1783, %v1989
        %1991 = vdwg.mxu0
        %1992 = vmatpush.msra.mxu0 %v1449
        %1993 = vmatpush.msra.mxu0 %v1439
        %1994 = vmatpush.msra.mxu0 %v1429
        %1995 = vmatpush.msra.mxu0 %v1419
        %1996 = vmatpush.msra.mxu0 %v1409
        %1997 = vmatpush.msra.mxu0 %v1399
        %1998 = vmatpush.msra.mxu0 %v1389
        %1999 = vmatpush.msra.mxu0 %v1379
        %2000 = vmatpush.msra.mxu0 %v1369
        %2001 = vmatpush.msra.mxu0 %v1359
        %2002 = vmatpush.msra.mxu0 %v1349
        %2003 = vmatpush.msra.mxu0 %v1339
        %2004 = vmatpush.msra.mxu0 %v1329
        %2005 = vmatpush.msra.mxu0 %v1319
        %2006 = vmatpush.msra.mxu0 %v1309
        %2007 = vmatpush.msra.mxu0 %v1299
        %2008 = vmatmul.f32.gmra.mxu0 %v1111
        %v2009 = vpop.f32.mrf.mxu0
        %v2010 = vadd.f32 %v1972, %v2009
        %2011 = vmatmul.f32.gmra.mxu0 %v1115
        %v2012 = vpop.f32.mrf.mxu0
        %v2013 = vadd.f32 %v1975, %v2012
        %2014 = vmatmul.f32.gmra.mxu0 %v1119
        %v2015 = vpop.f32.mrf.mxu0
        %v2016 = vadd.f32 %v1978, %v2015
        %2017 = vmatmul.f32.gmra.mxu0 %v1123
        %v2018 = vpop.f32.mrf.mxu0
        %v2019 = vadd.f32 %v1981, %v2018
        %2020 = vmatmul.f32.gmra.mxu0 %v1127
        %v2021 = vpop.f32.mrf.mxu0
        %v2022 = vadd.f32 %v1984, %v2021
        %2023 = vmatmul.f32.gmra.mxu0 %v1131
        %v2024 = vpop.f32.mrf.mxu0
        %v2025 = vadd.f32 %v1987, %v2024
        %2026 = vmatmul.f32.gmra.mxu0 %v1135
        %v2027 = vpop.f32.mrf.mxu0
        %v2028 = vadd.f32 %v1990, %v2027
        %2029 = vdwg.mxu0
        %2030 = vmatpush.msra.mxu0 %v1609
        %2031 = vmatpush.msra.mxu0 %v1599
        %2032 = vmatpush.msra.mxu0 %v1589
        %2033 = vmatpush.msra.mxu0 %v1579
        %2034 = vmatpush.msra.mxu0 %v1569
        %2035 = vmatpush.msra.mxu0 %v1559
        %2036 = vmatpush.msra.mxu0 %v1549
        %2037 = vmatpush.msra.mxu0 %v1539
        %2038 = vmatpush.msra.mxu0 %v1529
        %2039 = vmatpush.msra.mxu0 %v1519
        %2040 = vmatpush.msra.mxu0 %v1509
        %2041 = vmatpush.msra.mxu0 %v1499
        %2042 = vmatpush.msra.mxu0 %v1489
        %2043 = vmatpush.msra.mxu0 %v1479
        %2044 = vmatpush.msra.mxu0 %v1469
        %2045 = vmatpush.msra.mxu0 %v1459
        %2046 = vmatmul.f32.gmra.mxu0 %v1112
        %v2047 = vpop.f32.mrf.mxu0
        %v2048 = vadd.f32 %v2010, %v2047
        %2049 = vmatmul.f32.gmra.mxu0 %v1116
        %v2050 = vpop.f32.mrf.mxu0
        %v2051 = vadd.f32 %v2013, %v2050
        %2052 = vmatmul.f32.gmra.mxu0 %v1120
        %v2053 = vpop.f32.mrf.mxu0
        %v2054 = vadd.f32 %v2016, %v2053
        %2055 = vmatmul.f32.gmra.mxu0 %v1124
        %v2056 = vpop.f32.mrf.mxu0
        %v2057 = vadd.f32 %v2019, %v2056
        %2058 = vmatmul.f32.gmra.mxu0 %v1128
        %v2059 = vpop.f32.mrf.mxu0
        %v2060 = vadd.f32 %v2022, %v2059
        %2061 = vmatmul.f32.gmra.mxu0 %v1132
        %v2062 = vpop.f32.mrf.mxu0
        %v2063 = vadd.f32 %v2025, %v2062
        %2064 = vmatmul.f32.gmra.mxu0 %v1136
        %v2065 = vpop.f32.mrf.mxu0
        %v2066 = vadd.f32 %v2028, %v2065
        %2067 = vdwg.mxu0
        %2068 = vmatpush.msra.mxu0 %v1769
        %2069 = vmatpush.msra.mxu0 %v1759
        %2070 = vmatpush.msra.mxu0 %v1749
        %2071 = vmatpush.msra.mxu0 %v1739
        %2072 = vmatpush.msra.mxu0 %v1729
        %2073 = vmatpush.msra.mxu0 %v1719
        %2074 = vmatpush.msra.mxu0 %v1709
        %2075 = vmatpush.msra.mxu0 %v1699
        %2076 = vmatpush.msra.mxu0 %v1689
        %2077 = vmatpush.msra.mxu0 %v1679
        %2078 = vmatpush.msra.mxu0 %v1669
        %2079 = vmatpush.msra.mxu0 %v1659
        %2080 = vmatpush.msra.mxu0 %v1649
        %2081 = vmatpush.msra.mxu0 %v1639
        %2082 = vmatpush.msra.mxu0 %v1629
        %2083 = vmatpush.msra.mxu0 %v1619
        %2084 = vmatmul.f32.gmra.mxu0 %v1113
        %v2085 = vpop.f32.mrf.mxu0
        %v2086 = vadd.f32 %v2048, %v2085
        %2087 = vmatmul.f32.gmra.mxu0 %v1117
        %v2088 = vpop.f32.mrf.mxu0
        %v2089 = vadd.f32 %v2051, %v2088
        %2090 = vmatmul.f32.gmra.mxu0 %v1121
        %v2091 = vpop.f32.mrf.mxu0
        %v2092 = vadd.f32 %v2054, %v2091
        %2093 = vmatmul.f32.gmra.mxu0 %v1125
        %v2094 = vpop.f32.mrf.mxu0
        %v2095 = vadd.f32 %v2057, %v2094
        %2096 = vmatmul.f32.gmra.mxu0 %v1129
        %v2097 = vpop.f32.mrf.mxu0
        %v2098 = vadd.f32 %v2060, %v2097
        %2099 = vmatmul.f32.gmra.mxu0 %v1133
        %v2100 = vpop.f32.mrf.mxu0
        %v2101 = vadd.f32 %v2063, %v2100
        %2102 = vmatmul.f32.gmra.mxu0 %v1137
        %v2103 = vpop.f32.mrf.mxu0
        %v2104 = vadd.f32 %v2066, %v2103
        %2105 = vdwg.mxu0
        %2106 = vmatpush.msra.mxu0 %v1290
        %2107 = vmatpush.msra.mxu0 %v1280
        %2108 = vmatpush.msra.mxu0 %v1270
        %2109 = vmatpush.msra.mxu0 %v1260
        %2110 = vmatpush.msra.mxu0 %v1250
        %2111 = vmatpush.msra.mxu0 %v1240
        %2112 = vmatpush.msra.mxu0 %v1230
        %2113 = vmatpush.msra.mxu0 %v1220
        %2114 = vmatpush.msra.mxu0 %v1210
        %2115 = vmatpush.msra.mxu0 %v1200
        %2116 = vmatpush.msra.mxu0 %v1190
        %2117 = vmatpush.msra.mxu0 %v1180
        %2118 = vmatpush.msra.mxu0 %v1170
        %2119 = vmatpush.msra.mxu0 %v1160
        %2120 = vmatpush.msra.mxu0 %v1150
        %2121 = vmatpush.msra.mxu0 %v1140
        %2122 = vmatmul.f32.gmra.mxu0 %v1110
        %v2123 = vpop.f32.mrf.mxu0
        %v2124 = vadd.f32 %v1784, %v2123
        %2125 = vmatmul.f32.gmra.mxu0 %v1114
        %v2126 = vpop.f32.mrf.mxu0
        %v2127 = vadd.f32 %v1784, %v2126
        %2128 = vmatmul.f32.gmra.mxu0 %v1118
        %v2129 = vpop.f32.mrf.mxu0
        %v2130 = vadd.f32 %v1784, %v2129
        %2131 = vmatmul.f32.gmra.mxu0 %v1122
        %v2132 = vpop.f32.mrf.mxu0
        %v2133 = vadd.f32 %v1784, %v2132
        %2134 = vmatmul.f32.gmra.mxu0 %v1126
        %v2135 = vpop.f32.mrf.mxu0
        %v2136 = vadd.f32 %v1784, %v2135
        %2137 = vmatmul.f32.gmra.mxu0 %v1130
        %v2138 = vpop.f32.mrf.mxu0
        %v2139 = vadd.f32 %v1784, %v2138
        %2140 = vmatmul.f32.gmra.mxu0 %v1134
        %v2141 = vpop.f32.mrf.mxu0
        %v2142 = vadd.f32 %v1784, %v2141
        %2143 = vdwg.mxu0
        %2144 = vmatpush.msra.mxu0 %v1450
        %2145 = vmatpush.msra.mxu0 %v1440
        %2146 = vmatpush.msra.mxu0 %v1430
        %2147 = vmatpush.msra.mxu0 %v1420
        %2148 = vmatpush.msra.mxu0 %v1410
        %2149 = vmatpush.msra.mxu0 %v1400
        %2150 = vmatpush.msra.mxu0 %v1390
        %2151 = vmatpush.msra.mxu0 %v1380
        %2152 = vmatpush.msra.mxu0 %v1370
        %2153 = vmatpush.msra.mxu0 %v1360
        %2154 = vmatpush.msra.mxu0 %v1350
        %2155 = vmatpush.msra.mxu0 %v1340
        %2156 = vmatpush.msra.mxu0 %v1330
        %2157 = vmatpush.msra.mxu0 %v1320
        %2158 = vmatpush.msra.mxu0 %v1310
        %2159 = vmatpush.msra.mxu0 %v1300
        %2160 = vmatmul.f32.gmra.mxu0 %v1111
        %v2161 = vpop.f32.mrf.mxu0
        %v2162 = vadd.f32 %v2124, %v2161
        %2163 = vmatmul.f32.gmra.mxu0 %v1115
        %v2164 = vpop.f32.mrf.mxu0
        %v2165 = vadd.f32 %v2127, %v2164
        %2166 = vmatmul.f32.gmra.mxu0 %v1119
        %v2167 = vpop.f32.mrf.mxu0
        %v2168 = vadd.f32 %v2130, %v2167
        %2169 = vmatmul.f32.gmra.mxu0 %v1123
        %v2170 = vpop.f32.mrf.mxu0
        %v2171 = vadd.f32 %v2133, %v2170
        %2172 = vmatmul.f32.gmra.mxu0 %v1127
        %v2173 = vpop.f32.mrf.mxu0
        %v2174 = vadd.f32 %v2136, %v2173
        %2175 = vmatmul.f32.gmra.mxu0 %v1131
        %v2176 = vpop.f32.mrf.mxu0
        %v2177 = vadd.f32 %v2139, %v2176
        %2178 = vmatmul.f32.gmra.mxu0 %v1135
        %v2179 = vpop.f32.mrf.mxu0
        %v2180 = vadd.f32 %v2142, %v2179
        %2181 = vdwg.mxu0
        %2182 = vmatpush.msra.mxu0 %v1610
        %2183 = vmatpush.msra.mxu0 %v1600
        %2184 = vmatpush.msra.mxu0 %v1590
        %2185 = vmatpush.msra.mxu0 %v1580
        %2186 = vmatpush.msra.mxu0 %v1570
        %2187 = vmatpush.msra.mxu0 %v1560
        %2188 = vmatpush.msra.mxu0 %v1550
        %2189 = vmatpush.msra.mxu0 %v1540
        %2190 = vmatpush.msra.mxu0 %v1530
        %2191 = vmatpush.msra.mxu0 %v1520
        %2192 = vmatpush.msra.mxu0 %v1510
        %2193 = vmatpush.msra.mxu0 %v1500
        %2194 = vmatpush.msra.mxu0 %v1490
        %2195 = vmatpush.msra.mxu0 %v1480
        %2196 = vmatpush.msra.mxu0 %v1470
        %2197 = vmatpush.msra.mxu0 %v1460
        %2198 = vmatmul.f32.gmra.mxu0 %v1112
        %v2199 = vpop.f32.mrf.mxu0
        %v2200 = vadd.f32 %v2162, %v2199
        %2201 = vmatmul.f32.gmra.mxu0 %v1116
        %v2202 = vpop.f32.mrf.mxu0
        %v2203 = vadd.f32 %v2165, %v2202
        %2204 = vmatmul.f32.gmra.mxu0 %v1120
        %v2205 = vpop.f32.mrf.mxu0
        %v2206 = vadd.f32 %v2168, %v2205
        %2207 = vmatmul.f32.gmra.mxu0 %v1124
        %v2208 = vpop.f32.mrf.mxu0
        %v2209 = vadd.f32 %v2171, %v2208
        %2210 = vmatmul.f32.gmra.mxu0 %v1128
        %v2211 = vpop.f32.mrf.mxu0
        %v2212 = vadd.f32 %v2174, %v2211
        %2213 = vmatmul.f32.gmra.mxu0 %v1132
        %v2214 = vpop.f32.mrf.mxu0
        %v2215 = vadd.f32 %v2177, %v2214
        %2216 = vmatmul.f32.gmra.mxu0 %v1136
        %v2217 = vpop.f32.mrf.mxu0
        %v2218 = vadd.f32 %v2180, %v2217
        %2219 = vdwg.mxu0
        %2220 = vmatpush.msra.mxu0 %v1770
        %2221 = vmatpush.msra.mxu0 %v1760
        %2222 = vmatpush.msra.mxu0 %v1750
        %2223 = vmatpush.msra.mxu0 %v1740
        %2224 = vmatpush.msra.mxu0 %v1730
        %2225 = vmatpush.msra.mxu0 %v1720
        %2226 = vmatpush.msra.mxu0 %v1710
        %2227 = vmatpush.msra.mxu0 %v1700
        %2228 = vmatpush.msra.mxu0 %v1690
        %2229 = vmatpush.msra.mxu0 %v1680
        %2230 = vmatpush.msra.mxu0 %v1670
        %2231 = vmatpush.msra.mxu0 %v1660
        %2232 = vmatpush.msra.mxu0 %v1650
        %2233 = vmatpush.msra.mxu0 %v1640
        %2234 = vmatpush.msra.mxu0 %v1630
        %2235 = vmatpush.msra.mxu0 %v1620
        %2236 = vmatmul.f32.gmra.mxu0 %v1113
        %v2237 = vpop.f32.mrf.mxu0
        %v2238 = vadd.f32 %v2200, %v2237
        %2239 = vmatmul.f32.gmra.mxu0 %v1117
        %v2240 = vpop.f32.mrf.mxu0
        %v2241 = vadd.f32 %v2203, %v2240
        %2242 = vmatmul.f32.gmra.mxu0 %v1121
        %v2243 = vpop.f32.mrf.mxu0
        %v2244 = vadd.f32 %v2206, %v2243
        %2245 = vmatmul.f32.gmra.mxu0 %v1125
        %v2246 = vpop.f32.mrf.mxu0
        %v2247 = vadd.f32 %v2209, %v2246
        %2248 = vmatmul.f32.gmra.mxu0 %v1129
        %v2249 = vpop.f32.mrf.mxu0
        %v2250 = vadd.f32 %v2212, %v2249
        %2251 = vmatmul.f32.gmra.mxu0 %v1133
        %v2252 = vpop.f32.mrf.mxu0
        %v2253 = vadd.f32 %v2215, %v2252
        %2254 = vmatmul.f32.gmra.mxu0 %v1137
        %v2255 = vpop.f32.mrf.mxu0
        %v2256 = vadd.f32 %v2218, %v2255
        %2257 = vdwg.mxu0
        %2258 = vmatpush.msra.mxu0 %v1291
        %2259 = vmatpush.msra.mxu0 %v1281
        %2260 = vmatpush.msra.mxu0 %v1271
        %2261 = vmatpush.msra.mxu0 %v1261
        %2262 = vmatpush.msra.mxu0 %v1251
        %2263 = vmatpush.msra.mxu0 %v1241
        %2264 = vmatpush.msra.mxu0 %v1231
        %2265 = vmatpush.msra.mxu0 %v1221
        %2266 = vmatpush.msra.mxu0 %v1211
        %2267 = vmatpush.msra.mxu0 %v1201
        %2268 = vmatpush.msra.mxu0 %v1191
        %2269 = vmatpush.msra.mxu0 %v1181
        %2270 = vmatpush.msra.mxu0 %v1171
        %2271 = vmatpush.msra.mxu0 %v1161
        %2272 = vmatpush.msra.mxu0 %v1151
        %2273 = vmatpush.msra.mxu0 %v1141
        %2274 = vmatmul.f32.gmra.mxu0 %v1110
        %v2275 = vpop.f32.mrf.mxu0
        %v2276 = vadd.f32 %v1785, %v2275
        %2277 = vmatmul.f32.gmra.mxu0 %v1114
        %v2278 = vpop.f32.mrf.mxu0
        %v2279 = vadd.f32 %v1785, %v2278
        %2280 = vmatmul.f32.gmra.mxu0 %v1118
        %v2281 = vpop.f32.mrf.mxu0
        %v2282 = vadd.f32 %v1785, %v2281
        %2283 = vmatmul.f32.gmra.mxu0 %v1122
        %v2284 = vpop.f32.mrf.mxu0
        %v2285 = vadd.f32 %v1785, %v2284
        %2286 = vmatmul.f32.gmra.mxu0 %v1126
        %v2287 = vpop.f32.mrf.mxu0
        %v2288 = vadd.f32 %v1785, %v2287
        %2289 = vmatmul.f32.gmra.mxu0 %v1130
        %v2290 = vpop.f32.mrf.mxu0
        %v2291 = vadd.f32 %v1785, %v2290
        %2292 = vmatmul.f32.gmra.mxu0 %v1134
        %v2293 = vpop.f32.mrf.mxu0
        %v2294 = vadd.f32 %v1785, %v2293
        %2295 = vdwg.mxu0
        %2296 = vmatpush.msra.mxu0 %v1451
        %2297 = vmatpush.msra.mxu0 %v1441
        %2298 = vmatpush.msra.mxu0 %v1431
        %2299 = vmatpush.msra.mxu0 %v1421
        %2300 = vmatpush.msra.mxu0 %v1411
        %2301 = vmatpush.msra.mxu0 %v1401
        %2302 = vmatpush.msra.mxu0 %v1391
        %2303 = vmatpush.msra.mxu0 %v1381
        %2304 = vmatpush.msra.mxu0 %v1371
        %2305 = vmatpush.msra.mxu0 %v1361
        %2306 = vmatpush.msra.mxu0 %v1351
        %2307 = vmatpush.msra.mxu0 %v1341
        %2308 = vmatpush.msra.mxu0 %v1331
        %2309 = vmatpush.msra.mxu0 %v1321
        %2310 = vmatpush.msra.mxu0 %v1311
        %2311 = vmatpush.msra.mxu0 %v1301
        %2312 = vmatmul.f32.gmra.mxu0 %v1111
        %v2313 = vpop.f32.mrf.mxu0
        %v2314 = vadd.f32 %v2276, %v2313
        %2315 = vmatmul.f32.gmra.mxu0 %v1115
        %v2316 = vpop.f32.mrf.mxu0
        %v2317 = vadd.f32 %v2279, %v2316
        %2318 = vmatmul.f32.gmra.mxu0 %v1119
        %v2319 = vpop.f32.mrf.mxu0
        %v2320 = vadd.f32 %v2282, %v2319
        %2321 = vmatmul.f32.gmra.mxu0 %v1123
        %v2322 = vpop.f32.mrf.mxu0
        %v2323 = vadd.f32 %v2285, %v2322
        %2324 = vmatmul.f32.gmra.mxu0 %v1127
        %v2325 = vpop.f32.mrf.mxu0
        %v2326 = vadd.f32 %v2288, %v2325
        %2327 = vmatmul.f32.gmra.mxu0 %v1131
        %v2328 = vpop.f32.mrf.mxu0
        %v2329 = vadd.f32 %v2291, %v2328
        %2330 = vmatmul.f32.gmra.mxu0 %v1135
        %v2331 = vpop.f32.mrf.mxu0
        %v2332 = vadd.f32 %v2294, %v2331
        %2333 = vdwg.mxu0
        %2334 = vmatpush.msra.mxu0 %v1611
        %2335 = vmatpush.msra.mxu0 %v1601
        %2336 = vmatpush.msra.mxu0 %v1591
        %2337 = vmatpush.msra.mxu0 %v1581
        %2338 = vmatpush.msra.mxu0 %v1571
        %2339 = vmatpush.msra.mxu0 %v1561
        %2340 = vmatpush.msra.mxu0 %v1551
        %2341 = vmatpush.msra.mxu0 %v1541
        %2342 = vmatpush.msra.mxu0 %v1531
        %2343 = vmatpush.msra.mxu0 %v1521
        %2344 = vmatpush.msra.mxu0 %v1511
        %2345 = vmatpush.msra.mxu0 %v1501
        %2346 = vmatpush.msra.mxu0 %v1491
        %2347 = vmatpush.msra.mxu0 %v1481
        %2348 = vmatpush.msra.mxu0 %v1471
        %2349 = vmatpush.msra.mxu0 %v1461
        %2350 = vmatmul.f32.gmra.mxu0 %v1112
        %v2351 = vpop.f32.mrf.mxu0
        %v2352 = vadd.f32 %v2314, %v2351
        %2353 = vmatmul.f32.gmra.mxu0 %v1116
        %v2354 = vpop.f32.mrf.mxu0
        %v2355 = vadd.f32 %v2317, %v2354
        %2356 = vmatmul.f32.gmra.mxu0 %v1120
        %v2357 = vpop.f32.mrf.mxu0
        %v2358 = vadd.f32 %v2320, %v2357
        %2359 = vmatmul.f32.gmra.mxu0 %v1124
        %v2360 = vpop.f32.mrf.mxu0
        %v2361 = vadd.f32 %v2323, %v2360
        %2362 = vmatmul.f32.gmra.mxu0 %v1128
        %v2363 = vpop.f32.mrf.mxu0
        %v2364 = vadd.f32 %v2326, %v2363
        %2365 = vmatmul.f32.gmra.mxu0 %v1132
        %v2366 = vpop.f32.mrf.mxu0
        %v2367 = vadd.f32 %v2329, %v2366
        %2368 = vmatmul.f32.gmra.mxu0 %v1136
        %v2369 = vpop.f32.mrf.mxu0
        %v2370 = vadd.f32 %v2332, %v2369
        %2371 = vdwg.mxu0
        %2372 = vmatpush.msra.mxu0 %v1771
        %2373 = vmatpush.msra.mxu0 %v1761
        %2374 = vmatpush.msra.mxu0 %v1751
        %2375 = vmatpush.msra.mxu0 %v1741
        %2376 = vmatpush.msra.mxu0 %v1731
        %2377 = vmatpush.msra.mxu0 %v1721
        %2378 = vmatpush.msra.mxu0 %v1711
        %2379 = vmatpush.msra.mxu0 %v1701
        %2380 = vmatpush.msra.mxu0 %v1691
        %2381 = vmatpush.msra.mxu0 %v1681
        %2382 = vmatpush.msra.mxu0 %v1671
        %2383 = vmatpush.msra.mxu0 %v1661
        %2384 = vmatpush.msra.mxu0 %v1651
        %2385 = vmatpush.msra.mxu0 %v1641
        %2386 = vmatpush.msra.mxu0 %v1631
        %2387 = vmatpush.msra.mxu0 %v1621
        %2388 = vmatmul.f32.gmra.mxu0 %v1113
        %v2389 = vpop.f32.mrf.mxu0
        %v2390 = vadd.f32 %v2352, %v2389
        %2391 = vmatmul.f32.gmra.mxu0 %v1117
        %v2392 = vpop.f32.mrf.mxu0
        %v2393 = vadd.f32 %v2355, %v2392
        %2394 = vmatmul.f32.gmra.mxu0 %v1121
        %v2395 = vpop.f32.mrf.mxu0
        %v2396 = vadd.f32 %v2358, %v2395
        %2397 = vmatmul.f32.gmra.mxu0 %v1125
        %v2398 = vpop.f32.mrf.mxu0
        %v2399 = vadd.f32 %v2361, %v2398
        %2400 = vmatmul.f32.gmra.mxu0 %v1129
        %v2401 = vpop.f32.mrf.mxu0
        %v2402 = vadd.f32 %v2364, %v2401
        %2403 = vmatmul.f32.gmra.mxu0 %v1133
        %v2404 = vpop.f32.mrf.mxu0
        %v2405 = vadd.f32 %v2367, %v2404
        %2406 = vmatmul.f32.gmra.mxu0 %v1137
        %v2407 = vpop.f32.mrf.mxu0
        %v2408 = vadd.f32 %v2370, %v2407
        %2409 = vdwg.mxu0
        %2410 = vmatpush.msra.mxu0 %v1292
        %2411 = vmatpush.msra.mxu0 %v1282
        %2412 = vmatpush.msra.mxu0 %v1272
        %2413 = vmatpush.msra.mxu0 %v1262
        %2414 = vmatpush.msra.mxu0 %v1252
        %2415 = vmatpush.msra.mxu0 %v1242
        %2416 = vmatpush.msra.mxu0 %v1232
        %2417 = vmatpush.msra.mxu0 %v1222
        %2418 = vmatpush.msra.mxu0 %v1212
        %2419 = vmatpush.msra.mxu0 %v1202
        %2420 = vmatpush.msra.mxu0 %v1192
        %2421 = vmatpush.msra.mxu0 %v1182
        %2422 = vmatpush.msra.mxu0 %v1172
        %2423 = vmatpush.msra.mxu0 %v1162
        %2424 = vmatpush.msra.mxu0 %v1152
        %2425 = vmatpush.msra.mxu0 %v1142
        %2426 = vmatmul.f32.gmra.mxu0 %v1110
        %v2427 = vpop.f32.mrf.mxu0
        %v2428 = vadd.f32 %v1786, %v2427
        %2429 = vmatmul.f32.gmra.mxu0 %v1114
        %v2430 = vpop.f32.mrf.mxu0
        %v2431 = vadd.f32 %v1786, %v2430
        %2432 = vmatmul.f32.gmra.mxu0 %v1118
        %v2433 = vpop.f32.mrf.mxu0
        %v2434 = vadd.f32 %v1786, %v2433
        %2435 = vmatmul.f32.gmra.mxu0 %v1122
        %v2436 = vpop.f32.mrf.mxu0
        %v2437 = vadd.f32 %v1786, %v2436
        %2438 = vmatmul.f32.gmra.mxu0 %v1126
        %v2439 = vpop.f32.mrf.mxu0
        %v2440 = vadd.f32 %v1786, %v2439
        %2441 = vmatmul.f32.gmra.mxu0 %v1130
        %v2442 = vpop.f32.mrf.mxu0
        %v2443 = vadd.f32 %v1786, %v2442
        %2444 = vmatmul.f32.gmra.mxu0 %v1134
        %v2445 = vpop.f32.mrf.mxu0
        %v2446 = vadd.f32 %v1786, %v2445
        %2447 = vdwg.mxu0
        %2448 = vmatpush.msra.mxu0 %v1452
        %2449 = vmatpush.msra.mxu0 %v1442
        %2450 = vmatpush.msra.mxu0 %v1432
        %2451 = vmatpush.msra.mxu0 %v1422
        %2452 = vmatpush.msra.mxu0 %v1412
        %2453 = vmatpush.msra.mxu0 %v1402
        %2454 = vmatpush.msra.mxu0 %v1392
        %2455 = vmatpush.msra.mxu0 %v1382
        %2456 = vmatpush.msra.mxu0 %v1372
        %2457 = vmatpush.msra.mxu0 %v1362
        %2458 = vmatpush.msra.mxu0 %v1352
        %2459 = vmatpush.msra.mxu0 %v1342
        %2460 = vmatpush.msra.mxu0 %v1332
        %2461 = vmatpush.msra.mxu0 %v1322
        %2462 = vmatpush.msra.mxu0 %v1312
        %2463 = vmatpush.msra.mxu0 %v1302
        %2464 = vmatmul.f32.gmra.mxu0 %v1111
        %v2465 = vpop.f32.mrf.mxu0
        %v2466 = vadd.f32 %v2428, %v2465
        %2467 = vmatmul.f32.gmra.mxu0 %v1115
        %v2468 = vpop.f32.mrf.mxu0
        %v2469 = vadd.f32 %v2431, %v2468
        %2470 = vmatmul.f32.gmra.mxu0 %v1119
        %v2471 = vpop.f32.mrf.mxu0
        %v2472 = vadd.f32 %v2434, %v2471
        %2473 = vmatmul.f32.gmra.mxu0 %v1123
        %v2474 = vpop.f32.mrf.mxu0
        %v2475 = vadd.f32 %v2437, %v2474
        %2476 = vmatmul.f32.gmra.mxu0 %v1127
        %v2477 = vpop.f32.mrf.mxu0
        %v2478 = vadd.f32 %v2440, %v2477
        %2479 = vmatmul.f32.gmra.mxu0 %v1131
        %v2480 = vpop.f32.mrf.mxu0
        %v2481 = vadd.f32 %v2443, %v2480
        %2482 = vmatmul.f32.gmra.mxu0 %v1135
        %v2483 = vpop.f32.mrf.mxu0
        %v2484 = vadd.f32 %v2446, %v2483
        %2485 = vdwg.mxu0
        %2486 = vmatpush.msra.mxu0 %v1612
        %2487 = vmatpush.msra.mxu0 %v1602
        %2488 = vmatpush.msra.mxu0 %v1592
        %2489 = vmatpush.msra.mxu0 %v1582
        %2490 = vmatpush.msra.mxu0 %v1572
        %2491 = vmatpush.msra.mxu0 %v1562
        %2492 = vmatpush.msra.mxu0 %v1552
        %2493 = vmatpush.msra.mxu0 %v1542
        %2494 = vmatpush.msra.mxu0 %v1532
        %2495 = vmatpush.msra.mxu0 %v1522
        %2496 = vmatpush.msra.mxu0 %v1512
        %2497 = vmatpush.msra.mxu0 %v1502
        %2498 = vmatpush.msra.mxu0 %v1492
        %2499 = vmatpush.msra.mxu0 %v1482
        %2500 = vmatpush.msra.mxu0 %v1472
        %2501 = vmatpush.msra.mxu0 %v1462
        %2502 = vmatmul.f32.gmra.mxu0 %v1112
        %v2503 = vpop.f32.mrf.mxu0
        %v2504 = vadd.f32 %v2466, %v2503
        %2505 = vmatmul.f32.gmra.mxu0 %v1116
        %v2506 = vpop.f32.mrf.mxu0
        %v2507 = vadd.f32 %v2469, %v2506
        %2508 = vmatmul.f32.gmra.mxu0 %v1120
        %v2509 = vpop.f32.mrf.mxu0
        %v2510 = vadd.f32 %v2472, %v2509
        %2511 = vmatmul.f32.gmra.mxu0 %v1124
        %v2512 = vpop.f32.mrf.mxu0
        %v2513 = vadd.f32 %v2475, %v2512
        %2514 = vmatmul.f32.gmra.mxu0 %v1128
        %v2515 = vpop.f32.mrf.mxu0
        %v2516 = vadd.f32 %v2478, %v2515
        %2517 = vmatmul.f32.gmra.mxu0 %v1132
        %v2518 = vpop.f32.mrf.mxu0
        %v2519 = vadd.f32 %v2481, %v2518
        %2520 = vmatmul.f32.gmra.mxu0 %v1136
        %v2521 = vpop.f32.mrf.mxu0
        %v2522 = vadd.f32 %v2484, %v2521
        %2523 = vdwg.mxu0
        %2524 = vmatpush.msra.mxu0 %v1772
        %2525 = vmatpush.msra.mxu0 %v1762
        %2526 = vmatpush.msra.mxu0 %v1752
        %2527 = vmatpush.msra.mxu0 %v1742
        %2528 = vmatpush.msra.mxu0 %v1732
        %2529 = vmatpush.msra.mxu0 %v1722
        %2530 = vmatpush.msra.mxu0 %v1712
        %2531 = vmatpush.msra.mxu0 %v1702
        %2532 = vmatpush.msra.mxu0 %v1692
        %2533 = vmatpush.msra.mxu0 %v1682
        %2534 = vmatpush.msra.mxu0 %v1672
        %2535 = vmatpush.msra.mxu0 %v1662
        %2536 = vmatpush.msra.mxu0 %v1652
        %2537 = vmatpush.msra.mxu0 %v1642
        %2538 = vmatpush.msra.mxu0 %v1632
        %2539 = vmatpush.msra.mxu0 %v1622
        %2540 = vmatmul.f32.gmra.mxu0 %v1113
        %v2541 = vpop.f32.mrf.mxu0
        %v2542 = vadd.f32 %v2504, %v2541
        %2543 = vmatmul.f32.gmra.mxu0 %v1117
        %v2544 = vpop.f32.mrf.mxu0
        %v2545 = vadd.f32 %v2507, %v2544
        %2546 = vmatmul.f32.gmra.mxu0 %v1121
        %v2547 = vpop.f32.mrf.mxu0
        %v2548 = vadd.f32 %v2510, %v2547
        %2549 = vmatmul.f32.gmra.mxu0 %v1125
        %v2550 = vpop.f32.mrf.mxu0
        %v2551 = vadd.f32 %v2513, %v2550
        %2552 = vmatmul.f32.gmra.mxu0 %v1129
        %v2553 = vpop.f32.mrf.mxu0
        %v2554 = vadd.f32 %v2516, %v2553
        %2555 = vmatmul.f32.gmra.mxu0 %v1133
        %v2556 = vpop.f32.mrf.mxu0
        %v2557 = vadd.f32 %v2519, %v2556
        %2558 = vmatmul.f32.gmra.mxu0 %v1137
        %v2559 = vpop.f32.mrf.mxu0
        %v2560 = vadd.f32 %v2522, %v2559
        %2561 = vdwg.mxu0
        %2562 = vmatpush.msra.mxu0 %v1293
        %2563 = vmatpush.msra.mxu0 %v1283
        %2564 = vmatpush.msra.mxu0 %v1273
        %2565 = vmatpush.msra.mxu0 %v1263
        %2566 = vmatpush.msra.mxu0 %v1253
        %2567 = vmatpush.msra.mxu0 %v1243
        %2568 = vmatpush.msra.mxu0 %v1233
        %2569 = vmatpush.msra.mxu0 %v1223
        %2570 = vmatpush.msra.mxu0 %v1213
        %2571 = vmatpush.msra.mxu0 %v1203
        %2572 = vmatpush.msra.mxu0 %v1193
        %2573 = vmatpush.msra.mxu0 %v1183
        %2574 = vmatpush.msra.mxu0 %v1173
        %2575 = vmatpush.msra.mxu0 %v1163
        %2576 = vmatpush.msra.mxu0 %v1153
        %2577 = vmatpush.msra.mxu0 %v1143
        %2578 = vmatmul.f32.gmra.mxu0 %v1110
        %v2579 = vpop.f32.mrf.mxu0
        %v2580 = vadd.f32 %v1787, %v2579
        %2581 = vmatmul.f32.gmra.mxu0 %v1114
        %v2582 = vpop.f32.mrf.mxu0
        %v2583 = vadd.f32 %v1787, %v2582
        %2584 = vmatmul.f32.gmra.mxu0 %v1118
        %v2585 = vpop.f32.mrf.mxu0
        %v2586 = vadd.f32 %v1787, %v2585
        %2587 = vmatmul.f32.gmra.mxu0 %v1122
        %v2588 = vpop.f32.mrf.mxu0
        %v2589 = vadd.f32 %v1787, %v2588
        %2590 = vmatmul.f32.gmra.mxu0 %v1126
        %v2591 = vpop.f32.mrf.mxu0
        %v2592 = vadd.f32 %v1787, %v2591
        %2593 = vmatmul.f32.gmra.mxu0 %v1130
        %v2594 = vpop.f32.mrf.mxu0
        %v2595 = vadd.f32 %v1787, %v2594
        %2596 = vmatmul.f32.gmra.mxu0 %v1134
        %v2597 = vpop.f32.mrf.mxu0
        %v2598 = vadd.f32 %v1787, %v2597
        %2599 = vdwg.mxu0
        %2600 = vmatpush.msra.mxu0 %v1453
        %2601 = vmatpush.msra.mxu0 %v1443
        %2602 = vmatpush.msra.mxu0 %v1433
        %2603 = vmatpush.msra.mxu0 %v1423
        %2604 = vmatpush.msra.mxu0 %v1413
        %2605 = vmatpush.msra.mxu0 %v1403
        %2606 = vmatpush.msra.mxu0 %v1393
        %2607 = vmatpush.msra.mxu0 %v1383
        %2608 = vmatpush.msra.mxu0 %v1373
        %2609 = vmatpush.msra.mxu0 %v1363
        %2610 = vmatpush.msra.mxu0 %v1353
        %2611 = vmatpush.msra.mxu0 %v1343
        %2612 = vmatpush.msra.mxu0 %v1333
        %2613 = vmatpush.msra.mxu0 %v1323
        %2614 = vmatpush.msra.mxu0 %v1313
        %2615 = vmatpush.msra.mxu0 %v1303
        %2616 = vmatmul.f32.gmra.mxu0 %v1111
        %v2617 = vpop.f32.mrf.mxu0
        %v2618 = vadd.f32 %v2580, %v2617
        %2619 = vmatmul.f32.gmra.mxu0 %v1115
        %v2620 = vpop.f32.mrf.mxu0
        %v2621 = vadd.f32 %v2583, %v2620
        %2622 = vmatmul.f32.gmra.mxu0 %v1119
        %v2623 = vpop.f32.mrf.mxu0
        %v2624 = vadd.f32 %v2586, %v2623
        %2625 = vmatmul.f32.gmra.mxu0 %v1123
        %v2626 = vpop.f32.mrf.mxu0
        %v2627 = vadd.f32 %v2589, %v2626
        %2628 = vmatmul.f32.gmra.mxu0 %v1127
        %v2629 = vpop.f32.mrf.mxu0
        %v2630 = vadd.f32 %v2592, %v2629
        %2631 = vmatmul.f32.gmra.mxu0 %v1131
        %v2632 = vpop.f32.mrf.mxu0
        %v2633 = vadd.f32 %v2595, %v2632
        %2634 = vmatmul.f32.gmra.mxu0 %v1135
        %v2635 = vpop.f32.mrf.mxu0
        %v2636 = vadd.f32 %v2598, %v2635
        %2637 = vdwg.mxu0
        %2638 = vmatpush.msra.mxu0 %v1613
        %2639 = vmatpush.msra.mxu0 %v1603
        %2640 = vmatpush.msra.mxu0 %v1593
        %2641 = vmatpush.msra.mxu0 %v1583
        %2642 = vmatpush.msra.mxu0 %v1573
        %2643 = vmatpush.msra.mxu0 %v1563
        %2644 = vmatpush.msra.mxu0 %v1553
        %2645 = vmatpush.msra.mxu0 %v1543
        %2646 = vmatpush.msra.mxu0 %v1533
        %2647 = vmatpush.msra.mxu0 %v1523
        %2648 = vmatpush.msra.mxu0 %v1513
        %2649 = vmatpush.msra.mxu0 %v1503
        %2650 = vmatpush.msra.mxu0 %v1493
        %2651 = vmatpush.msra.mxu0 %v1483
        %2652 = vmatpush.msra.mxu0 %v1473
        %2653 = vmatpush.msra.mxu0 %v1463
        %2654 = vmatmul.f32.gmra.mxu0 %v1112
        %v2655 = vpop.f32.mrf.mxu0
        %v2656 = vadd.f32 %v2618, %v2655
        %2657 = vmatmul.f32.gmra.mxu0 %v1116
        %v2658 = vpop.f32.mrf.mxu0
        %v2659 = vadd.f32 %v2621, %v2658
        %2660 = vmatmul.f32.gmra.mxu0 %v1120
        %v2661 = vpop.f32.mrf.mxu0
        %v2662 = vadd.f32 %v2624, %v2661
        %2663 = vmatmul.f32.gmra.mxu0 %v1124
        %v2664 = vpop.f32.mrf.mxu0
        %v2665 = vadd.f32 %v2627, %v2664
        %2666 = vmatmul.f32.gmra.mxu0 %v1128
        %v2667 = vpop.f32.mrf.mxu0
        %v2668 = vadd.f32 %v2630, %v2667
        %2669 = vmatmul.f32.gmra.mxu0 %v1132
        %v2670 = vpop.f32.mrf.mxu0
        %v2671 = vadd.f32 %v2633, %v2670
        %2672 = vmatmul.f32.gmra.mxu0 %v1136
        %v2673 = vpop.f32.mrf.mxu0
        %v2674 = vadd.f32 %v2636, %v2673
        %2675 = vdwg.mxu0
        %2676 = vmatpush.msra.mxu0 %v1773
        %2677 = vmatpush.msra.mxu0 %v1763
        %2678 = vmatpush.msra.mxu0 %v1753
        %2679 = vmatpush.msra.mxu0 %v1743
        %2680 = vmatpush.msra.mxu0 %v1733
        %2681 = vmatpush.msra.mxu0 %v1723
        %2682 = vmatpush.msra.mxu0 %v1713
        %2683 = vmatpush.msra.mxu0 %v1703
        %2684 = vmatpush.msra.mxu0 %v1693
        %2685 = vmatpush.msra.mxu0 %v1683
        %2686 = vmatpush.msra.mxu0 %v1673
        %2687 = vmatpush.msra.mxu0 %v1663
        %2688 = vmatpush.msra.mxu0 %v1653
        %2689 = vmatpush.msra.mxu0 %v1643
        %2690 = vmatpush.msra.mxu0 %v1633
        %2691 = vmatpush.msra.mxu0 %v1623
        %2692 = vmatmul.f32.gmra.mxu0 %v1113
        %v2693 = vpop.f32.mrf.mxu0
        %v2694 = vadd.f32 %v2656, %v2693
        %2695 = vmatmul.f32.gmra.mxu0 %v1117
        %v2696 = vpop.f32.mrf.mxu0
        %v2697 = vadd.f32 %v2659, %v2696
        %2698 = vmatmul.f32.gmra.mxu0 %v1121
        %v2699 = vpop.f32.mrf.mxu0
        %v2700 = vadd.f32 %v2662, %v2699
        %2701 = vmatmul.f32.gmra.mxu0 %v1125
        %v2702 = vpop.f32.mrf.mxu0
        %v2703 = vadd.f32 %v2665, %v2702
        %2704 = vmatmul.f32.gmra.mxu0 %v1129
        %v2705 = vpop.f32.mrf.mxu0
        %v2706 = vadd.f32 %v2668, %v2705
        %2707 = vmatmul.f32.gmra.mxu0 %v1133
        %v2708 = vpop.f32.mrf.mxu0
        %v2709 = vadd.f32 %v2671, %v2708
        %2710 = vmatmul.f32.gmra.mxu0 %v1137
        %v2711 = vpop.f32.mrf.mxu0
        %v2712 = vadd.f32 %v2674, %v2711
        %2713 = vdwg.mxu0
        %2714 = vmatpush.msra.mxu0 %v1294
        %2715 = vmatpush.msra.mxu0 %v1284
        %2716 = vmatpush.msra.mxu0 %v1274
        %2717 = vmatpush.msra.mxu0 %v1264
        %2718 = vmatpush.msra.mxu0 %v1254
        %2719 = vmatpush.msra.mxu0 %v1244
        %2720 = vmatpush.msra.mxu0 %v1234
        %2721 = vmatpush.msra.mxu0 %v1224
        %2722 = vmatpush.msra.mxu0 %v1214
        %2723 = vmatpush.msra.mxu0 %v1204
        %2724 = vmatpush.msra.mxu0 %v1194
        %2725 = vmatpush.msra.mxu0 %v1184
        %2726 = vmatpush.msra.mxu0 %v1174
        %2727 = vmatpush.msra.mxu0 %v1164
        %2728 = vmatpush.msra.mxu0 %v1154
        %2729 = vmatpush.msra.mxu0 %v1144
        %2730 = vmatmul.f32.gmra.mxu0 %v1110
        %v2731 = vpop.f32.mrf.mxu0
        %v2732 = vadd.f32 %v1788, %v2731
        %2733 = vmatmul.f32.gmra.mxu0 %v1114
        %v2734 = vpop.f32.mrf.mxu0
        %v2735 = vadd.f32 %v1788, %v2734
        %2736 = vmatmul.f32.gmra.mxu0 %v1118
        %v2737 = vpop.f32.mrf.mxu0
        %v2738 = vadd.f32 %v1788, %v2737
        %2739 = vmatmul.f32.gmra.mxu0 %v1122
        %v2740 = vpop.f32.mrf.mxu0
        %v2741 = vadd.f32 %v1788, %v2740
        %2742 = vmatmul.f32.gmra.mxu0 %v1126
        %v2743 = vpop.f32.mrf.mxu0
        %v2744 = vadd.f32 %v1788, %v2743
        %2745 = vmatmul.f32.gmra.mxu0 %v1130
        %v2746 = vpop.f32.mrf.mxu0
        %v2747 = vadd.f32 %v1788, %v2746
        %2748 = vmatmul.f32.gmra.mxu0 %v1134
        %v2749 = vpop.f32.mrf.mxu0
        %v2750 = vadd.f32 %v1788, %v2749
        %2751 = vdwg.mxu0
        %2752 = vmatpush.msra.mxu0 %v1454
        %2753 = vmatpush.msra.mxu0 %v1444
        %2754 = vmatpush.msra.mxu0 %v1434
        %2755 = vmatpush.msra.mxu0 %v1424
        %2756 = vmatpush.msra.mxu0 %v1414
        %2757 = vmatpush.msra.mxu0 %v1404
        %2758 = vmatpush.msra.mxu0 %v1394
        %2759 = vmatpush.msra.mxu0 %v1384
        %2760 = vmatpush.msra.mxu0 %v1374
        %2761 = vmatpush.msra.mxu0 %v1364
        %2762 = vmatpush.msra.mxu0 %v1354
        %2763 = vmatpush.msra.mxu0 %v1344
        %2764 = vmatpush.msra.mxu0 %v1334
        %2765 = vmatpush.msra.mxu0 %v1324
        %2766 = vmatpush.msra.mxu0 %v1314
        %2767 = vmatpush.msra.mxu0 %v1304
        %2768 = vmatmul.f32.gmra.mxu0 %v1111
        %v2769 = vpop.f32.mrf.mxu0
        %v2770 = vadd.f32 %v2732, %v2769
        %2771 = vmatmul.f32.gmra.mxu0 %v1115
        %v2772 = vpop.f32.mrf.mxu0
        %v2773 = vadd.f32 %v2735, %v2772
        %2774 = vmatmul.f32.gmra.mxu0 %v1119
        %v2775 = vpop.f32.mrf.mxu0
        %v2776 = vadd.f32 %v2738, %v2775
        %2777 = vmatmul.f32.gmra.mxu0 %v1123
        %v2778 = vpop.f32.mrf.mxu0
        %v2779 = vadd.f32 %v2741, %v2778
        %2780 = vmatmul.f32.gmra.mxu0 %v1127
        %v2781 = vpop.f32.mrf.mxu0
        %v2782 = vadd.f32 %v2744, %v2781
        %2783 = vmatmul.f32.gmra.mxu0 %v1131
        %v2784 = vpop.f32.mrf.mxu0
        %v2785 = vadd.f32 %v2747, %v2784
        %2786 = vmatmul.f32.gmra.mxu0 %v1135
        %v2787 = vpop.f32.mrf.mxu0
        %v2788 = vadd.f32 %v2750, %v2787
        %2789 = vdwg.mxu0
        %2790 = vmatpush.msra.mxu0 %v1614
        %2791 = vmatpush.msra.mxu0 %v1604
        %2792 = vmatpush.msra.mxu0 %v1594
        %2793 = vmatpush.msra.mxu0 %v1584
        %2794 = vmatpush.msra.mxu0 %v1574
        %2795 = vmatpush.msra.mxu0 %v1564
        %2796 = vmatpush.msra.mxu0 %v1554
        %2797 = vmatpush.msra.mxu0 %v1544
        %2798 = vmatpush.msra.mxu0 %v1534
        %2799 = vmatpush.msra.mxu0 %v1524
        %2800 = vmatpush.msra.mxu0 %v1514
        %2801 = vmatpush.msra.mxu0 %v1504
        %2802 = vmatpush.msra.mxu0 %v1494
        %2803 = vmatpush.msra.mxu0 %v1484
        %2804 = vmatpush.msra.mxu0 %v1474
        %2805 = vmatpush.msra.mxu0 %v1464
        %2806 = vmatmul.f32.gmra.mxu0 %v1112
        %v2807 = vpop.f32.mrf.mxu0
        %v2808 = vadd.f32 %v2770, %v2807
        %2809 = vmatmul.f32.gmra.mxu0 %v1116
        %v2810 = vpop.f32.mrf.mxu0
        %v2811 = vadd.f32 %v2773, %v2810
        %2812 = vmatmul.f32.gmra.mxu0 %v1120
        %v2813 = vpop.f32.mrf.mxu0
        %v2814 = vadd.f32 %v2776, %v2813
        %2815 = vmatmul.f32.gmra.mxu0 %v1124
        %v2816 = vpop.f32.mrf.mxu0
        %v2817 = vadd.f32 %v2779, %v2816
        %2818 = vmatmul.f32.gmra.mxu0 %v1128
        %v2819 = vpop.f32.mrf.mxu0
        %v2820 = vadd.f32 %v2782, %v2819
        %2821 = vmatmul.f32.gmra.mxu0 %v1132
        %v2822 = vpop.f32.mrf.mxu0
        %v2823 = vadd.f32 %v2785, %v2822
        %2824 = vmatmul.f32.gmra.mxu0 %v1136
        %v2825 = vpop.f32.mrf.mxu0
        %v2826 = vadd.f32 %v2788, %v2825
        %2827 = vdwg.mxu0
        %2828 = vmatpush.msra.mxu0 %v1774
        %2829 = vmatpush.msra.mxu0 %v1764
        %2830 = vmatpush.msra.mxu0 %v1754
        %2831 = vmatpush.msra.mxu0 %v1744
        %2832 = vmatpush.msra.mxu0 %v1734
        %2833 = vmatpush.msra.mxu0 %v1724
        %2834 = vmatpush.msra.mxu0 %v1714
        %2835 = vmatpush.msra.mxu0 %v1704
        %2836 = vmatpush.msra.mxu0 %v1694
        %2837 = vmatpush.msra.mxu0 %v1684
        %2838 = vmatpush.msra.mxu0 %v1674
        %2839 = vmatpush.msra.mxu0 %v1664
        %2840 = vmatpush.msra.mxu0 %v1654
        %2841 = vmatpush.msra.mxu0 %v1644
        %2842 = vmatpush.msra.mxu0 %v1634
        %2843 = vmatpush.msra.mxu0 %v1624
        %2844 = vmatmul.f32.gmra.mxu0 %v1113
        %v2845 = vpop.f32.mrf.mxu0
        %v2846 = vadd.f32 %v2808, %v2845
        %2847 = vmatmul.f32.gmra.mxu0 %v1117
        %v2848 = vpop.f32.mrf.mxu0
        %v2849 = vadd.f32 %v2811, %v2848
        %2850 = vmatmul.f32.gmra.mxu0 %v1121
        %v2851 = vpop.f32.mrf.mxu0
        %v2852 = vadd.f32 %v2814, %v2851
        %2853 = vmatmul.f32.gmra.mxu0 %v1125
        %v2854 = vpop.f32.mrf.mxu0
        %v2855 = vadd.f32 %v2817, %v2854
        %2856 = vmatmul.f32.gmra.mxu0 %v1129
        %v2857 = vpop.f32.mrf.mxu0
        %v2858 = vadd.f32 %v2820, %v2857
        %2859 = vmatmul.f32.gmra.mxu0 %v1133
        %v2860 = vpop.f32.mrf.mxu0
        %v2861 = vadd.f32 %v2823, %v2860
        %2862 = vmatmul.f32.gmra.mxu0 %v1137
        %v2863 = vpop.f32.mrf.mxu0
        %v2864 = vadd.f32 %v2826, %v2863
        %2865 = vdwg.mxu0
        %2866 = vmatpush.msra.mxu0 %v1295
        %2867 = vmatpush.msra.mxu0 %v1285
        %2868 = vmatpush.msra.mxu0 %v1275
        %2869 = vmatpush.msra.mxu0 %v1265
        %2870 = vmatpush.msra.mxu0 %v1255
        %2871 = vmatpush.msra.mxu0 %v1245
        %2872 = vmatpush.msra.mxu0 %v1235
        %2873 = vmatpush.msra.mxu0 %v1225
        %2874 = vmatpush.msra.mxu0 %v1215
        %2875 = vmatpush.msra.mxu0 %v1205
        %2876 = vmatpush.msra.mxu0 %v1195
        %2877 = vmatpush.msra.mxu0 %v1185
        %2878 = vmatpush.msra.mxu0 %v1175
        %2879 = vmatpush.msra.mxu0 %v1165
        %2880 = vmatpush.msra.mxu0 %v1155
        %2881 = vmatpush.msra.mxu0 %v1145
        %2882 = vmatmul.f32.gmra.mxu0 %v1110
        %v2883 = vpop.f32.mrf.mxu0
        %v2884 = vadd.f32 %v1789, %v2883
        %2885 = vmatmul.f32.gmra.mxu0 %v1114
        %v2886 = vpop.f32.mrf.mxu0
        %v2887 = vadd.f32 %v1789, %v2886
        %2888 = vmatmul.f32.gmra.mxu0 %v1118
        %v2889 = vpop.f32.mrf.mxu0
        %v2890 = vadd.f32 %v1789, %v2889
        %2891 = vmatmul.f32.gmra.mxu0 %v1122
        %v2892 = vpop.f32.mrf.mxu0
        %v2893 = vadd.f32 %v1789, %v2892
        %2894 = vmatmul.f32.gmra.mxu0 %v1126
        %v2895 = vpop.f32.mrf.mxu0
        %v2896 = vadd.f32 %v1789, %v2895
        %2897 = vmatmul.f32.gmra.mxu0 %v1130
        %v2898 = vpop.f32.mrf.mxu0
        %v2899 = vadd.f32 %v1789, %v2898
        %2900 = vmatmul.f32.gmra.mxu0 %v1134
        %v2901 = vpop.f32.mrf.mxu0
        %v2902 = vadd.f32 %v1789, %v2901
        %2903 = vdwg.mxu0
        %2904 = vmatpush.msra.mxu0 %v1455
        %2905 = vmatpush.msra.mxu0 %v1445
        %2906 = vmatpush.msra.mxu0 %v1435
        %2907 = vmatpush.msra.mxu0 %v1425
        %2908 = vmatpush.msra.mxu0 %v1415
        %2909 = vmatpush.msra.mxu0 %v1405
        %2910 = vmatpush.msra.mxu0 %v1395
        %2911 = vmatpush.msra.mxu0 %v1385
        %2912 = vmatpush.msra.mxu0 %v1375
        %2913 = vmatpush.msra.mxu0 %v1365
        %2914 = vmatpush.msra.mxu0 %v1355
        %2915 = vmatpush.msra.mxu0 %v1345
        %2916 = vmatpush.msra.mxu0 %v1335
        %2917 = vmatpush.msra.mxu0 %v1325
        %2918 = vmatpush.msra.mxu0 %v1315
        %2919 = vmatpush.msra.mxu0 %v1305
        %2920 = vmatmul.f32.gmra.mxu0 %v1111
        %v2921 = vpop.f32.mrf.mxu0
        %v2922 = vadd.f32 %v2884, %v2921
        %2923 = vmatmul.f32.gmra.mxu0 %v1115
        %v2924 = vpop.f32.mrf.mxu0
        %v2925 = vadd.f32 %v2887, %v2924
        %2926 = vmatmul.f32.gmra.mxu0 %v1119
        %v2927 = vpop.f32.mrf.mxu0
        %v2928 = vadd.f32 %v2890, %v2927
        %2929 = vmatmul.f32.gmra.mxu0 %v1123
        %v2930 = vpop.f32.mrf.mxu0
        %v2931 = vadd.f32 %v2893, %v2930
        %2932 = vmatmul.f32.gmra.mxu0 %v1127
        %v2933 = vpop.f32.mrf.mxu0
        %v2934 = vadd.f32 %v2896, %v2933
        %2935 = vmatmul.f32.gmra.mxu0 %v1131
        %v2936 = vpop.f32.mrf.mxu0
        %v2937 = vadd.f32 %v2899, %v2936
        %2938 = vmatmul.f32.gmra.mxu0 %v1135
        %v2939 = vpop.f32.mrf.mxu0
        %v2940 = vadd.f32 %v2902, %v2939
        %2941 = vdwg.mxu0
        %2942 = vmatpush.msra.mxu0 %v1615
        %2943 = vmatpush.msra.mxu0 %v1605
        %2944 = vmatpush.msra.mxu0 %v1595
        %2945 = vmatpush.msra.mxu0 %v1585
        %2946 = vmatpush.msra.mxu0 %v1575
        %2947 = vmatpush.msra.mxu0 %v1565
        %2948 = vmatpush.msra.mxu0 %v1555
        %2949 = vmatpush.msra.mxu0 %v1545
        %2950 = vmatpush.msra.mxu0 %v1535
        %2951 = vmatpush.msra.mxu0 %v1525
        %2952 = vmatpush.msra.mxu0 %v1515
        %2953 = vmatpush.msra.mxu0 %v1505
        %2954 = vmatpush.msra.mxu0 %v1495
        %2955 = vmatpush.msra.mxu0 %v1485
        %2956 = vmatpush.msra.mxu0 %v1475
        %2957 = vmatpush.msra.mxu0 %v1465
        %2958 = vmatmul.f32.gmra.mxu0 %v1112
        %v2959 = vpop.f32.mrf.mxu0
        %v2960 = vadd.f32 %v2922, %v2959
        %2961 = vmatmul.f32.gmra.mxu0 %v1116
        %v2962 = vpop.f32.mrf.mxu0
        %v2963 = vadd.f32 %v2925, %v2962
        %2964 = vmatmul.f32.gmra.mxu0 %v1120
        %v2965 = vpop.f32.mrf.mxu0
        %v2966 = vadd.f32 %v2928, %v2965
        %2967 = vmatmul.f32.gmra.mxu0 %v1124
        %v2968 = vpop.f32.mrf.mxu0
        %v2969 = vadd.f32 %v2931, %v2968
        %2970 = vmatmul.f32.gmra.mxu0 %v1128
        %v2971 = vpop.f32.mrf.mxu0
        %v2972 = vadd.f32 %v2934, %v2971
        %2973 = vmatmul.f32.gmra.mxu0 %v1132
        %v2974 = vpop.f32.mrf.mxu0
        %v2975 = vadd.f32 %v2937, %v2974
        %2976 = vmatmul.f32.gmra.mxu0 %v1136
        %v2977 = vpop.f32.mrf.mxu0
        %v2978 = vadd.f32 %v2940, %v2977
        %2979 = vdwg.mxu0
        %2980 = vmatpush.msra.mxu0 %v1775
        %2981 = vmatpush.msra.mxu0 %v1765
        %2982 = vmatpush.msra.mxu0 %v1755
        %2983 = vmatpush.msra.mxu0 %v1745
        %2984 = vmatpush.msra.mxu0 %v1735
        %2985 = vmatpush.msra.mxu0 %v1725
        %2986 = vmatpush.msra.mxu0 %v1715
        %2987 = vmatpush.msra.mxu0 %v1705
        %2988 = vmatpush.msra.mxu0 %v1695
        %2989 = vmatpush.msra.mxu0 %v1685
        %2990 = vmatpush.msra.mxu0 %v1675
        %2991 = vmatpush.msra.mxu0 %v1665
        %2992 = vmatpush.msra.mxu0 %v1655
        %2993 = vmatpush.msra.mxu0 %v1645
        %2994 = vmatpush.msra.mxu0 %v1635
        %2995 = vmatpush.msra.mxu0 %v1625
        %2996 = vmatmul.f32.gmra.mxu0 %v1113
        %v2997 = vpop.f32.mrf.mxu0
        %v2998 = vadd.f32 %v2960, %v2997
        %2999 = vmatmul.f32.gmra.mxu0 %v1117
        %v3000 = vpop.f32.mrf.mxu0
        %v3001 = vadd.f32 %v2963, %v3000
        %3002 = vmatmul.f32.gmra.mxu0 %v1121
        %v3003 = vpop.f32.mrf.mxu0
        %v3004 = vadd.f32 %v2966, %v3003
        %3005 = vmatmul.f32.gmra.mxu0 %v1125
        %v3006 = vpop.f32.mrf.mxu0
        %v3007 = vadd.f32 %v2969, %v3006
        %3008 = vmatmul.f32.gmra.mxu0 %v1129
        %v3009 = vpop.f32.mrf.mxu0
        %v3010 = vadd.f32 %v2972, %v3009
        %3011 = vmatmul.f32.gmra.mxu0 %v1133
        %v3012 = vpop.f32.mrf.mxu0
        %v3013 = vadd.f32 %v2975, %v3012
        %3014 = vmatmul.f32.gmra.mxu0 %v1137
        %v3015 = vpop.f32.mrf.mxu0
        %v3016 = vadd.f32 %v2978, %v3015
        %3017 = vdwg.mxu0
        %3018 = vmatpush.msra.mxu0 %v1296
        %3019 = vmatpush.msra.mxu0 %v1286
        %3020 = vmatpush.msra.mxu0 %v1276
        %3021 = vmatpush.msra.mxu0 %v1266
        %3022 = vmatpush.msra.mxu0 %v1256
        %3023 = vmatpush.msra.mxu0 %v1246
        %3024 = vmatpush.msra.mxu0 %v1236
        %3025 = vmatpush.msra.mxu0 %v1226
        %3026 = vmatpush.msra.mxu0 %v1216
        %3027 = vmatpush.msra.mxu0 %v1206
        %3028 = vmatpush.msra.mxu0 %v1196
        %3029 = vmatpush.msra.mxu0 %v1186
        %3030 = vmatpush.msra.mxu0 %v1176
        %3031 = vmatpush.msra.mxu0 %v1166
        %3032 = vmatpush.msra.mxu0 %v1156
        %3033 = vmatpush.msra.mxu0 %v1146
        %3034 = vmatmul.f32.gmra.mxu0 %v1110
        %v3035 = vpop.f32.mrf.mxu0
        %v3036 = vadd.f32 %v1790, %v3035
        %3037 = vmatmul.f32.gmra.mxu0 %v1114
        %v3038 = vpop.f32.mrf.mxu0
        %v3039 = vadd.f32 %v1790, %v3038
        %3040 = vmatmul.f32.gmra.mxu0 %v1118
        %v3041 = vpop.f32.mrf.mxu0
        %v3042 = vadd.f32 %v1790, %v3041
        %3043 = vmatmul.f32.gmra.mxu0 %v1122
        %v3044 = vpop.f32.mrf.mxu0
        %v3045 = vadd.f32 %v1790, %v3044
        %3046 = vmatmul.f32.gmra.mxu0 %v1126
        %v3047 = vpop.f32.mrf.mxu0
        %v3048 = vadd.f32 %v1790, %v3047
        %3049 = vmatmul.f32.gmra.mxu0 %v1130
        %v3050 = vpop.f32.mrf.mxu0
        %v3051 = vadd.f32 %v1790, %v3050
        %3052 = vmatmul.f32.gmra.mxu0 %v1134
        %v3053 = vpop.f32.mrf.mxu0
        %v3054 = vadd.f32 %v1790, %v3053
        %3055 = vdwg.mxu0
        %3056 = vmatpush.msra.mxu0 %v1456
        %3057 = vmatpush.msra.mxu0 %v1446
        %3058 = vmatpush.msra.mxu0 %v1436
        %3059 = vmatpush.msra.mxu0 %v1426
        %3060 = vmatpush.msra.mxu0 %v1416
        %3061 = vmatpush.msra.mxu0 %v1406
        %3062 = vmatpush.msra.mxu0 %v1396
        %3063 = vmatpush.msra.mxu0 %v1386
        %3064 = vmatpush.msra.mxu0 %v1376
        %3065 = vmatpush.msra.mxu0 %v1366
        %3066 = vmatpush.msra.mxu0 %v1356
        %3067 = vmatpush.msra.mxu0 %v1346
        %3068 = vmatpush.msra.mxu0 %v1336
        %3069 = vmatpush.msra.mxu0 %v1326
        %3070 = vmatpush.msra.mxu0 %v1316
        %3071 = vmatpush.msra.mxu0 %v1306
        %3072 = vmatmul.f32.gmra.mxu0 %v1111
        %v3073 = vpop.f32.mrf.mxu0
        %v3074 = vadd.f32 %v3036, %v3073
        %3075 = vmatmul.f32.gmra.mxu0 %v1115
        %v3076 = vpop.f32.mrf.mxu0
        %v3077 = vadd.f32 %v3039, %v3076
        %3078 = vmatmul.f32.gmra.mxu0 %v1119
        %v3079 = vpop.f32.mrf.mxu0
        %v3080 = vadd.f32 %v3042, %v3079
        %3081 = vmatmul.f32.gmra.mxu0 %v1123
        %v3082 = vpop.f32.mrf.mxu0
        %v3083 = vadd.f32 %v3045, %v3082
        %3084 = vmatmul.f32.gmra.mxu0 %v1127
        %v3085 = vpop.f32.mrf.mxu0
        %v3086 = vadd.f32 %v3048, %v3085
        %3087 = vmatmul.f32.gmra.mxu0 %v1131
        %v3088 = vpop.f32.mrf.mxu0
        %v3089 = vadd.f32 %v3051, %v3088
        %3090 = vmatmul.f32.gmra.mxu0 %v1135
        %v3091 = vpop.f32.mrf.mxu0
        %v3092 = vadd.f32 %v3054, %v3091
        %3093 = vdwg.mxu0
        %3094 = vmatpush.msra.mxu0 %v1616
        %3095 = vmatpush.msra.mxu0 %v1606
        %3096 = vmatpush.msra.mxu0 %v1596
        %3097 = vmatpush.msra.mxu0 %v1586
        %3098 = vmatpush.msra.mxu0 %v1576
        %3099 = vmatpush.msra.mxu0 %v1566
        %3100 = vmatpush.msra.mxu0 %v1556
        %3101 = vmatpush.msra.mxu0 %v1546
        %3102 = vmatpush.msra.mxu0 %v1536
        %3103 = vmatpush.msra.mxu0 %v1526
        %3104 = vmatpush.msra.mxu0 %v1516
        %3105 = vmatpush.msra.mxu0 %v1506
        %3106 = vmatpush.msra.mxu0 %v1496
        %3107 = vmatpush.msra.mxu0 %v1486
        %3108 = vmatpush.msra.mxu0 %v1476
        %3109 = vmatpush.msra.mxu0 %v1466
        %3110 = vmatmul.f32.gmra.mxu0 %v1112
        %v3111 = vpop.f32.mrf.mxu0
        %v3112 = vadd.f32 %v3074, %v3111
        %3113 = vmatmul.f32.gmra.mxu0 %v1116
        %v3114 = vpop.f32.mrf.mxu0
        %v3115 = vadd.f32 %v3077, %v3114
        %3116 = vmatmul.f32.gmra.mxu0 %v1120
        %v3117 = vpop.f32.mrf.mxu0
        %v3118 = vadd.f32 %v3080, %v3117
        %3119 = vmatmul.f32.gmra.mxu0 %v1124
        %v3120 = vpop.f32.mrf.mxu0
        %v3121 = vadd.f32 %v3083, %v3120
        %3122 = vmatmul.f32.gmra.mxu0 %v1128
        %v3123 = vpop.f32.mrf.mxu0
        %v3124 = vadd.f32 %v3086, %v3123
        %3125 = vmatmul.f32.gmra.mxu0 %v1132
        %v3126 = vpop.f32.mrf.mxu0
        %v3127 = vadd.f32 %v3089, %v3126
        %3128 = vmatmul.f32.gmra.mxu0 %v1136
        %v3129 = vpop.f32.mrf.mxu0
        %v3130 = vadd.f32 %v3092, %v3129
        %3131 = vdwg.mxu0
        %3132 = vmatpush.msra.mxu0 %v1776
        %3133 = vmatpush.msra.mxu0 %v1766
        %3134 = vmatpush.msra.mxu0 %v1756
        %3135 = vmatpush.msra.mxu0 %v1746
        %3136 = vmatpush.msra.mxu0 %v1736
        %3137 = vmatpush.msra.mxu0 %v1726
        %3138 = vmatpush.msra.mxu0 %v1716
        %3139 = vmatpush.msra.mxu0 %v1706
        %3140 = vmatpush.msra.mxu0 %v1696
        %3141 = vmatpush.msra.mxu0 %v1686
        %3142 = vmatpush.msra.mxu0 %v1676
        %3143 = vmatpush.msra.mxu0 %v1666
        %3144 = vmatpush.msra.mxu0 %v1656
        %3145 = vmatpush.msra.mxu0 %v1646
        %3146 = vmatpush.msra.mxu0 %v1636
        %3147 = vmatpush.msra.mxu0 %v1626
        %3148 = vmatmul.f32.gmra.mxu0 %v1113
        %v3149 = vpop.f32.mrf.mxu0
        %v3150 = vadd.f32 %v3112, %v3149
        %3151 = vmatmul.f32.gmra.mxu0 %v1117
        %v3152 = vpop.f32.mrf.mxu0
        %v3153 = vadd.f32 %v3115, %v3152
        %3154 = vmatmul.f32.gmra.mxu0 %v1121
        %v3155 = vpop.f32.mrf.mxu0
        %v3156 = vadd.f32 %v3118, %v3155
        %3157 = vmatmul.f32.gmra.mxu0 %v1125
        %v3158 = vpop.f32.mrf.mxu0
        %v3159 = vadd.f32 %v3121, %v3158
        %3160 = vmatmul.f32.gmra.mxu0 %v1129
        %v3161 = vpop.f32.mrf.mxu0
        %v3162 = vadd.f32 %v3124, %v3161
        %3163 = vmatmul.f32.gmra.mxu0 %v1133
        %v3164 = vpop.f32.mrf.mxu0
        %v3165 = vadd.f32 %v3127, %v3164
        %3166 = vmatmul.f32.gmra.mxu0 %v1137
        %v3167 = vpop.f32.mrf.mxu0
        %v3168 = vadd.f32 %v3130, %v3167
        %3169 = vdwg.mxu0
        %3170 = vmatpush.msra.mxu0 %v1297
        %3171 = vmatpush.msra.mxu0 %v1287
        %3172 = vmatpush.msra.mxu0 %v1277
        %3173 = vmatpush.msra.mxu0 %v1267
        %3174 = vmatpush.msra.mxu0 %v1257
        %3175 = vmatpush.msra.mxu0 %v1247
        %3176 = vmatpush.msra.mxu0 %v1237
        %3177 = vmatpush.msra.mxu0 %v1227
        %3178 = vmatpush.msra.mxu0 %v1217
        %3179 = vmatpush.msra.mxu0 %v1207
        %3180 = vmatpush.msra.mxu0 %v1197
        %3181 = vmatpush.msra.mxu0 %v1187
        %3182 = vmatpush.msra.mxu0 %v1177
        %3183 = vmatpush.msra.mxu0 %v1167
        %3184 = vmatpush.msra.mxu0 %v1157
        %3185 = vmatpush.msra.mxu0 %v1147
        %3186 = vmatmul.f32.gmra.mxu0 %v1110
        %v3187 = vpop.f32.mrf.mxu0
        %v3188 = vadd.f32 %v1791, %v3187
        %3189 = vmatmul.f32.gmra.mxu0 %v1114
        %v3190 = vpop.f32.mrf.mxu0
        %v3191 = vadd.f32 %v1791, %v3190
        %3192 = vmatmul.f32.gmra.mxu0 %v1118
        %v3193 = vpop.f32.mrf.mxu0
        %v3194 = vadd.f32 %v1791, %v3193
        %3195 = vmatmul.f32.gmra.mxu0 %v1122
        %v3196 = vpop.f32.mrf.mxu0
        %v3197 = vadd.f32 %v1791, %v3196
        %3198 = vmatmul.f32.gmra.mxu0 %v1126
        %v3199 = vpop.f32.mrf.mxu0
        %v3200 = vadd.f32 %v1791, %v3199
        %3201 = vmatmul.f32.gmra.mxu0 %v1130
        %v3202 = vpop.f32.mrf.mxu0
        %v3203 = vadd.f32 %v1791, %v3202
        %3204 = vmatmul.f32.gmra.mxu0 %v1134
        %v3205 = vpop.f32.mrf.mxu0
        %v3206 = vadd.f32 %v1791, %v3205
        %3207 = vdwg.mxu0
        %3208 = vmatpush.msra.mxu0 %v1457
        %3209 = vmatpush.msra.mxu0 %v1447
        %3210 = vmatpush.msra.mxu0 %v1437
        %3211 = vmatpush.msra.mxu0 %v1427
        %3212 = vmatpush.msra.mxu0 %v1417
        %3213 = vmatpush.msra.mxu0 %v1407
        %3214 = vmatpush.msra.mxu0 %v1397
        %3215 = vmatpush.msra.mxu0 %v1387
        %3216 = vmatpush.msra.mxu0 %v1377
        %3217 = vmatpush.msra.mxu0 %v1367
        %3218 = vmatpush.msra.mxu0 %v1357
        %3219 = vmatpush.msra.mxu0 %v1347
        %3220 = vmatpush.msra.mxu0 %v1337
        %3221 = vmatpush.msra.mxu0 %v1327
        %3222 = vmatpush.msra.mxu0 %v1317
        %3223 = vmatpush.msra.mxu0 %v1307
        %3224 = vmatmul.f32.gmra.mxu0 %v1111
        %v3225 = vpop.f32.mrf.mxu0
        %v3226 = vadd.f32 %v3188, %v3225
        %3227 = vmatmul.f32.gmra.mxu0 %v1115
        %v3228 = vpop.f32.mrf.mxu0
        %v3229 = vadd.f32 %v3191, %v3228
        %3230 = vmatmul.f32.gmra.mxu0 %v1119
        %v3231 = vpop.f32.mrf.mxu0
        %v3232 = vadd.f32 %v3194, %v3231
        %3233 = vmatmul.f32.gmra.mxu0 %v1123
        %v3234 = vpop.f32.mrf.mxu0
        %v3235 = vadd.f32 %v3197, %v3234
        %3236 = vmatmul.f32.gmra.mxu0 %v1127
        %v3237 = vpop.f32.mrf.mxu0
        %v3238 = vadd.f32 %v3200, %v3237
        %3239 = vmatmul.f32.gmra.mxu0 %v1131
        %v3240 = vpop.f32.mrf.mxu0
        %v3241 = vadd.f32 %v3203, %v3240
        %3242 = vmatmul.f32.gmra.mxu0 %v1135
        %v3243 = vpop.f32.mrf.mxu0
        %v3244 = vadd.f32 %v3206, %v3243
        %3245 = vdwg.mxu0
        %3246 = vmatpush.msra.mxu0 %v1617
        %3247 = vmatpush.msra.mxu0 %v1607
        %3248 = vmatpush.msra.mxu0 %v1597
        %3249 = vmatpush.msra.mxu0 %v1587
        %3250 = vmatpush.msra.mxu0 %v1577
        %3251 = vmatpush.msra.mxu0 %v1567
        %3252 = vmatpush.msra.mxu0 %v1557
        %3253 = vmatpush.msra.mxu0 %v1547
        %3254 = vmatpush.msra.mxu0 %v1537
        %3255 = vmatpush.msra.mxu0 %v1527
        %3256 = vmatpush.msra.mxu0 %v1517
        %3257 = vmatpush.msra.mxu0 %v1507
        %3258 = vmatpush.msra.mxu0 %v1497
        %3259 = vmatpush.msra.mxu0 %v1487
        %3260 = vmatpush.msra.mxu0 %v1477
        %3261 = vmatpush.msra.mxu0 %v1467
        %3262 = vmatmul.f32.gmra.mxu0 %v1112
        %v3263 = vpop.f32.mrf.mxu0
        %v3264 = vadd.f32 %v3226, %v3263
        %3265 = vmatmul.f32.gmra.mxu0 %v1116
        %v3266 = vpop.f32.mrf.mxu0
        %v3267 = vadd.f32 %v3229, %v3266
        %3268 = vmatmul.f32.gmra.mxu0 %v1120
        %v3269 = vpop.f32.mrf.mxu0
        %v3270 = vadd.f32 %v3232, %v3269
        %3271 = vmatmul.f32.gmra.mxu0 %v1124
        %v3272 = vpop.f32.mrf.mxu0
        %v3273 = vadd.f32 %v3235, %v3272
        %3274 = vmatmul.f32.gmra.mxu0 %v1128
        %v3275 = vpop.f32.mrf.mxu0
        %v3276 = vadd.f32 %v3238, %v3275
        %3277 = vmatmul.f32.gmra.mxu0 %v1132
        %v3278 = vpop.f32.mrf.mxu0
        %v3279 = vadd.f32 %v3241, %v3278
        %3280 = vmatmul.f32.gmra.mxu0 %v1136
        %v3281 = vpop.f32.mrf.mxu0
        %v3282 = vadd.f32 %v3244, %v3281
        %3283 = vdwg.mxu0
        %3284 = vmatpush.msra.mxu0 %v1777
        %3285 = vmatpush.msra.mxu0 %v1767
        %3286 = vmatpush.msra.mxu0 %v1757
        %3287 = vmatpush.msra.mxu0 %v1747
        %3288 = vmatpush.msra.mxu0 %v1737
        %3289 = vmatpush.msra.mxu0 %v1727
        %3290 = vmatpush.msra.mxu0 %v1717
        %3291 = vmatpush.msra.mxu0 %v1707
        %3292 = vmatpush.msra.mxu0 %v1697
        %3293 = vmatpush.msra.mxu0 %v1687
        %3294 = vmatpush.msra.mxu0 %v1677
        %3295 = vmatpush.msra.mxu0 %v1667
        %3296 = vmatpush.msra.mxu0 %v1657
        %3297 = vmatpush.msra.mxu0 %v1647
        %3298 = vmatpush.msra.mxu0 %v1637
        %3299 = vmatpush.msra.mxu0 %v1627
        %3300 = vmatmul.f32.gmra.mxu0 %v1113
        %v3301 = vpop.f32.mrf.mxu0
        %v3302 = vadd.f32 %v3264, %v3301
        %3303 = vmatmul.f32.gmra.mxu0 %v1117
        %v3304 = vpop.f32.mrf.mxu0
        %v3305 = vadd.f32 %v3267, %v3304
        %3306 = vmatmul.f32.gmra.mxu0 %v1121
        %v3307 = vpop.f32.mrf.mxu0
        %v3308 = vadd.f32 %v3270, %v3307
        %3309 = vmatmul.f32.gmra.mxu0 %v1125
        %v3310 = vpop.f32.mrf.mxu0
        %v3311 = vadd.f32 %v3273, %v3310
        %3312 = vmatmul.f32.gmra.mxu0 %v1129
        %v3313 = vpop.f32.mrf.mxu0
        %v3314 = vadd.f32 %v3276, %v3313
        %3315 = vmatmul.f32.gmra.mxu0 %v1133
        %v3316 = vpop.f32.mrf.mxu0
        %v3317 = vadd.f32 %v3279, %v3316
        %3318 = vmatmul.f32.gmra.mxu0 %v1137
        %v3319 = vpop.f32.mrf.mxu0
        %v3320 = vadd.f32 %v3282, %v3319
        %3321 = vdwg.mxu0
        %v3322 = vmul.f32 %v1934, 0.5
        %v3323 = vmul.f32 %v2086, 0.5
        %v3324 = vmul.f32 %v2238, 0.5
        %v3325 = vmul.f32 %v2390, 0.5
        %v3326 = vmul.f32 %v2542, 0.5
        %v3327 = vmul.f32 %v2694, 0.5
        %v3328 = vmul.f32 %v2846, 0.5
        %v3329 = vmul.f32 %v2998, 0.5
        %v3330 = vmul.f32 %v3150, 0.5
        %v3331 = vmul.f32 %v3302, 0.5
        %v3332 = vmul.f32 %v1937, 0.5
        %v3333 = vmul.f32 %v2089, 0.5
        %v3334 = vmul.f32 %v2241, 0.5
        %v3335 = vmul.f32 %v2393, 0.5
        %v3336 = vmul.f32 %v2545, 0.5
        %v3337 = vmul.f32 %v2697, 0.5
        %v3338 = vmul.f32 %v2849, 0.5
        %v3339 = vmul.f32 %v3001, 0.5
        %v3340 = vmul.f32 %v3153, 0.5
        %v3341 = vmul.f32 %v3305, 0.5
        %v3342 = vmul.f32 %v1940, 0.5
        %v3343 = vmul.f32 %v2092, 0.5
        %v3344 = vmul.f32 %v2244, 0.5
        %v3345 = vmul.f32 %v2396, 0.5
        %v3346 = vmul.f32 %v2548, 0.5
        %v3347 = vmul.f32 %v2700, 0.5
        %v3348 = vmul.f32 %v2852, 0.5
        %v3349 = vmul.f32 %v3004, 0.5
        %v3350 = vmul.f32 %v3156, 0.5
        %v3351 = vmul.f32 %v3308, 0.5
        %v3352 = vmul.f32 %v1943, 0.5
        %v3353 = vmul.f32 %v2095, 0.5
        %v3354 = vmul.f32 %v2247, 0.5
        %v3355 = vmul.f32 %v2399, 0.5
        %v3356 = vmul.f32 %v2551, 0.5
        %v3357 = vmul.f32 %v2703, 0.5
        %v3358 = vmul.f32 %v2855, 0.5
        %v3359 = vmul.f32 %v3007, 0.5
        %v3360 = vmul.f32 %v3159, 0.5
        %v3361 = vmul.f32 %v3311, 0.5
        %v3362 = vmul.f32 %v1946, 0.5
        %v3363 = vmul.f32 %v2098, 0.5
        %v3364 = vmul.f32 %v2250, 0.5
        %v3365 = vmul.f32 %v2402, 0.5
        %v3366 = vmul.f32 %v2554, 0.5
        %v3367 = vmul.f32 %v2706, 0.5
        %v3368 = vmul.f32 %v2858, 0.5
        %v3369 = vmul.f32 %v3010, 0.5
        %v3370 = vmul.f32 %v3162, 0.5
        %v3371 = vmul.f32 %v3314, 0.5
        %v3372 = vmul.f32 %v1949, 0.5
        %v3373 = vmul.f32 %v2101, 0.5
        %v3374 = vmul.f32 %v2253, 0.5
        %v3375 = vmul.f32 %v2405, 0.5
        %v3376 = vmul.f32 %v2557, 0.5
        %v3377 = vmul.f32 %v2709, 0.5
        %v3378 = vmul.f32 %v2861, 0.5
        %v3379 = vmul.f32 %v3013, 0.5
        %v3380 = vmul.f32 %v3165, 0.5
        %v3381 = vmul.f32 %v3317, 0.5
        %v3382 = vmul.f32 %v1952, 0.5
        %v3383 = vmul.f32 %v2104, 0.5
        %v3384 = vmul.f32 %v2256, 0.5
        %v3385 = vmul.f32 %v2408, 0.5
        %v3386 = vmul.f32 %v2560, 0.5
        %v3387 = vmul.f32 %v2712, 0.5
        %v3388 = vmul.f32 %v2864, 0.5
        %v3389 = vmul.f32 %v3016, 0.5
        %v3390 = vmul.f32 %v3168, 0.5
        %v3391 = vmul.f32 %v3320, 0.5
        %v3392 = vtanh.pop %v3322
        %v3393 = vtanh.pop %v3323
        %v3394 = vtanh.pop %v3324
        %v3395 = vtanh.pop %v3325
        %v3396 = vtanh.pop %v3326
        %v3397 = vtanh.pop %v3327
        %v3398 = vtanh.pop %v3328
        %v3399 = vtanh.pop %v3329
        %v3400 = vtanh.pop %v3330
        %v3401 = vtanh.pop %v3331
        %v3402 = vtanh.pop %v3332
        %v3403 = vtanh.pop %v3333
        %v3404 = vtanh.pop %v3334
        %v3405 = vtanh.pop %v3335
        %v3406 = vtanh.pop %v3336
        %v3407 = vtanh.pop %v3337
        %v3408 = vtanh.pop %v3338
        %v3409 = vtanh.pop %v3339
        %v3410 = vtanh.pop %v3340
        %v3411 = vtanh.pop %v3341
        %v3412 = vtanh.pop %v3342
        %v3413 = vtanh.pop %v3343
        %v3414 = vtanh.pop %v3344
        %v3415 = vtanh.pop %v3345
        %v3416 = vtanh.pop %v3346
        %v3417 = vtanh.pop %v3347
        %v3418 = vtanh.pop %v3348
        %v3419 = vtanh.pop %v3349
        %v3420 = vtanh.pop %v3350
        %v3421 = vtanh.pop %v3351
        %v3422 = vtanh.pop %v3352
        %v3423 = vtanh.pop %v3353
        %v3424 = vtanh.pop %v3354
        %v3425 = vtanh.pop %v3355
        %v3426 = vtanh.pop %v3356
        %v3427 = vtanh.pop %v3357
        %v3428 = vtanh.pop %v3358
        %v3429 = vtanh.pop %v3359
        %v3430 = vtanh.pop %v3360
        %v3431 = vtanh.pop %v3361
        %v3432 = vtanh.pop %v3362
        %v3433 = vtanh.pop %v3363
        %v3434 = vtanh.pop %v3364
        %v3435 = vtanh.pop %v3365
        %v3436 = vtanh.pop %v3366
        %v3437 = vtanh.pop %v3367
        %v3438 = vtanh.pop %v3368
        %v3439 = vtanh.pop %v3369
        %v3440 = vtanh.pop %v3370
        %v3441 = vtanh.pop %v3371
        %v3442 = vtanh.pop %v3372
        %v3443 = vtanh.pop %v3373
        %v3444 = vtanh.pop %v3374
        %v3445 = vtanh.pop %v3375
        %v3446 = vtanh.pop %v3376
        %v3447 = vtanh.pop %v3377
        %v3448 = vtanh.pop %v3378
        %v3449 = vtanh.pop %v3379
        %v3450 = vtanh.pop %v3380
        %v3451 = vtanh.pop %v3381
        %v3452 = vtanh.pop %v3382
        %v3453 = vtanh.pop %v3383
        %v3454 = vtanh.pop %v3384
        %v3455 = vtanh.pop %v3385
        %v3456 = vtanh.pop %v3386
        %v3457 = vtanh.pop %v3387
        %v3458 = vtanh.pop %v3388
        %v3459 = vtanh.pop %v3389
        %v3460 = vtanh.pop %v3390
        %v3461 = vtanh.pop %v3391
        %v3462 = vadd.f32 %v3392, 1.0
        %v3463 = vadd.f32 %v3393, 1.0
        %v3464 = vadd.f32 %v3394, 1.0
        %v3465 = vadd.f32 %v3395, 1.0
        %v3466 = vadd.f32 %v3396, 1.0
        %v3467 = vadd.f32 %v3397, 1.0
        %v3468 = vadd.f32 %v3398, 1.0
        %v3469 = vadd.f32 %v3399, 1.0
        %v3470 = vadd.f32 %v3400, 1.0
        %v3471 = vadd.f32 %v3401, 1.0
        %v3472 = vadd.f32 %v3402, 1.0
        %v3473 = vadd.f32 %v3403, 1.0
        %v3474 = vadd.f32 %v3404, 1.0
        %v3475 = vadd.f32 %v3405, 1.0
        %v3476 = vadd.f32 %v3406, 1.0
        %v3477 = vadd.f32 %v3407, 1.0
        %v3478 = vadd.f32 %v3408, 1.0
        %v3479 = vadd.f32 %v3409, 1.0
        %v3480 = vadd.f32 %v3410, 1.0
        %v3481 = vadd.f32 %v3411, 1.0
        %v3482 = vadd.f32 %v3412, 1.0
        %v3483 = vadd.f32 %v3413, 1.0
        %v3484 = vadd.f32 %v3414, 1.0
        %v3485 = vadd.f32 %v3415, 1.0
        %v3486 = vadd.f32 %v3416, 1.0
        %v3487 = vadd.f32 %v3417, 1.0
        %v3488 = vadd.f32 %v3418, 1.0
        %v3489 = vadd.f32 %v3419, 1.0
        %v3490 = vadd.f32 %v3420, 1.0
        %v3491 = vadd.f32 %v3421, 1.0
        %v3492 = vadd.f32 %v3422, 1.0
        %v3493 = vadd.f32 %v3423, 1.0
        %v3494 = vadd.f32 %v3424, 1.0
        %v3495 = vadd.f32 %v3425, 1.0
        %v3496 = vadd.f32 %v3426, 1.0
        %v3497 = vadd.f32 %v3427, 1.0
        %v3498 = vadd.f32 %v3428, 1.0
        %v3499 = vadd.f32 %v3429, 1.0
        %v3500 = vadd.f32 %v3430, 1.0
        %v3501 = vadd.f32 %v3431, 1.0
        %v3502 = vadd.f32 %v3432, 1.0
        %v3503 = vadd.f32 %v3433, 1.0
        %v3504 = vadd.f32 %v3434, 1.0
        %v3505 = vadd.f32 %v3435, 1.0
        %v3506 = vadd.f32 %v3436, 1.0
        %v3507 = vadd.f32 %v3437, 1.0
        %v3508 = vadd.f32 %v3438, 1.0
        %v3509 = vadd.f32 %v3439, 1.0
        %v3510 = vadd.f32 %v3440, 1.0
        %v3511 = vadd.f32 %v3441, 1.0
        %v3512 = vadd.f32 %v3442, 1.0
        %v3513 = vadd.f32 %v3443, 1.0
        %v3514 = vadd.f32 %v3444, 1.0
        %v3515 = vadd.f32 %v3445, 1.0
        %v3516 = vadd.f32 %v3446, 1.0
        %v3517 = vadd.f32 %v3447, 1.0
        %v3518 = vadd.f32 %v3448, 1.0
        %v3519 = vadd.f32 %v3449, 1.0
        %v3520 = vadd.f32 %v3450, 1.0
        %v3521 = vadd.f32 %v3451, 1.0
        %v3522 = vadd.f32 %v3452, 1.0
        %v3523 = vadd.f32 %v3453, 1.0
        %v3524 = vadd.f32 %v3454, 1.0
        %v3525 = vadd.f32 %v3455, 1.0
        %v3526 = vadd.f32 %v3456, 1.0
        %v3527 = vadd.f32 %v3457, 1.0
        %v3528 = vadd.f32 %v3458, 1.0
        %v3529 = vadd.f32 %v3459, 1.0
        %v3530 = vadd.f32 %v3460, 1.0
        %v3531 = vadd.f32 %v3461, 1.0
        %v3532 = vmul.f32 %v3462, 0.5
        %v3533 = vmul.f32 %v3463, 0.5
        %v3534 = vmul.f32 %v3464, 0.5
        %v3535 = vmul.f32 %v3465, 0.5
        %v3536 = vmul.f32 %v3466, 0.5
        %v3537 = vmul.f32 %v3467, 0.5
        %v3538 = vmul.f32 %v3468, 0.5
        %v3539 = vmul.f32 %v3469, 0.5
        %v3540 = vmul.f32 %v3470, 0.5
        %v3541 = vmul.f32 %v3471, 0.5
        %v3542 = vmul.f32 %v3472, 0.5
        %v3543 = vmul.f32 %v3473, 0.5
        %v3544 = vmul.f32 %v3474, 0.5
        %v3545 = vmul.f32 %v3475, 0.5
        %v3546 = vmul.f32 %v3476, 0.5
        %v3547 = vmul.f32 %v3477, 0.5
        %v3548 = vmul.f32 %v3478, 0.5
        %v3549 = vmul.f32 %v3479, 0.5
        %v3550 = vmul.f32 %v3480, 0.5
        %v3551 = vmul.f32 %v3481, 0.5
        %v3552 = vmul.f32 %v3482, 0.5
        %v3553 = vmul.f32 %v3483, 0.5
        %v3554 = vmul.f32 %v3484, 0.5
        %v3555 = vmul.f32 %v3485, 0.5
        %v3556 = vmul.f32 %v3486, 0.5
        %v3557 = vmul.f32 %v3487, 0.5
        %v3558 = vmul.f32 %v3488, 0.5
        %v3559 = vmul.f32 %v3489, 0.5
        %v3560 = vmul.f32 %v3490, 0.5
        %v3561 = vmul.f32 %v3491, 0.5
        %v3562 = vmul.f32 %v3492, 0.5
        %v3563 = vmul.f32 %v3493, 0.5
        %v3564 = vmul.f32 %v3494, 0.5
        %v3565 = vmul.f32 %v3495, 0.5
        %v3566 = vmul.f32 %v3496, 0.5
        %v3567 = vmul.f32 %v3497, 0.5
        %v3568 = vmul.f32 %v3498, 0.5
        %v3569 = vmul.f32 %v3499, 0.5
        %v3570 = vmul.f32 %v3500, 0.5
        %v3571 = vmul.f32 %v3501, 0.5
        %v3572 = vmul.f32 %v3502, 0.5
        %v3573 = vmul.f32 %v3503, 0.5
        %v3574 = vmul.f32 %v3504, 0.5
        %v3575 = vmul.f32 %v3505, 0.5
        %v3576 = vmul.f32 %v3506, 0.5
        %v3577 = vmul.f32 %v3507, 0.5
        %v3578 = vmul.f32 %v3508, 0.5
        %v3579 = vmul.f32 %v3509, 0.5
        %v3580 = vmul.f32 %v3510, 0.5
        %v3581 = vmul.f32 %v3511, 0.5
        %v3582 = vmul.f32 %v3512, 0.5
        %v3583 = vmul.f32 %v3513, 0.5
        %v3584 = vmul.f32 %v3514, 0.5
        %v3585 = vmul.f32 %v3515, 0.5
        %v3586 = vmul.f32 %v3516, 0.5
        %v3587 = vmul.f32 %v3517, 0.5
        %v3588 = vmul.f32 %v3518, 0.5
        %v3589 = vmul.f32 %v3519, 0.5
        %v3590 = vmul.f32 %v3520, 0.5
        %v3591 = vmul.f32 %v3521, 0.5
        %v3592 = vmul.f32 %v3522, 0.5
        %v3593 = vmul.f32 %v3523, 0.5
        %v3594 = vmul.f32 %v3524, 0.5
        %v3595 = vmul.f32 %v3525, 0.5
        %v3596 = vmul.f32 %v3526, 0.5
        %v3597 = vmul.f32 %v3527, 0.5
        %v3598 = vmul.f32 %v3528, 0.5
        %v3599 = vmul.f32 %v3529, 0.5
        %v3600 = vmul.f32 %v3530, 0.5
        %v3601 = vmul.f32 %v3531, 0.5
        %3602 = vst [vmem:[%s326] sm:$0xff] %v3532
        %3603 = vst [vmem:[%s326 + $0x8] sm:$0xff] %v3533
        %3604 = vst [vmem:[%s326 + $0x10] sm:$0xff] %v3534
        %3605 = vst [vmem:[%s326 + $0x18] sm:$0xff] %v3535
        %3606 = vst [vmem:[%s326 + $0x20] sm:$0xff] %v3536
        %3607 = vst [vmem:[%s326 + $0x28] sm:$0xff] %v3537
        %3608 = vst [vmem:[%s326 + $0x30] sm:$0xff] %v3538
        %3609 = vst [vmem:[%s326 + $0x38] sm:$0xff] %v3539
        %3610 = vst [vmem:[%s326 + $0x40] sm:$0xff] %v3540
        %vm3611 = vcmask 392192
        %3612 = vst.msk [vmem:[%s326 + $0x48] sm:$0xff] %vm3611, %v3541
        %3613 = vst [vmem:[%s326 + $0x50] sm:$0xff] %v3542
        %3614 = vst [vmem:[%s326 + $0x58] sm:$0xff] %v3543
        %3615 = vst [vmem:[%s326 + $0x60] sm:$0xff] %v3544
        %3616 = vst [vmem:[%s326 + $0x68] sm:$0xff] %v3545
        %3617 = vst [vmem:[%s326 + $0x70] sm:$0xff] %v3546
        %3618 = vst [vmem:[%s326 + $0x78] sm:$0xff] %v3547
        %3619 = vst [vmem:[%s326 + $0x80] sm:$0xff] %v3548
        %3620 = vst [vmem:[%s326 + $0x88] sm:$0xff] %v3549
        %3621 = vst [vmem:[%s326 + $0x90] sm:$0xff] %v3550
        %3622 = vst.msk [vmem:[%s326 + $0x98] sm:$0xff] %vm3611, %v3551
        %3623 = vst [vmem:[%s326 + $0xa0] sm:$0xff] %v3552
        %3624 = vst [vmem:[%s326 + $0xa8] sm:$0xff] %v3553
        %3625 = vst [vmem:[%s326 + $0xb0] sm:$0xff] %v3554
        %3626 = vst [vmem:[%s326 + $0xb8] sm:$0xff] %v3555
        %3627 = vst [vmem:[%s326 + $0xc0] sm:$0xff] %v3556
        %3628 = vst [vmem:[%s326 + $0xc8] sm:$0xff] %v3557
        %3629 = vst [vmem:[%s326 + $0xd0] sm:$0xff] %v3558
        %3630 = vst [vmem:[%s326 + $0xd8] sm:$0xff] %v3559
        %3631 = vst [vmem:[%s326 + $0xe0] sm:$0xff] %v3560
        %3632 = vst.msk [vmem:[%s326 + $0xe8] sm:$0xff] %vm3611, %v3561
        %3633 = vst [vmem:[%s326 + $0xf0] sm:$0xff] %v3562
        %3634 = vst [vmem:[%s326 + $0xf8] sm:$0xff] %v3563
        %3635 = vst [vmem:[%s326 + $0x100] sm:$0xff] %v3564
        %3636 = vst [vmem:[%s326 + $0x108] sm:$0xff] %v3565
        %3637 = vst [vmem:[%s326 + $0x110] sm:$0xff] %v3566
        %3638 = vst [vmem:[%s326 + $0x118] sm:$0xff] %v3567
        %3639 = vst [vmem:[%s326 + $0x120] sm:$0xff] %v3568
        %3640 = vst [vmem:[%s326 + $0x128] sm:$0xff] %v3569
        %3641 = vst [vmem:[%s326 + $0x130] sm:$0xff] %v3570
        %3642 = vst.msk [vmem:[%s326 + $0x138] sm:$0xff] %vm3611, %v3571
        %3643 = vst [vmem:[%s326 + $0x140] sm:$0xff] %v3572
        %3644 = vst [vmem:[%s326 + $0x148] sm:$0xff] %v3573
        %3645 = vst [vmem:[%s326 + $0x150] sm:$0xff] %v3574
        %3646 = vst [vmem:[%s326 + $0x158] sm:$0xff] %v3575
        %3647 = vst [vmem:[%s326 + $0x160] sm:$0xff] %v3576
        %3648 = vst [vmem:[%s326 + $0x168] sm:$0xff] %v3577
        %3649 = vst [vmem:[%s326 + $0x170] sm:$0xff] %v3578
        %3650 = vst [vmem:[%s326 + $0x178] sm:$0xff] %v3579
        %3651 = vst [vmem:[%s326 + $0x180] sm:$0xff] %v3580
        %3652 = vst.msk [vmem:[%s326 + $0x188] sm:$0xff] %vm3611, %v3581
        %3653 = vst [vmem:[%s326 + $0x190] sm:$0xff] %v3582
        %3654 = vst [vmem:[%s326 + $0x198] sm:$0xff] %v3583
        %3655 = vst [vmem:[%s326 + $0x1a0] sm:$0xff] %v3584
        %3656 = vst [vmem:[%s326 + $0x1a8] sm:$0xff] %v3585
        %3657 = vst [vmem:[%s326 + $0x1b0] sm:$0xff] %v3586
        %3658 = vst [vmem:[%s326 + $0x1b8] sm:$0xff] %v3587
        %3659 = vst [vmem:[%s326 + $0x1c0] sm:$0xff] %v3588
        %3660 = vst [vmem:[%s326 + $0x1c8] sm:$0xff] %v3589
        %3661 = vst [vmem:[%s326 + $0x1d0] sm:$0xff] %v3590
        %3662 = vst.msk [vmem:[%s326 + $0x1d8] sm:$0xff] %vm3611, %v3591
        %3663 = vst [vmem:[%s326 + $0x1e0] sm:$0xff] %v3592
        %3664 = vst [vmem:[%s326 + $0x1e8] sm:$0xff] %v3593
        %3665 = vst [vmem:[%s326 + $0x1f0] sm:$0xff] %v3594
        %3666 = vst [vmem:[%s326 + $0x1f8] sm:$0xff] %v3595
        %3667 = vst [vmem:[%s326 + $0x200] sm:$0xff] %v3596
        %3668 = vst [vmem:[%s326 + $0x208] sm:$0xff] %v3597
        %3669 = vst [vmem:[%s326 + $0x210] sm:$0xff] %v3598
        %3670 = vst [vmem:[%s326 + $0x218] sm:$0xff] %v3599
        %3671 = vst [vmem:[%s326 + $0x220] sm:$0xff] %v3600
        %3672 = vst.msk [vmem:[%s326 + $0x228] sm:$0xff] %vm3611, %v3601
        %s3673 = sand.u32 %s225, 1
        %s3674 = scalar_lea.sflag [#allocation3], %s3673
        %s3675 = sand.u32 %s225, 1
        %s3676 = smul.addr %s3675, 560
        %s3677 = scalar_lea.vmem [#allocation2], %s3676
        // Predicated region
        $region57: #{tpu_custom_call.1} parent=55 // pred_check
          %p3678 = pneg %p235
        $region58: #{tpu_custom_call.1} parent=55 // pred_check_branch
          %3680 = sbr.rel (%p3678) target = $region60
        $region59: #{tpu_custom_call.1} parent=55 // pred_region
          %s3681 = smul.u32 7, %s23
          %3683 = vsyncadd %s3674, 0
          %s3684 = smul.addr %s3681, 10
          %s3685 = smul.addr %s3684, 8
          %s3686 = scalar_lea.hbm %s9, %s3685
          %s3687 = sshll.u32 %s3677, 4
          %s3688 = int_to_ptr.vmem [resolvable:$true] %s3687
          %s3689 = sshll.u32 %s3686, 4
          %s3690 = int_to_ptr.hbm [resolvable:$true] %s3689
          %3695 = dma.vmem_to_hbm [thread:$0]  %s3688, 8960, %s3690, %s3674, 1280, 1280, 80
        $region60: #{tpu_custom_call.1} parent=55 // pred_fallthru
          _
      $region56: #{tpu_custom_call.1} parent=5 // pred_fallthru
        _
      %p3696 = scmp.le.s32.totalorder 2, %s18
      // Predicated region
      $region61: #{tpu_custom_call.1} parent=5 // pred_check
        %p3697 = pneg %p3696
      $region62: #{tpu_custom_call.1} parent=5 // pred_check_branch
        %3699 = sbr.rel (%p3697) target = $region64
      $region63: #{tpu_custom_call.1} parent=5 // pred_region
        %s3700 = ssub.s32 %s18, 2
        // Predicated region
        $region65: #{tpu_custom_call.1} parent=63 // pred_check
          %p3701 = pneg %p241
        $region66: #{tpu_custom_call.1} parent=63 // pred_check_branch
          %3703 = sbr.rel (%p3701) target = $region68
        $region67: #{tpu_custom_call.1} parent=63 // pred_region
          %s3704 = sand.u32 %s226, 1
          %s3705 = scalar_lea.sflag [#allocation3], %s3704
          %s3706 = sand.u32 %s226, 1
          %s3707 = smul.addr %s3706, 560
          %s3708 = scalar_lea.vmem [#allocation2], %s3707
          %3710 = dma.done %s3705, 8960
        $region68: #{tpu_custom_call.1} parent=63 // pred_fallthru
          _
      $region64: #{tpu_custom_call.1} parent=5 // pred_fallthru
        _
    $region6: #{tpu_custom_call.1} parent=1 // loop_footer
      %s22 = sadd.s32 1, %s18
    $region7: #{tpu_custom_call.1} parent=1 // loop_footer_branch
      %17 = sbr.rel target = $region3
    $region8: #{tpu_custom_call.1} parent=1 // loop_exit
      _
    %3711 = vsyncpa [#allocation3], 1
    %s3712 = scalar_lea.sflag [#allocation3], 1
    %3713 = vsyncpa %s3712, 1

</llo_original>
